<compile_context>
chip_gen: v7x
topology: tpu7x:2x2x1
jax: 0.10.0
libtpu: 0.0.40
codegen_flags: <defaults>
</compile_context>

<pallas_src>
import math
import functools

import jax
import jax.numpy as jnp
from jax import lax
from jax.experimental import pallas as pl
from jax.experimental.pallas import tpu as pltpu


def _layer_norm(x, gamma, beta, eps=1e-5):
    mean = jnp.mean(x, axis=-1, keepdims=True)
    var = jnp.mean((x - mean) ** 2, axis=-1, keepdims=True)
    return (x - mean) * lax.rsqrt(var + eps) * gamma + beta


def _attention_heads(qkv, y_scratch, r0, seq_len, nhead, dk, d_model):
    """Attention for one sequence (rows r0:r0+seq_len of the token block).

    Each head's (S, dk) output is written into its column slice of the
    (tokens, D) VMEM concat buffer; the output projection is applied ONCE
    outside over the whole token block so the MXU sees a full K = d_model
    contraction instead of nhead K = dk slices.
    """
    for h in range(nhead):                                   # static, small
        c0 = h * dk
        qh = qkv[r0:r0 + seq_len, c0:c0 + dk].astype(jnp.bfloat16)
        kh = qkv[r0:r0 + seq_len,
                 d_model + c0:d_model + c0 + dk].astype(jnp.bfloat16)
        vh = qkv[r0:r0 + seq_len,
                 2 * d_model + c0:2 * d_model + c0 + dk].astype(jnp.bfloat16)
        # q @ k^T expressed as dot_general contracting the last dims (no
        # explicit transpose in-kernel); bf16 operands, f32 accumulation.
        s = lax.dot_general(qh, kh, (((1,), (1,)), ((), ())),
                            preferred_element_type=jnp.float32)      # (S, S)
        s = s - jnp.max(s, axis=-1, keepdims=True)
        p = jnp.exp(s)
        # EUP approximate reciprocal instead of a VALU divide.
        p = p * pl.reciprocal(jnp.sum(p, axis=-1, keepdims=True), approx=True)
        yh = jnp.dot(p.astype(jnp.bfloat16), vh,
                     preferred_element_type=jnp.float32)             # (S, dk)
        y_scratch[r0:r0 + seq_len, c0:c0 + dk] = yh


def encoder_layer_kernel(x_ref, wqkv_ref, wfc_ref, bfc_ref, gamma_ref, beta_ref,
                         w1_ref, b1_ref, w2_ref, b2_ref, o_ref, y_scratch,
                         *, nhead, seq_len, ffn_chunk):
    T, D = x_ref.shape                  # T = batch_block * seq_len tokens
    F = w1_ref.shape[1]
    dk = D // nhead
    nb = T // seq_len                   # sequences packed into this block

    x = x_ref[...]                                                   # (T, D) f32
    # Fused Q/K/V projection: one (T, D) x (D, 3D) bf16 MXU matmul (f32 acc).
    qkv = jnp.dot(x.astype(jnp.bfloat16), wqkv_ref[...],
                  preferred_element_type=jnp.float32)                # (T, 3D)

    # Per-sequence, per-head attention into the VMEM concat buffer.
    for b in range(nb):                                              # static, small
        _attention_heads(qkv, y_scratch, b * seq_len, seq_len, nhead, dk, D)

    # Single full-depth output projection over the whole token block.
    attn = jnp.dot(y_scratch[...].astype(jnp.bfloat16), wfc_ref[...],
                   preferred_element_type=jnp.float32) + bfc_ref[...]

    gamma = gamma_ref[...]                                           # (1, D)
    beta = beta_ref[...]                                             # (1, D)

    # AddNorm 1: LN(attn_out + x)   (same LN params reused below, per module)
    z1 = _layer_norm(attn + x, gamma, beta)
    z1b = z1.astype(jnp.bfloat16)

    # FFN with the hidden dim processed in chunks (accumulator in f32) so the
    # (T, F) intermediate stays bounded for large dim_feedforward.
    ffn = jnp.zeros((T, D), jnp.float32)
    for f0 in range(0, F, ffn_chunk):                                # static
        fc = min(ffn_chunk, F - f0)
        h1 = jnp.dot(z1b, w1_ref[:, f0:f0 + fc],
                     preferred_element_type=jnp.float32) + b1_ref[:, f0:f0 + fc]
        h1 = jnp.maximum(h1, 0.0)
        ffn = ffn + jnp.dot(h1.astype(jnp.bfloat16), w2_ref[f0:f0 + fc, :],
                            preferred_element_type=jnp.float32)
    ffn = ffn + b2_ref[...]

    # AddNorm 2: LN(ffn_out + z1)
    o_ref[...] = _layer_norm(ffn + z1, gamma, beta).astype(o_ref.dtype)


def transformer_encoder_layer(x, params, *, nhead, batch_block=None):
    B, S, D = x.shape
    F = params["w1"].shape[0]
    dk = D // nhead
    bf16, f32 = jnp.bfloat16, jnp.float32

    # ---- wrapper-side layout / dtype plumbing (zero kernel cost) -----------
    # Pre-transpose every weight to (in, out), fuse Q/K/V into one (D, 3D)
    # weight, fold 1/sqrt(dk) into the Q columns, cast MXU operands to bf16.
    wq_t = params["wq"].T.astype(f32) * (1.0 / math.sqrt(dk))
    wqkv = jnp.concatenate(
        [wq_t, params["wk"].T.astype(f32), params["wv"].T.astype(f32)],
        axis=1).astype(bf16)                                         # (D, 3D)
    wfc_t = params["wfc"].T.astype(bf16)                             # (D, D)
    w1_t = params["w1"].T.astype(bf16)                               # (D, F)
    w2_t = params["w2"].T.astype(bf16)                               # (F, D)

    bfc = params["bfc"].astype(f32)
    gamma = params["gamma"].astype(f32)
    beta = params["beta"].astype(f32)
    b1 = params["b1"].astype(f32)
    b2 = params["b2"].astype(f32)

    # ---- choose how many sequences to pack per grid step --------------------
    # Each grid step costs ~0.35 us of pipeline overhead, so for short
    # sequences pack several batch rows per step (aim >= 256 token rows), BUT
    # never let the grid collapse below 2 steps when B >= 2 so both v7x
    # TensorCores and the DMA/compute pipeline stay busy.
    if batch_block is None:
        max_bb = B if B < 2 else max(1, B // 2)
        batch_block = 1
        for cand in range(1, max_bb + 1):
            if B % cand == 0:
                batch_block = cand
                if cand * S >= 256:
                    break
    assert B % batch_block == 0
    tokens = batch_block * S
    grid = (B // batch_block,)

    x_tok = x.reshape(B * S, D).astype(f32)

    ffn_chunk = min(F, 512)
    kernel = functools.partial(encoder_layer_kernel, nhead=nhead, seq_len=S,
                               ffn_chunk=ffn_chunk)

    # Advisory cost hint for XLA's scheduler.
    flops = 2 * B * S * D * (4 * D + 2 * F) + 4 * B * S * S * D
    bytes_accessed = (2 * (4 * D * D + 2 * D * F)          # bf16 weights
                      + 4 * (2 * B * S * D + 4 * D + F))   # f32 act + biases
    cost = pl.CostEstimate(flops=flops, transcendentals=B * nhead * S * S,
                           bytes_accessed=bytes_accessed)

    # Explicit scoped-VMEM budget with headroom: <= 56 MiB keeps it inside
    # v7x's 64 MiB/TC while overriding the 16/32 MiB defaults on v5e/v6e.
    weight_bytes = 2 * (4 * D * D + 2 * D * F)
    act_bytes = 4 * tokens * (7 * D + ffn_chunk) + 4 * nhead * S * S
    vmem_limit = int(min(56 * 2 ** 20,
                         max(32 * 2 ** 20, 4 * (weight_bytes + act_bytes))))

    def build(single_buffer_weights):
        # Constant-index weights are never re-DMA'd across grid steps; request
        # a single VMEM buffer for them instead of the default double buffer.
        if single_buffer_weights:
            wspec = lambda r, c: pl.BlockSpec((r, c), lambda i: (0, 0),
                                              pipeline_mode=pl.Buffered(1))
        else:
            wspec = lambda r, c: pl.BlockSpec((r, c), lambda i: (0, 0))
        bspec = lambda r, c: pl.BlockSpec((r, c), lambda i: (0, 0))
        return pl.pallas_call(
            kernel,
            out_shape=jax.ShapeDtypeStruct((B * S, D), jnp.float32),
            grid_spec=pltpu.PrefetchScalarGridSpec(
                num_scalar_prefetch=0,
                grid=grid,
                in_specs=[
                    pl.BlockSpec((tokens, D), lambda i: (i, 0)),  # x (tokens)
                    wspec(D, 3 * D),                              # [WQ|WK|WV]^T bf16
                    wspec(D, D),                                  # W_fc^T bf16
                    bspec(1, D),                                  # b_fc
                    bspec(1, D),                                  # gamma
                    bspec(1, D),                                  # beta
                    wspec(D, F),                                  # W1^T bf16
                    bspec(1, F),                                  # b1
                    wspec(F, D),                                  # W2^T bf16
                    bspec(1, D),                                  # b2
                ],
                out_specs=pl.BlockSpec((tokens, D), lambda i: (i, 0)),
                scratch_shapes=[pltpu.VMEM((tokens, D), jnp.float32)],
            ),
            compiler_params=pltpu.CompilerParams(
                dimension_semantics=("parallel",),
                vmem_limit_bytes=vmem_limit),
            cost_estimate=cost,
        )

    args = (x_tok, wqkv, wfc_t, bfc, gamma, beta, w1_t, b1, w2_t, b2)
    try:
        out = jax.block_until_ready(build(True)(*args))
    except Exception:
        # Fallback for JAX builds that reject single-buffered pipeline mode.
        out = jax.block_until_ready(build(False)(*args))

    return out.reshape(B, S, D)


def _reference(x, p, nhead):
    # Pure-JAX f32 reference for verification.
    B, S, D = x.shape
    dk = D // nhead

    q = x @ p["wq"].T
    k = x @ p["wk"].T
    v = x @ p["wv"].T

    def split(t):  # (B, S, D) -> (B, H, S, dk)
        return t.reshape(B, S, nhead, dk).transpose(0, 2, 1, 3)

    qh, kh, vh = split(q), split(k), split(v)
    sc = jnp.einsum("bhqd,bhkd->bhqk", qh, kh) / math.sqrt(dk)
    pr = jax.nn.softmax(sc, axis=-1)
    y = jnp.einsum("bhqk,bhkd->bhqd", pr, vh)
    y = y.transpose(0, 2, 1, 3).reshape(B, S, D)
    attn = y @ p["wfc"].T + p["bfc"][0]

    def ln(t):
        m = t.mean(-1, keepdims=True)
        v_ = ((t - m) ** 2).mean(-1, keepdims=True)
        return (t - m) / jnp.sqrt(v_ + 1e-5) * p["gamma"][0] + p["beta"][0]

    z1 = ln(attn + x)
    h1 = jnp.maximum(z1 @ p["w1"].T + p["b1"][0], 0.0)
    ffn = h1 @ p["w2"].T + p["b2"][0]
    return ln(ffn + z1)


if __name__ == "__main__":
    B, S, D, NHEAD, F = 2, 8, 32, 4, 64

    key = jax.random.PRNGKey(0)
    keys = jax.random.split(key, 12)

    def uni(k, shape, fan_in):
        bound = 1.0 / math.sqrt(fan_in)
        return jax.random.uniform(k, shape, jnp.float32, -bound, bound)

    params = {
        "wq": uni(keys[0], (D, D), D),
        "wk": uni(keys[1], (D, D), D),
        "wv": uni(keys[2], (D, D), D),
        "wfc": uni(keys[3], (D, D), D),
        "bfc": uni(keys[4], (1, D), D),
        "gamma": jnp.ones((1, D), jnp.float32),
        "beta": jnp.zeros((1, D), jnp.float32),
        "w1": uni(keys[5], (F, D), D),
        "b1": uni(keys[6], (1, F), D),
        "w2": uni(keys[7], (D, F), F),
        "b2": uni(keys[8], (1, D), F),
    }

    x = jax.random.normal(keys[9], (B, S, D), jnp.float32)

    out = transformer_encoder_layer(x, params, nhead=NHEAD)
    out = jax.block_until_ready(out)

    ref = _reference(x, params, NHEAD)
    assert out.shape == (B, S, D)
    # Tolerance covers bf16 MXU operands (f32 accumulation) and the
    # approximate EUP reciprocal used in the softmax normalization.
    assert jnp.allclose(out, ref, atol=5e-2, rtol=5e-2), "mismatch vs reference"

    print("KERNEL_OK")
</pallas_src>

<mosaic_0001>
module attributes {stable_mosaic.version = 11 : i64} {
  func.func @encoder_layer_kernel(%arg0: i32, %arg1: memref<8x32xf32, #tpu.memory_space<vmem>>, %arg2: memref<32x96xbf16, #tpu.memory_space<vmem>>, %arg3: memref<32x32xbf16, #tpu.memory_space<vmem>>, %arg4: memref<1x32xf32, #tpu.memory_space<vmem>>, %arg5: memref<1x32xf32, #tpu.memory_space<vmem>>, %arg6: memref<1x32xf32, #tpu.memory_space<vmem>>, %arg7: memref<32x64xbf16, #tpu.memory_space<vmem>>, %arg8: memref<1x64xf32, #tpu.memory_space<vmem>>, %arg9: memref<64x32xbf16, #tpu.memory_space<vmem>>, %arg10: memref<1x32xf32, #tpu.memory_space<vmem>>, %arg11: memref<8x32xf32, #tpu.memory_space<vmem>>, %arg12: memref<8x32xf32, #tpu.memory_space<vmem>>) attributes {dimension_semantics = [#tpu.dimension_semantics<parallel>], iteration_bounds = array<i64: 2>, scalar_prefetch = 0 : i64, scratch_operands = 1 : i64, tpu.core_type = #tpu.core_type<tc>, window_params = [{transform_indices = @transform_0, window_bounds = array<i64: 8, 32>}, {pipeline_mode = #tpu.pipeline_mode<synchronous>, transform_indices = @transform_1, window_bounds = array<i64: 32, 96>}, {pipeline_mode = #tpu.pipeline_mode<synchronous>, transform_indices = @transform_2, window_bounds = array<i64: 32, 32>}, {pipeline_mode = #tpu.pipeline_mode<synchronous>, transform_indices = @transform_3, window_bounds = array<i64: 1, 32>}, {pipeline_mode = #tpu.pipeline_mode<synchronous>, transform_indices = @transform_4, window_bounds = array<i64: 1, 32>}, {pipeline_mode = #tpu.pipeline_mode<synchronous>, transform_indices = @transform_5, window_bounds = array<i64: 1, 32>}, {pipeline_mode = #tpu.pipeline_mode<synchronous>, transform_indices = @transform_6, window_bounds = array<i64: 32, 64>}, {pipeline_mode = #tpu.pipeline_mode<synchronous>, transform_indices = @transform_7, window_bounds = array<i64: 1, 64>}, {pipeline_mode = #tpu.pipeline_mode<synchronous>, transform_indices = @transform_8, window_bounds = array<i64: 64, 32>}, {pipeline_mode = #tpu.pipeline_mode<synchronous>, transform_indices = @transform_9, window_bounds = array<i64: 1, 32>}, {transform_indices = @transform_10, window_bounds = array<i64: 8, 32>}]} {
    %c0 = arith.constant 0 : index
    %c0_0 = arith.constant 0 : index
    %0 = vector.load %arg1[%c0, %c0_0] : memref<8x32xf32, #tpu.memory_space<vmem>>, vector<8x32xf32>
    %1 = arith.truncf %0 : vector<8x32xf32> to vector<8x32xbf16>
    %c0_1 = arith.constant 0 : index
    %c0_2 = arith.constant 0 : index
    %2 = vector.load %arg2[%c0_1, %c0_2] : memref<32x96xbf16, #tpu.memory_space<vmem>>, vector<32x96xbf16>
    %cst = arith.constant dense<0.000000e+00> : vector<8x96xf32>
    %3 = tpu.matmul %1, %2, %cst {dimension_numbers = #tpu.dot_dimension_numbers<[1], [0], [0], [1], [0, 0, 1, 1], [], []>} : vector<8x32xbf16>, vector<32x96xbf16>, vector<8x96xf32> -> vector<8x96xf32>
    %4 = vector.extract_strided_slice %3 {offsets = [0, 0], sizes = [8, 8], strides = [1, 1]} : vector<8x96xf32> to vector<8x8xf32>
    %5 = arith.truncf %4 : vector<8x8xf32> to vector<8x8xbf16>
    %6 = vector.extract_strided_slice %3 {offsets = [0, 32], sizes = [8, 8], strides = [1, 1]} : vector<8x96xf32> to vector<8x8xf32>
    %7 = arith.truncf %6 : vector<8x8xf32> to vector<8x8xbf16>
    %8 = vector.extract_strided_slice %3 {offsets = [0, 64], sizes = [8, 8], strides = [1, 1]} : vector<8x96xf32> to vector<8x8xf32>
    %9 = arith.truncf %8 : vector<8x8xf32> to vector<8x8xbf16>
    %cst_3 = arith.constant dense<0.000000e+00> : vector<8x8xf32>
    %10 = tpu.matmul %5, %7, %cst_3 {dimension_numbers = #tpu.dot_dimension_numbers<[1], [1], [0], [0], [0, 0, 1, 0], [], []>} : vector<8x8xbf16>, vector<8x8xbf16>, vector<8x8xf32> -> vector<8x8xf32>
    %cst_4 = arith.constant dense<0xFF800000> : vector<8xf32>
    %11 = vector.multi_reduction <maximumf>, %10, %cst_4 [1] : vector<8x8xf32> to vector<8xf32>
    %12 = vector.shape_cast %11 : vector<8xf32> to vector<8x1xf32>
    %13 = vector.broadcast %12 : vector<8x1xf32> to vector<8x8xf32>
    %14 = arith.subf %10, %13 : vector<8x8xf32>
    %15 = math.exp %14 : vector<8x8xf32>
    %cst_5 = arith.constant dense<0.000000e+00> : vector<8xf32>
    %16 = vector.multi_reduction <add>, %15, %cst_5 [1] : vector<8x8xf32> to vector<8xf32>
    %17 = vector.shape_cast %16 : vector<8xf32> to vector<8x1xf32>
    %18 = tpu.reciprocal %17 {approx = true} : vector<8x1xf32> -> vector<8x1xf32>
    %19 = vector.broadcast %18 : vector<8x1xf32> to vector<8x8xf32>
    %20 = arith.mulf %15, %19 : vector<8x8xf32>
    %21 = arith.truncf %20 : vector<8x8xf32> to vector<8x8xbf16>
    %cst_6 = arith.constant dense<0.000000e+00> : vector<8x8xf32>
    %22 = tpu.matmul %21, %9, %cst_6 {dimension_numbers = #tpu.dot_dimension_numbers<[1], [0], [0], [1], [0, 0, 1, 1], [], []>} : vector<8x8xbf16>, vector<8x8xbf16>, vector<8x8xf32> -> vector<8x8xf32>
    %c0_7 = arith.constant 0 : index
    %c0_8 = arith.constant 0 : index
    %23 = vector.load %arg12[%c0_7, %c0_8] : memref<8x32xf32, #tpu.memory_space<vmem>>, vector<8x8xf32>
    tpu.vector_store %arg12[%c0_7, %c0_8], %22 {strides = array<i32>} : memref<8x32xf32, #tpu.memory_space<vmem>>, vector<8x8xf32>,
    %24 = vector.extract_strided_slice %3 {offsets = [0, 8], sizes = [8, 8], strides = [1, 1]} : vector<8x96xf32> to vector<8x8xf32>
    %25 = arith.truncf %24 : vector<8x8xf32> to vector<8x8xbf16>
    %26 = vector.extract_strided_slice %3 {offsets = [0, 40], sizes = [8, 8], strides = [1, 1]} : vector<8x96xf32> to vector<8x8xf32>
    %27 = arith.truncf %26 : vector<8x8xf32> to vector<8x8xbf16>
    %28 = vector.extract_strided_slice %3 {offsets = [0, 72], sizes = [8, 8], strides = [1, 1]} : vector<8x96xf32> to vector<8x8xf32>
    %29 = arith.truncf %28 : vector<8x8xf32> to vector<8x8xbf16>
    %cst_9 = arith.constant dense<0.000000e+00> : vector<8x8xf32>
    %30 = tpu.matmul %25, %27, %cst_9 {dimension_numbers = #tpu.dot_dimension_numbers<[1], [1], [0], [0], [0, 0, 1, 0], [], []>} : vector<8x8xbf16>, vector<8x8xbf16>, vector<8x8xf32> -> vector<8x8xf32>
    %cst_10 = arith.constant dense<0xFF800000> : vector<8xf32>
    %31 = vector.multi_reduction <maximumf>, %30, %cst_10 [1] : vector<8x8xf32> to vector<8xf32>
    %32 = vector.shape_cast %31 : vector<8xf32> to vector<8x1xf32>
    %33 = vector.broadcast %32 : vector<8x1xf32> to vector<8x8xf32>
    %34 = arith.subf %30, %33 : vector<8x8xf32>
    %35 = math.exp %34 : vector<8x8xf32>
    %cst_11 = arith.constant dense<0.000000e+00> : vector<8xf32>
    %36 = vector.multi_reduction <add>, %35, %cst_11 [1] : vector<8x8xf32> to vector<8xf32>
    %37 = vector.shape_cast %36 : vector<8xf32> to vector<8x1xf32>
    %38 = tpu.reciprocal %37 {approx = true} : vector<8x1xf32> -> vector<8x1xf32>
    %39 = vector.broadcast %38 : vector<8x1xf32> to vector<8x8xf32>
    %40 = arith.mulf %35, %39 : vector<8x8xf32>
    %41 = arith.truncf %40 : vector<8x8xf32> to vector<8x8xbf16>
    %cst_12 = arith.constant dense<0.000000e+00> : vector<8x8xf32>
    %42 = tpu.matmul %41, %29, %cst_12 {dimension_numbers = #tpu.dot_dimension_numbers<[1], [0], [0], [1], [0, 0, 1, 1], [], []>} : vector<8x8xbf16>, vector<8x8xbf16>, vector<8x8xf32> -> vector<8x8xf32>
    %c0_13 = arith.constant 0 : index
    %c8 = arith.constant 8 : index
    %43 = vector.load %arg12[%c0_13, %c8] : memref<8x32xf32, #tpu.memory_space<vmem>>, vector<8x8xf32>
    tpu.vector_store %arg12[%c0_13, %c8], %42 {strides = array<i32>} : memref<8x32xf32, #tpu.memory_space<vmem>>, vector<8x8xf32>,
    %44 = vector.extract_strided_slice %3 {offsets = [0, 16], sizes = [8, 8], strides = [1, 1]} : vector<8x96xf32> to vector<8x8xf32>
    %45 = arith.truncf %44 : vector<8x8xf32> to vector<8x8xbf16>
    %46 = vector.extract_strided_slice %3 {offsets = [0, 48], sizes = [8, 8], strides = [1, 1]} : vector<8x96xf32> to vector<8x8xf32>
    %47 = arith.truncf %46 : vector<8x8xf32> to vector<8x8xbf16>
    %48 = vector.extract_strided_slice %3 {offsets = [0, 80], sizes = [8, 8], strides = [1, 1]} : vector<8x96xf32> to vector<8x8xf32>
    %49 = arith.truncf %48 : vector<8x8xf32> to vector<8x8xbf16>
    %cst_14 = arith.constant dense<0.000000e+00> : vector<8x8xf32>
    %50 = tpu.matmul %45, %47, %cst_14 {dimension_numbers = #tpu.dot_dimension_numbers<[1], [1], [0], [0], [0, 0, 1, 0], [], []>} : vector<8x8xbf16>, vector<8x8xbf16>, vector<8x8xf32> -> vector<8x8xf32>
    %cst_15 = arith.constant dense<0xFF800000> : vector<8xf32>
    %51 = vector.multi_reduction <maximumf>, %50, %cst_15 [1] : vector<8x8xf32> to vector<8xf32>
    %52 = vector.shape_cast %51 : vector<8xf32> to vector<8x1xf32>
    %53 = vector.broadcast %52 : vector<8x1xf32> to vector<8x8xf32>
    %54 = arith.subf %50, %53 : vector<8x8xf32>
    %55 = math.exp %54 : vector<8x8xf32>
    %cst_16 = arith.constant dense<0.000000e+00> : vector<8xf32>
    %56 = vector.multi_reduction <add>, %55, %cst_16 [1] : vector<8x8xf32> to vector<8xf32>
    %57 = vector.shape_cast %56 : vector<8xf32> to vector<8x1xf32>
    %58 = tpu.reciprocal %57 {approx = true} : vector<8x1xf32> -> vector<8x1xf32>
    %59 = vector.broadcast %58 : vector<8x1xf32> to vector<8x8xf32>
    %60 = arith.mulf %55, %59 : vector<8x8xf32>
    %61 = arith.truncf %60 : vector<8x8xf32> to vector<8x8xbf16>
    %cst_17 = arith.constant dense<0.000000e+00> : vector<8x8xf32>
    %62 = tpu.matmul %61, %49, %cst_17 {dimension_numbers = #tpu.dot_dimension_numbers<[1], [0], [0], [1], [0, 0, 1, 1], [], []>} : vector<8x8xbf16>, vector<8x8xbf16>, vector<8x8xf32> -> vector<8x8xf32>
    %c0_18 = arith.constant 0 : index
    %c16 = arith.constant 16 : index
    %63 = vector.load %arg12[%c0_18, %c16] : memref<8x32xf32, #tpu.memory_space<vmem>>, vector<8x8xf32>
    tpu.vector_store %arg12[%c0_18, %c16], %62 {strides = array<i32>} : memref<8x32xf32, #tpu.memory_space<vmem>>, vector<8x8xf32>,
    %64 = vector.extract_strided_slice %3 {offsets = [0, 24], sizes = [8, 8], strides = [1, 1]} : vector<8x96xf32> to vector<8x8xf32>
    %65 = arith.truncf %64 : vector<8x8xf32> to vector<8x8xbf16>
    %66 = vector.extract_strided_slice %3 {offsets = [0, 56], sizes = [8, 8], strides = [1, 1]} : vector<8x96xf32> to vector<8x8xf32>
    %67 = arith.truncf %66 : vector<8x8xf32> to vector<8x8xbf16>
    %68 = vector.extract_strided_slice %3 {offsets = [0, 88], sizes = [8, 8], strides = [1, 1]} : vector<8x96xf32> to vector<8x8xf32>
    %69 = arith.truncf %68 : vector<8x8xf32> to vector<8x8xbf16>
    %cst_19 = arith.constant dense<0.000000e+00> : vector<8x8xf32>
    %70 = tpu.matmul %65, %67, %cst_19 {dimension_numbers = #tpu.dot_dimension_numbers<[1], [1], [0], [0], [0, 0, 1, 0], [], []>} : vector<8x8xbf16>, vector<8x8xbf16>, vector<8x8xf32> -> vector<8x8xf32>
    %cst_20 = arith.constant dense<0xFF800000> : vector<8xf32>
    %71 = vector.multi_reduction <maximumf>, %70, %cst_20 [1] : vector<8x8xf32> to vector<8xf32>
    %72 = vector.shape_cast %71 : vector<8xf32> to vector<8x1xf32>
    %73 = vector.broadcast %72 : vector<8x1xf32> to vector<8x8xf32>
    %74 = arith.subf %70, %73 : vector<8x8xf32>
    %75 = math.exp %74 : vector<8x8xf32>
    %cst_21 = arith.constant dense<0.000000e+00> : vector<8xf32>
    %76 = vector.multi_reduction <add>, %75, %cst_21 [1] : vector<8x8xf32> to vector<8xf32>
    %77 = vector.shape_cast %76 : vector<8xf32> to vector<8x1xf32>
    %78 = tpu.reciprocal %77 {approx = true} : vector<8x1xf32> -> vector<8x1xf32>
    %79 = vector.broadcast %78 : vector<8x1xf32> to vector<8x8xf32>
    %80 = arith.mulf %75, %79 : vector<8x8xf32>
    %81 = arith.truncf %80 : vector<8x8xf32> to vector<8x8xbf16>
    %cst_22 = arith.constant dense<0.000000e+00> : vector<8x8xf32>
    %82 = tpu.matmul %81, %69, %cst_22 {dimension_numbers = #tpu.dot_dimension_numbers<[1], [0], [0], [1], [0, 0, 1, 1], [], []>} : vector<8x8xbf16>, vector<8x8xbf16>, vector<8x8xf32> -> vector<8x8xf32>
    %c0_23 = arith.constant 0 : index
    %c24 = arith.constant 24 : index
    %83 = vector.load %arg12[%c0_23, %c24] : memref<8x32xf32, #tpu.memory_space<vmem>>, vector<8x8xf32>
    tpu.vector_store %arg12[%c0_23, %c24], %82 {strides = array<i32>} : memref<8x32xf32, #tpu.memory_space<vmem>>, vector<8x8xf32>,
    %c0_24 = arith.constant 0 : index
    %c0_25 = arith.constant 0 : index
    %84 = vector.load %arg12[%c0_24, %c0_25] : memref<8x32xf32, #tpu.memory_space<vmem>>, vector<8x32xf32>
    %85 = arith.truncf %84 : vector<8x32xf32> to vector<8x32xbf16>
    %c0_26 = arith.constant 0 : index
    %c0_27 = arith.constant 0 : index
    %86 = vector.load %arg3[%c0_26, %c0_27] : memref<32x32xbf16, #tpu.memory_space<vmem>>, vector<32x32xbf16>
    %cst_28 = arith.constant dense<0.000000e+00> : vector<8x32xf32>
    %87 = tpu.matmul %85, %86, %cst_28 {dimension_numbers = #tpu.dot_dimension_numbers<[1], [0], [0], [1], [0, 0, 1, 1], [], []>} : vector<8x32xbf16>, vector<32x32xbf16>, vector<8x32xf32> -> vector<8x32xf32>
    %c0_29 = arith.constant 0 : index
    %c0_30 = arith.constant 0 : index
    %88 = vector.load %arg4[%c0_29, %c0_30] : memref<1x32xf32, #tpu.memory_space<vmem>>, vector<1x32xf32>
    %89 = vector.broadcast %88 : vector<1x32xf32> to vector<8x32xf32>
    %90 = arith.addf %87, %89 : vector<8x32xf32>
    %c0_31 = arith.constant 0 : index
    %c0_32 = arith.constant 0 : index
    %91 = vector.load %arg5[%c0_31, %c0_32] : memref<1x32xf32, #tpu.memory_space<vmem>>, vector<1x32xf32>
    %c0_33 = arith.constant 0 : index
    %c0_34 = arith.constant 0 : index
    %92 = vector.load %arg6[%c0_33, %c0_34] : memref<1x32xf32, #tpu.memory_space<vmem>>, vector<1x32xf32>
    %93 = arith.addf %90, %0 : vector<8x32xf32>
    %cst_35 = arith.constant dense<0.000000e+00> : vector<8xf32>
    %94 = vector.multi_reduction <add>, %93, %cst_35 [1] : vector<8x32xf32> to vector<8xf32>
    %95 = vector.shape_cast %94 : vector<8xf32> to vector<8x1xf32>
    %cst_36 = arith.constant 3.200000e+01 : f32
    %96 = vector.broadcast %cst_36 : f32 to vector<8x1xf32>
    %97 = arith.divf %95, %96 : vector<8x1xf32>
    %98 = vector.broadcast %97 : vector<8x1xf32> to vector<8x32xf32>
    %99 = arith.subf %93, %98 : vector<8x32xf32>
    %100 = arith.mulf %99, %99 : vector<8x32xf32>
    %cst_37 = arith.constant dense<0.000000e+00> : vector<8xf32>
    %101 = vector.multi_reduction <add>, %100, %cst_37 [1] : vector<8x32xf32> to vector<8xf32>
    %102 = vector.shape_cast %101 : vector<8xf32> to vector<8x1xf32>
    %cst_38 = arith.constant 3.200000e+01 : f32
    %103 = vector.broadcast %cst_38 : f32 to vector<8x1xf32>
    %104 = arith.divf %102, %103 : vector<8x1xf32>
    %105 = vector.broadcast %97 : vector<8x1xf32> to vector<8x32xf32>
    %106 = arith.subf %93, %105 : vector<8x32xf32>
    %cst_39 = arith.constant 9.99999974E-6 : f32
    %107 = vector.broadcast %cst_39 : f32 to vector<8x1xf32>
    %108 = arith.addf %104, %107 : vector<8x1xf32>
    %109 = math.rsqrt %108 : vector<8x1xf32>
    %110 = vector.broadcast %109 : vector<8x1xf32> to vector<8x32xf32>
    %111 = arith.mulf %106, %110 : vector<8x32xf32>
    %112 = vector.broadcast %91 : vector<1x32xf32> to vector<8x32xf32>
    %113 = arith.mulf %111, %112 : vector<8x32xf32>
    %114 = vector.broadcast %92 : vector<1x32xf32> to vector<8x32xf32>
    %115 = arith.addf %113, %114 : vector<8x32xf32>
    %116 = arith.truncf %115 : vector<8x32xf32> to vector<8x32xbf16>
    %cst_40 = arith.constant 0.000000e+00 : f32
    %117 = vector.broadcast %cst_40 : f32 to vector<8x32xf32>
    %c0_41 = arith.constant 0 : index
    %c0_42 = arith.constant 0 : index
    %118 = vector.load %arg7[%c0_41, %c0_42] : memref<32x64xbf16, #tpu.memory_space<vmem>>, vector<32x64xbf16>
    %cst_43 = arith.constant dense<0.000000e+00> : vector<8x64xf32>
    %119 = tpu.matmul %116, %118, %cst_43 {dimension_numbers = #tpu.dot_dimension_numbers<[1], [0], [0], [1], [0, 0, 1, 1], [], []>} : vector<8x32xbf16>, vector<32x64xbf16>, vector<8x64xf32> -> vector<8x64xf32>
    %c0_44 = arith.constant 0 : index
    %c0_45 = arith.constant 0 : index
    %120 = vector.load %arg8[%c0_44, %c0_45] : memref<1x64xf32, #tpu.memory_space<vmem>>, vector<1x64xf32>
    %121 = vector.broadcast %120 : vector<1x64xf32> to vector<8x64xf32>
    %122 = arith.addf %119, %121 : vector<8x64xf32>
    %cst_46 = arith.constant 0.000000e+00 : f32
    %123 = vector.broadcast %cst_46 : f32 to vector<8x64xf32>
    %124 = arith.maximumf %122, %123 : vector<8x64xf32>
    %125 = arith.truncf %124 : vector<8x64xf32> to vector<8x64xbf16>
    %c0_47 = arith.constant 0 : index
    %c0_48 = arith.constant 0 : index
    %126 = vector.load %arg9[%c0_47, %c0_48] : memref<64x32xbf16, #tpu.memory_space<vmem>>, vector<64x32xbf16>
    %cst_49 = arith.constant dense<0.000000e+00> : vector<8x32xf32>
    %127 = tpu.matmul %125, %126, %cst_49 {dimension_numbers = #tpu.dot_dimension_numbers<[1], [0], [0], [1], [0, 0, 1, 1], [], []>} : vector<8x64xbf16>, vector<64x32xbf16>, vector<8x32xf32> -> vector<8x32xf32>
    %128 = arith.addf %117, %127 : vector<8x32xf32>
    %c0_50 = arith.constant 0 : index
    %c0_51 = arith.constant 0 : index
    %129 = vector.load %arg10[%c0_50, %c0_51] : memref<1x32xf32, #tpu.memory_space<vmem>>, vector<1x32xf32>
    %130 = vector.broadcast %129 : vector<1x32xf32> to vector<8x32xf32>
    %131 = arith.addf %128, %130 : vector<8x32xf32>
    %132 = arith.addf %131, %115 : vector<8x32xf32>
    %cst_52 = arith.constant dense<0.000000e+00> : vector<8xf32>
    %133 = vector.multi_reduction <add>, %132, %cst_52 [1] : vector<8x32xf32> to vector<8xf32>
    %134 = vector.shape_cast %133 : vector<8xf32> to vector<8x1xf32>
    %cst_53 = arith.constant 3.200000e+01 : f32
    %135 = vector.broadcast %cst_53 : f32 to vector<8x1xf32>
    %136 = arith.divf %134, %135 : vector<8x1xf32>
    %137 = vector.broadcast %136 : vector<8x1xf32> to vector<8x32xf32>
    %138 = arith.subf %132, %137 : vector<8x32xf32>
    %139 = arith.mulf %138, %138 : vector<8x32xf32>
    %cst_54 = arith.constant dense<0.000000e+00> : vector<8xf32>
    %140 = vector.multi_reduction <add>, %139, %cst_54 [1] : vector<8x32xf32> to vector<8xf32>
    %141 = vector.shape_cast %140 : vector<8xf32> to vector<8x1xf32>
    %cst_55 = arith.constant 3.200000e+01 : f32
    %142 = vector.broadcast %cst_55 : f32 to vector<8x1xf32>
    %143 = arith.divf %141, %142 : vector<8x1xf32>
    %144 = vector.broadcast %136 : vector<8x1xf32> to vector<8x32xf32>
    %145 = arith.subf %132, %144 : vector<8x32xf32>
    %cst_56 = arith.constant 9.99999974E-6 : f32
    %146 = vector.broadcast %cst_56 : f32 to vector<8x1xf32>
    %147 = arith.addf %143, %146 : vector<8x1xf32>
    %148 = math.rsqrt %147 : vector<8x1xf32>
    %149 = vector.broadcast %148 : vector<8x1xf32> to vector<8x32xf32>
    %150 = arith.mulf %145, %149 : vector<8x32xf32>
    %151 = vector.broadcast %91 : vector<1x32xf32> to vector<8x32xf32>
    %152 = arith.mulf %150, %151 : vector<8x32xf32>
    %153 = vector.broadcast %92 : vector<1x32xf32> to vector<8x32xf32>
    %154 = arith.addf %152, %153 : vector<8x32xf32>
    %c0_57 = arith.constant 0 : index
    %c0_58 = arith.constant 0 : index
    %155 = vector.load %arg11[%c0_57, %c0_58] : memref<8x32xf32, #tpu.memory_space<vmem>>, vector<8x32xf32>
    tpu.vector_store %arg11[%c0_57, %c0_58], %154 {strides = array<i32>} : memref<8x32xf32, #tpu.memory_space<vmem>>, vector<8x32xf32>,
    return
  }
  func.func @transform_0(%arg0: i32) -> (i32, i32) {
    %c0_i32 = arith.constant 0 : i32
    %c0_i32_0 = arith.constant 0 : i32
    return %arg0, %c0_i32 : i32, i32
  }
  func.func @transform_1(%arg0: i32) -> (i32, i32) {
    %c0_i32 = arith.constant 0 : i32
    %c0_i32_0 = arith.constant 0 : i32
    %c0_i32_1 = arith.constant 0 : i32
    return %c0_i32, %c0_i32_0 : i32, i32
  }
  func.func @transform_2(%arg0: i32) -> (i32, i32) {
    %c0_i32 = arith.constant 0 : i32
    %c0_i32_0 = arith.constant 0 : i32
    %c0_i32_1 = arith.constant 0 : i32
    return %c0_i32, %c0_i32_0 : i32, i32
  }
  func.func @transform_3(%arg0: i32) -> (i32, i32) {
    %c0_i32 = arith.constant 0 : i32
    %c0_i32_0 = arith.constant 0 : i32
    %c0_i32_1 = arith.constant 0 : i32
    return %c0_i32, %c0_i32_0 : i32, i32
  }
  func.func @transform_4(%arg0: i32) -> (i32, i32) {
    %c0_i32 = arith.constant 0 : i32
    %c0_i32_0 = arith.constant 0 : i32
    %c0_i32_1 = arith.constant 0 : i32
    return %c0_i32, %c0_i32_0 : i32, i32
  }
  func.func @transform_5(%arg0: i32) -> (i32, i32) {
    %c0_i32 = arith.constant 0 : i32
    %c0_i32_0 = arith.constant 0 : i32
    %c0_i32_1 = arith.constant 0 : i32
    return %c0_i32, %c0_i32_0 : i32, i32
  }
  func.func @transform_6(%arg0: i32) -> (i32, i32) {
    %c0_i32 = arith.constant 0 : i32
    %c0_i32_0 = arith.constant 0 : i32
    %c0_i32_1 = arith.constant 0 : i32
    return %c0_i32, %c0_i32_0 : i32, i32
  }
  func.func @transform_7(%arg0: i32) -> (i32, i32) {
    %c0_i32 = arith.constant 0 : i32
    %c0_i32_0 = arith.constant 0 : i32
    %c0_i32_1 = arith.constant 0 : i32
    return %c0_i32, %c0_i32_0 : i32, i32
  }
  func.func @transform_8(%arg0: i32) -> (i32, i32) {
    %c0_i32 = arith.constant 0 : i32
    %c0_i32_0 = arith.constant 0 : i32
    %c0_i32_1 = arith.constant 0 : i32
    return %c0_i32, %c0_i32_0 : i32, i32
  }
  func.func @transform_9(%arg0: i32) -> (i32, i32) {
    %c0_i32 = arith.constant 0 : i32
    %c0_i32_0 = arith.constant 0 : i32
    %c0_i32_1 = arith.constant 0 : i32
    return %c0_i32, %c0_i32_0 : i32, i32
  }
  func.func @transform_10(%arg0: i32) -> (i32, i32) {
    %c0_i32 = arith.constant 0 : i32
    %c0_i32_0 = arith.constant 0 : i32
    return %arg0, %c0_i32 : i32, i32
  }
}

module attributes {stable_mosaic.version = 11 : i64} {
  func.func @encoder_layer_kernel(%arg0: i32, %arg1: memref<8x32xf32, #tpu.memory_space<vmem>>, %arg2: memref<32x96xbf16, #tpu.memory_space<vmem>>, %arg3: memref<32x32xbf16, #tpu.memory_space<vmem>>, %arg4: memref<1x32xf32, #tpu.memory_space<vmem>>, %arg5: memref<1x32xf32, #tpu.memory_space<vmem>>, %arg6: memref<1x32xf32, #tpu.memory_space<vmem>>, %arg7: memref<32x64xbf16, #tpu.memory_space<vmem>>, %arg8: memref<1x64xf32, #tpu.memory_space<vmem>>, %arg9: memref<64x32xbf16, #tpu.memory_space<vmem>>, %arg10: memref<1x32xf32, #tpu.memory_space<vmem>>, %arg11: memref<8x32xf32, #tpu.memory_space<vmem>>, %arg12: memref<8x32xf32, #tpu.memory_space<vmem>>) attributes {dimension_semantics = [#tpu.dimension_semantics<parallel>], iteration_bounds = array<i64: 2>, scalar_prefetch = 0 : i64, scratch_operands = 1 : i64, tpu.core_type = #tpu.core_type<tc>, window_params = [{transform_indices = @transform_0, window_bounds = array<i64: 8, 32>}, {pipeline_mode = #tpu.pipeline_mode<synchronous>, transform_indices = @transform_1, window_bounds = array<i64: 32, 96>}, {pipeline_mode = #tpu.pipeline_mode<synchronous>, transform_indices = @transform_2, window_bounds = array<i64: 32, 32>}, {pipeline_mode = #tpu.pipeline_mode<synchronous>, transform_indices = @transform_3, window_bounds = array<i64: 1, 32>}, {pipeline_mode = #tpu.pipeline_mode<synchronous>, transform_indices = @transform_4, window_bounds = array<i64: 1, 32>}, {pipeline_mode = #tpu.pipeline_mode<synchronous>, transform_indices = @transform_5, window_bounds = array<i64: 1, 32>}, {pipeline_mode = #tpu.pipeline_mode<synchronous>, transform_indices = @transform_6, window_bounds = array<i64: 32, 64>}, {pipeline_mode = #tpu.pipeline_mode<synchronous>, transform_indices = @transform_7, window_bounds = array<i64: 1, 64>}, {pipeline_mode = #tpu.pipeline_mode<synchronous>, transform_indices = @transform_8, window_bounds = array<i64: 64, 32>}, {pipeline_mode = #tpu.pipeline_mode<synchronous>, transform_indices = @transform_9, window_bounds = array<i64: 1, 32>}, {transform_indices = @transform_10, window_bounds = array<i64: 8, 32>}]} {
    %c0 = arith.constant 0 : index
    %c0_0 = arith.constant 0 : index
    %0 = vector.load %arg1[%c0, %c0_0] : memref<8x32xf32, #tpu.memory_space<vmem>>, vector<8x32xf32>
    %1 = arith.truncf %0 : vector<8x32xf32> to vector<8x32xbf16>
    %c0_1 = arith.constant 0 : index
    %c0_2 = arith.constant 0 : index
    %2 = vector.load %arg2[%c0_1, %c0_2] : memref<32x96xbf16, #tpu.memory_space<vmem>>, vector<32x96xbf16>
    %cst = arith.constant dense<0.000000e+00> : vector<8x96xf32>
    %3 = tpu.matmul %1, %2, %cst {dimension_numbers = #tpu.dot_dimension_numbers<[1], [0], [0], [1], [0, 0, 1, 1], [], []>} : vector<8x32xbf16>, vector<32x96xbf16>, vector<8x96xf32> -> vector<8x96xf32>
    %4 = vector.extract_strided_slice %3 {offsets = [0, 0], sizes = [8, 8], strides = [1, 1]} : vector<8x96xf32> to vector<8x8xf32>
    %5 = arith.truncf %4 : vector<8x8xf32> to vector<8x8xbf16>
    %6 = vector.extract_strided_slice %3 {offsets = [0, 32], sizes = [8, 8], strides = [1, 1]} : vector<8x96xf32> to vector<8x8xf32>
    %7 = arith.truncf %6 : vector<8x8xf32> to vector<8x8xbf16>
    %8 = vector.extract_strided_slice %3 {offsets = [0, 64], sizes = [8, 8], strides = [1, 1]} : vector<8x96xf32> to vector<8x8xf32>
    %9 = arith.truncf %8 : vector<8x8xf32> to vector<8x8xbf16>
    %cst_3 = arith.constant dense<0.000000e+00> : vector<8x8xf32>
    %10 = tpu.matmul %5, %7, %cst_3 {dimension_numbers = #tpu.dot_dimension_numbers<[1], [1], [0], [0], [0, 0, 1, 0], [], []>} : vector<8x8xbf16>, vector<8x8xbf16>, vector<8x8xf32> -> vector<8x8xf32>
    %cst_4 = arith.constant dense<0xFF800000> : vector<8xf32>
    %11 = vector.multi_reduction <maximumf>, %10, %cst_4 [1] : vector<8x8xf32> to vector<8xf32>
    %12 = vector.shape_cast %11 : vector<8xf32> to vector<8x1xf32>
    %13 = vector.broadcast %12 : vector<8x1xf32> to vector<8x8xf32>
    %14 = arith.subf %10, %13 : vector<8x8xf32>
    %15 = math.exp %14 : vector<8x8xf32>
    %cst_5 = arith.constant dense<0.000000e+00> : vector<8xf32>
    %16 = vector.multi_reduction <add>, %15, %cst_5 [1] : vector<8x8xf32> to vector<8xf32>
    %17 = vector.shape_cast %16 : vector<8xf32> to vector<8x1xf32>
    %18 = tpu.reciprocal %17 {approx = true} : vector<8x1xf32> -> vector<8x1xf32>
    %19 = vector.broadcast %18 : vector<8x1xf32> to vector<8x8xf32>
    %20 = arith.mulf %15, %19 : vector<8x8xf32>
    %21 = arith.truncf %20 : vector<8x8xf32> to vector<8x8xbf16>
    %cst_6 = arith.constant dense<0.000000e+00> : vector<8x8xf32>
    %22 = tpu.matmul %21, %9, %cst_6 {dimension_numbers = #tpu.dot_dimension_numbers<[1], [0], [0], [1], [0, 0, 1, 1], [], []>} : vector<8x8xbf16>, vector<8x8xbf16>, vector<8x8xf32> -> vector<8x8xf32>
    %c0_7 = arith.constant 0 : index
    %c0_8 = arith.constant 0 : index
    %23 = vector.load %arg12[%c0_7, %c0_8] : memref<8x32xf32, #tpu.memory_space<vmem>>, vector<8x8xf32>
    tpu.vector_store %arg12[%c0_7, %c0_8], %22 {strides = array<i32>} : memref<8x32xf32, #tpu.memory_space<vmem>>, vector<8x8xf32>,
    %24 = vector.extract_strided_slice %3 {offsets = [0, 8], sizes = [8, 8], strides = [1, 1]} : vector<8x96xf32> to vector<8x8xf32>
    %25 = arith.truncf %24 : vector<8x8xf32> to vector<8x8xbf16>
    %26 = vector.extract_strided_slice %3 {offsets = [0, 40], sizes = [8, 8], strides = [1, 1]} : vector<8x96xf32> to vector<8x8xf32>
    %27 = arith.truncf %26 : vector<8x8xf32> to vector<8x8xbf16>
    %28 = vector.extract_strided_slice %3 {offsets = [0, 72], sizes = [8, 8], strides = [1, 1]} : vector<8x96xf32> to vector<8x8xf32>
    %29 = arith.truncf %28 : vector<8x8xf32> to vector<8x8xbf16>
    %cst_9 = arith.constant dense<0.000000e+00> : vector<8x8xf32>
    %30 = tpu.matmul %25, %27, %cst_9 {dimension_numbers = #tpu.dot_dimension_numbers<[1], [1], [0], [0], [0, 0, 1, 0], [], []>} : vector<8x8xbf16>, vector<8x8xbf16>, vector<8x8xf32> -> vector<8x8xf32>
    %cst_10 = arith.constant dense<0xFF800000> : vector<8xf32>
    %31 = vector.multi_reduction <maximumf>, %30, %cst_10 [1] : vector<8x8xf32> to vector<8xf32>
    %32 = vector.shape_cast %31 : vector<8xf32> to vector<8x1xf32>
    %33 = vector.broadcast %32 : vector<8x1xf32> to vector<8x8xf32>
    %34 = arith.subf %30, %33 : vector<8x8xf32>
    %35 = math.exp %34 : vector<8x8xf32>
    %cst_11 = arith.constant dense<0.000000e+00> : vector<8xf32>
    %36 = vector.multi_reduction <add>, %35, %cst_11 [1] : vector<8x8xf32> to vector<8xf32>
    %37 = vector.shape_cast %36 : vector<8xf32> to vector<8x1xf32>
    %38 = tpu.reciprocal %37 {approx = true} : vector<8x1xf32> -> vector<8x1xf32>
    %39 = vector.broadcast %38 : vector<8x1xf32> to vector<8x8xf32>
    %40 = arith.mulf %35, %39 : vector<8x8xf32>
    %41 = arith.truncf %40 : vector<8x8xf32> to vector<8x8xbf16>
    %cst_12 = arith.constant dense<0.000000e+00> : vector<8x8xf32>
    %42 = tpu.matmul %41, %29, %cst_12 {dimension_numbers = #tpu.dot_dimension_numbers<[1], [0], [0], [1], [0, 0, 1, 1], [], []>} : vector<8x8xbf16>, vector<8x8xbf16>, vector<8x8xf32> -> vector<8x8xf32>
    %c0_13 = arith.constant 0 : index
    %c8 = arith.constant 8 : index
    %43 = vector.load %arg12[%c0_13, %c8] : memref<8x32xf32, #tpu.memory_space<vmem>>, vector<8x8xf32>
    tpu.vector_store %arg12[%c0_13, %c8], %42 {strides = array<i32>} : memref<8x32xf32, #tpu.memory_space<vmem>>, vector<8x8xf32>,
    %44 = vector.extract_strided_slice %3 {offsets = [0, 16], sizes = [8, 8], strides = [1, 1]} : vector<8x96xf32> to vector<8x8xf32>
    %45 = arith.truncf %44 : vector<8x8xf32> to vector<8x8xbf16>
    %46 = vector.extract_strided_slice %3 {offsets = [0, 48], sizes = [8, 8], strides = [1, 1]} : vector<8x96xf32> to vector<8x8xf32>
    %47 = arith.truncf %46 : vector<8x8xf32> to vector<8x8xbf16>
    %48 = vector.extract_strided_slice %3 {offsets = [0, 80], sizes = [8, 8], strides = [1, 1]} : vector<8x96xf32> to vector<8x8xf32>
    %49 = arith.truncf %48 : vector<8x8xf32> to vector<8x8xbf16>
    %cst_14 = arith.constant dense<0.000000e+00> : vector<8x8xf32>
    %50 = tpu.matmul %45, %47, %cst_14 {dimension_numbers = #tpu.dot_dimension_numbers<[1], [1], [0], [0], [0, 0, 1, 0], [], []>} : vector<8x8xbf16>, vector<8x8xbf16>, vector<8x8xf32> -> vector<8x8xf32>
    %cst_15 = arith.constant dense<0xFF800000> : vector<8xf32>
    %51 = vector.multi_reduction <maximumf>, %50, %cst_15 [1] : vector<8x8xf32> to vector<8xf32>
    %52 = vector.shape_cast %51 : vector<8xf32> to vector<8x1xf32>
    %53 = vector.broadcast %52 : vector<8x1xf32> to vector<8x8xf32>
    %54 = arith.subf %50, %53 : vector<8x8xf32>
    %55 = math.exp %54 : vector<8x8xf32>
    %cst_16 = arith.constant dense<0.000000e+00> : vector<8xf32>
    %56 = vector.multi_reduction <add>, %55, %cst_16 [1] : vector<8x8xf32> to vector<8xf32>
    %57 = vector.shape_cast %56 : vector<8xf32> to vector<8x1xf32>
    %58 = tpu.reciprocal %57 {approx = true} : vector<8x1xf32> -> vector<8x1xf32>
    %59 = vector.broadcast %58 : vector<8x1xf32> to vector<8x8xf32>
    %60 = arith.mulf %55, %59 : vector<8x8xf32>
    %61 = arith.truncf %60 : vector<8x8xf32> to vector<8x8xbf16>
    %cst_17 = arith.constant dense<0.000000e+00> : vector<8x8xf32>
    %62 = tpu.matmul %61, %49, %cst_17 {dimension_numbers = #tpu.dot_dimension_numbers<[1], [0], [0], [1], [0, 0, 1, 1], [], []>} : vector<8x8xbf16>, vector<8x8xbf16>, vector<8x8xf32> -> vector<8x8xf32>
    %c0_18 = arith.constant 0 : index
    %c16 = arith.constant 16 : index
    %63 = vector.load %arg12[%c0_18, %c16] : memref<8x32xf32, #tpu.memory_space<vmem>>, vector<8x8xf32>
    tpu.vector_store %arg12[%c0_18, %c16], %62 {strides = array<i32>} : memref<8x32xf32, #tpu.memory_space<vmem>>, vector<8x8xf32>,
    %64 = vector.extract_strided_slice %3 {offsets = [0, 24], sizes = [8, 8], strides = [1, 1]} : vector<8x96xf32> to vector<8x8xf32>
    %65 = arith.truncf %64 : vector<8x8xf32> to vector<8x8xbf16>
    %66 = vector.extract_strided_slice %3 {offsets = [0, 56], sizes = [8, 8], strides = [1, 1]} : vector<8x96xf32> to vector<8x8xf32>
    %67 = arith.truncf %66 : vector<8x8xf32> to vector<8x8xbf16>
    %68 = vector.extract_strided_slice %3 {offsets = [0, 88], sizes = [8, 8], strides = [1, 1]} : vector<8x96xf32> to vector<8x8xf32>
    %69 = arith.truncf %68 : vector<8x8xf32> to vector<8x8xbf16>
    %cst_19 = arith.constant dense<0.000000e+00> : vector<8x8xf32>
    %70 = tpu.matmul %65, %67, %cst_19 {dimension_numbers = #tpu.dot_dimension_numbers<[1], [1], [0], [0], [0, 0, 1, 0], [], []>} : vector<8x8xbf16>, vector<8x8xbf16>, vector<8x8xf32> -> vector<8x8xf32>
    %cst_20 = arith.constant dense<0xFF800000> : vector<8xf32>
    %71 = vector.multi_reduction <maximumf>, %70, %cst_20 [1] : vector<8x8xf32> to vector<8xf32>
    %72 = vector.shape_cast %71 : vector<8xf32> to vector<8x1xf32>
    %73 = vector.broadcast %72 : vector<8x1xf32> to vector<8x8xf32>
    %74 = arith.subf %70, %73 : vector<8x8xf32>
    %75 = math.exp %74 : vector<8x8xf32>
    %cst_21 = arith.constant dense<0.000000e+00> : vector<8xf32>
    %76 = vector.multi_reduction <add>, %75, %cst_21 [1] : vector<8x8xf32> to vector<8xf32>
    %77 = vector.shape_cast %76 : vector<8xf32> to vector<8x1xf32>
    %78 = tpu.reciprocal %77 {approx = true} : vector<8x1xf32> -> vector<8x1xf32>
    %79 = vector.broadcast %78 : vector<8x1xf32> to vector<8x8xf32>
    %80 = arith.mulf %75, %79 : vector<8x8xf32>
    %81 = arith.truncf %80 : vector<8x8xf32> to vector<8x8xbf16>
    %cst_22 = arith.constant dense<0.000000e+00> : vector<8x8xf32>
    %82 = tpu.matmul %81, %69, %cst_22 {dimension_numbers = #tpu.dot_dimension_numbers<[1], [0], [0], [1], [0, 0, 1, 1], [], []>} : vector<8x8xbf16>, vector<8x8xbf16>, vector<8x8xf32> -> vector<8x8xf32>
    %c0_23 = arith.constant 0 : index
    %c24 = arith.constant 24 : index
    %83 = vector.load %arg12[%c0_23, %c24] : memref<8x32xf32, #tpu.memory_space<vmem>>, vector<8x8xf32>
    tpu.vector_store %arg12[%c0_23, %c24], %82 {strides = array<i32>} : memref<8x32xf32, #tpu.memory_space<vmem>>, vector<8x8xf32>,
    %c0_24 = arith.constant 0 : index
    %c0_25 = arith.constant 0 : index
    %84 = vector.load %arg12[%c0_24, %c0_25] : memref<8x32xf32, #tpu.memory_space<vmem>>, vector<8x32xf32>
    %85 = arith.truncf %84 : vector<8x32xf32> to vector<8x32xbf16>
    %c0_26 = arith.constant 0 : index
    %c0_27 = arith.constant 0 : index
    %86 = vector.load %arg3[%c0_26, %c0_27] : memref<32x32xbf16, #tpu.memory_space<vmem>>, vector<32x32xbf16>
    %cst_28 = arith.constant dense<0.000000e+00> : vector<8x32xf32>
    %87 = tpu.matmul %85, %86, %cst_28 {dimension_numbers = #tpu.dot_dimension_numbers<[1], [0], [0], [1], [0, 0, 1, 1], [], []>} : vector<8x32xbf16>, vector<32x32xbf16>, vector<8x32xf32> -> vector<8x32xf32>
    %c0_29 = arith.constant 0 : index
    %c0_30 = arith.constant 0 : index
    %88 = vector.load %arg4[%c0_29, %c0_30] : memref<1x32xf32, #tpu.memory_space<vmem>>, vector<1x32xf32>
    %89 = vector.broadcast %88 : vector<1x32xf32> to vector<8x32xf32>
    %90 = arith.addf %87, %89 : vector<8x32xf32>
    %c0_31 = arith.constant 0 : index
    %c0_32 = arith.constant 0 : index
    %91 = vector.load %arg5[%c0_31, %c0_32] : memref<1x32xf32, #tpu.memory_space<vmem>>, vector<1x32xf32>
    %c0_33 = arith.constant 0 : index
    %c0_34 = arith.constant 0 : index
    %92 = vector.load %arg6[%c0_33, %c0_34] : memref<1x32xf32, #tpu.memory_space<vmem>>, vector<1x32xf32>
    %93 = arith.addf %90, %0 : vector<8x32xf32>
    %cst_35 = arith.constant dense<0.000000e+00> : vector<8xf32>
    %94 = vector.multi_reduction <add>, %93, %cst_35 [1] : vector<8x32xf32> to vector<8xf32>
    %95 = vector.shape_cast %94 : vector<8xf32> to vector<8x1xf32>
    %cst_36 = arith.constant 3.200000e+01 : f32
    %96 = vector.broadcast %cst_36 : f32 to vector<8x1xf32>
    %97 = arith.divf %95, %96 : vector<8x1xf32>
    %98 = vector.broadcast %97 : vector<8x1xf32> to vector<8x32xf32>
    %99 = arith.subf %93, %98 : vector<8x32xf32>
    %100 = arith.mulf %99, %99 : vector<8x32xf32>
    %cst_37 = arith.constant dense<0.000000e+00> : vector<8xf32>
    %101 = vector.multi_reduction <add>, %100, %cst_37 [1] : vector<8x32xf32> to vector<8xf32>
    %102 = vector.shape_cast %101 : vector<8xf32> to vector<8x1xf32>
    %cst_38 = arith.constant 3.200000e+01 : f32
    %103 = vector.broadcast %cst_38 : f32 to vector<8x1xf32>
    %104 = arith.divf %102, %103 : vector<8x1xf32>
    %105 = vector.broadcast %97 : vector<8x1xf32> to vector<8x32xf32>
    %106 = arith.subf %93, %105 : vector<8x32xf32>
    %cst_39 = arith.constant 9.99999974E-6 : f32
    %107 = vector.broadcast %cst_39 : f32 to vector<8x1xf32>
    %108 = arith.addf %104, %107 : vector<8x1xf32>
    %109 = math.rsqrt %108 : vector<8x1xf32>
    %110 = vector.broadcast %109 : vector<8x1xf32> to vector<8x32xf32>
    %111 = arith.mulf %106, %110 : vector<8x32xf32>
    %112 = vector.broadcast %91 : vector<1x32xf32> to vector<8x32xf32>
    %113 = arith.mulf %111, %112 : vector<8x32xf32>
    %114 = vector.broadcast %92 : vector<1x32xf32> to vector<8x32xf32>
    %115 = arith.addf %113, %114 : vector<8x32xf32>
    %116 = arith.truncf %115 : vector<8x32xf32> to vector<8x32xbf16>
    %cst_40 = arith.constant 0.000000e+00 : f32
    %117 = vector.broadcast %cst_40 : f32 to vector<8x32xf32>
    %c0_41 = arith.constant 0 : index
    %c0_42 = arith.constant 0 : index
    %118 = vector.load %arg7[%c0_41, %c0_42] : memref<32x64xbf16, #tpu.memory_space<vmem>>, vector<32x64xbf16>
    %cst_43 = arith.constant dense<0.000000e+00> : vector<8x64xf32>
    %119 = tpu.matmul %116, %118, %cst_43 {dimension_numbers = #tpu.dot_dimension_numbers<[1], [0], [0], [1], [0, 0, 1, 1], [], []>} : vector<8x32xbf16>, vector<32x64xbf16>, vector<8x64xf32> -> vector<8x64xf32>
    %c0_44 = arith.constant 0 : index
    %c0_45 = arith.constant 0 : index
    %120 = vector.load %arg8[%c0_44, %c0_45] : memref<1x64xf32, #tpu.memory_space<vmem>>, vector<1x64xf32>
    %121 = vector.broadcast %120 : vector<1x64xf32> to vector<8x64xf32>
    %122 = arith.addf %119, %121 : vector<8x64xf32>
    %cst_46 = arith.constant 0.000000e+00 : f32
    %123 = vector.broadcast %cst_46 : f32 to vector<8x64xf32>
    %124 = arith.maximumf %122, %123 : vector<8x64xf32>
    %125 = arith.truncf %124 : vector<8x64xf32> to vector<8x64xbf16>
    %c0_47 = arith.constant 0 : index
    %c0_48 = arith.constant 0 : index
    %126 = vector.load %arg9[%c0_47, %c0_48] : memref<64x32xbf16, #tpu.memory_space<vmem>>, vector<64x32xbf16>
    %cst_49 = arith.constant dense<0.000000e+00> : vector<8x32xf32>
    %127 = tpu.matmul %125, %126, %cst_49 {dimension_numbers = #tpu.dot_dimension_numbers<[1], [0], [0], [1], [0, 0, 1, 1], [], []>} : vector<8x64xbf16>, vector<64x32xbf16>, vector<8x32xf32> -> vector<8x32xf32>
    %128 = arith.addf %117, %127 : vector<8x32xf32>
    %c0_50 = arith.constant 0 : index
    %c0_51 = arith.constant 0 : index
    %129 = vector.load %arg10[%c0_50, %c0_51] : memref<1x32xf32, #tpu.memory_space<vmem>>, vector<1x32xf32>
    %130 = vector.broadcast %129 : vector<1x32xf32> to vector<8x32xf32>
    %131 = arith.addf %128, %130 : vector<8x32xf32>
    %132 = arith.addf %131, %115 : vector<8x32xf32>
    %cst_52 = arith.constant dense<0.000000e+00> : vector<8xf32>
    %133 = vector.multi_reduction <add>, %132, %cst_52 [1] : vector<8x32xf32> to vector<8xf32>
    %134 = vector.shape_cast %133 : vector<8xf32> to vector<8x1xf32>
    %cst_53 = arith.constant 3.200000e+01 : f32
    %135 = vector.broadcast %cst_53 : f32 to vector<8x1xf32>
    %136 = arith.divf %134, %135 : vector<8x1xf32>
    %137 = vector.broadcast %136 : vector<8x1xf32> to vector<8x32xf32>
    %138 = arith.subf %132, %137 : vector<8x32xf32>
    %139 = arith.mulf %138, %138 : vector<8x32xf32>
    %cst_54 = arith.constant dense<0.000000e+00> : vector<8xf32>
    %140 = vector.multi_reduction <add>, %139, %cst_54 [1] : vector<8x32xf32> to vector<8xf32>
    %141 = vector.shape_cast %140 : vector<8xf32> to vector<8x1xf32>
    %cst_55 = arith.constant 3.200000e+01 : f32
    %142 = vector.broadcast %cst_55 : f32 to vector<8x1xf32>
    %143 = arith.divf %141, %142 : vector<8x1xf32>
    %144 = vector.broadcast %136 : vector<8x1xf32> to vector<8x32xf32>
    %145 = arith.subf %132, %144 : vector<8x32xf32>
    %cst_56 = arith.constant 9.99999974E-6 : f32
    %146 = vector.broadcast %cst_56 : f32 to vector<8x1xf32>
    %147 = arith.addf %143, %146 : vector<8x1xf32>
    %148 = math.rsqrt %147 : vector<8x1xf32>
    %149 = vector.broadcast %148 : vector<8x1xf32> to vector<8x32xf32>
    %150 = arith.mulf %145, %149 : vector<8x32xf32>
    %151 = vector.broadcast %91 : vector<1x32xf32> to vector<8x32xf32>
    %152 = arith.mulf %150, %151 : vector<8x32xf32>
    %153 = vector.broadcast %92 : vector<1x32xf32> to vector<8x32xf32>
    %154 = arith.addf %152, %153 : vector<8x32xf32>
    %c0_57 = arith.constant 0 : index
    %c0_58 = arith.constant 0 : index
    %155 = vector.load %arg11[%c0_57, %c0_58] : memref<8x32xf32, #tpu.memory_space<vmem>>, vector<8x32xf32>
    tpu.vector_store %arg11[%c0_57, %c0_58], %154 {strides = array<i32>} : memref<8x32xf32, #tpu.memory_space<vmem>>, vector<8x32xf32>,
    return
  }
  func.func @transform_0(%arg0: i32) -> (i32, i32) {
    %c0_i32 = arith.constant 0 : i32
    %c0_i32_0 = arith.constant 0 : i32
    return %arg0, %c0_i32 : i32, i32
  }
  func.func @transform_1(%arg0: i32) -> (i32, i32) {
    %c0_i32 = arith.constant 0 : i32
    %c0_i32_0 = arith.constant 0 : i32
    %c0_i32_1 = arith.constant 0 : i32
    return %c0_i32, %c0_i32_0 : i32, i32
  }
  func.func @transform_2(%arg0: i32) -> (i32, i32) {
    %c0_i32 = arith.constant 0 : i32
    %c0_i32_0 = arith.constant 0 : i32
    %c0_i32_1 = arith.constant 0 : i32
    return %c0_i32, %c0_i32_0 : i32, i32
  }
  func.func @transform_3(%arg0: i32) -> (i32, i32) {
    %c0_i32 = arith.constant 0 : i32
    %c0_i32_0 = arith.constant 0 : i32
    %c0_i32_1 = arith.constant 0 : i32
    return %c0_i32, %c0_i32_0 : i32, i32
  }
  func.func @transform_4(%arg0: i32) -> (i32, i32) {
    %c0_i32 = arith.constant 0 : i32
    %c0_i32_0 = arith.constant 0 : i32
    %c0_i32_1 = arith.constant 0 : i32
    return %c0_i32, %c0_i32_0 : i32, i32
  }
  func.func @transform_5(%arg0: i32) -> (i32, i32) {
    %c0_i32 = arith.constant 0 : i32
    %c0_i32_0 = arith.constant 0 : i32
    %c0_i32_1 = arith.constant 0 : i32
    return %c0_i32, %c0_i32_0 : i32, i32
  }
  func.func @transform_6(%arg0: i32) -> (i32, i32) {
    %c0_i32 = arith.constant 0 : i32
    %c0_i32_0 = arith.constant 0 : i32
    %c0_i32_1 = arith.constant 0 : i32
    return %c0_i32, %c0_i32_0 : i32, i32
  }
  func.func @transform_7(%arg0: i32) -> (i32, i32) {
    %c0_i32 = arith.constant 0 : i32
    %c0_i32_0 = arith.constant 0 : i32
    %c0_i32_1 = arith.constant 0 : i32
    return %c0_i32, %c0_i32_0 : i32, i32
  }
  func.func @transform_8(%arg0: i32) -> (i32, i32) {
    %c0_i32 = arith.constant 0 : i32
    %c0_i32_0 = arith.constant 0 : i32
    %c0_i32_1 = arith.constant 0 : i32
    return %c0_i32, %c0_i32_0 : i32, i32
  }
  func.func @transform_9(%arg0: i32) -> (i32, i32) {
    %c0_i32 = arith.constant 0 : i32
    %c0_i32_0 = arith.constant 0 : i32
    %c0_i32_1 = arith.constant 0 : i32
    return %c0_i32, %c0_i32_0 : i32, i32
  }
  func.func @transform_10(%arg0: i32) -> (i32, i32) {
    %c0_i32 = arith.constant 0 : i32
    %c0_i32_0 = arith.constant 0 : i32
    return %arg0, %c0_i32 : i32, i32
  }
}

</mosaic_0001>

<llo_original>
// kernel: tpu_custom_call.1
$region0: #{tpu_custom_call.1}
  #allocation0 [shape = 'u32[]', space=smem, size = 0x4, offset = 0x4, fixed_abs, tag = 'smem constant byte address 0x4 - core index']
  #allocation1 [shape = 'u32[144,128]{1,0:T(1,128)}', space=vmem, size = 0x12000, scoped, tag = 'internal scratch']
  #allocation2 [shape = 'f32[8,32]{1,0:T(8,128)}', space=vmem, size = 0x1000, scoped, tag = 'scratch operand']
  %s0 = inlined_call_operand.vmem [shape: f32[16,32], index: 0, kind: input, shape index: {}]
  %s1 = inlined_call_operand.vmem [shape: bf16[32,96], index: 1, kind: input, shape index: {}]
  %s2 = inlined_call_operand.vmem [shape: bf16[32,32], index: 2, kind: input, shape index: {}]
  %s3 = inlined_call_operand.vmem [shape: f32[1,32], index: 3, kind: input, shape index: {}]
  %s4 = inlined_call_operand.vmem [shape: f32[1,32], index: 4, kind: input, shape index: {}]
  %s5 = inlined_call_operand.vmem [shape: f32[1,32], index: 5, kind: input, shape index: {}]
  %s6 = inlined_call_operand.hbm [shape: bf16[32,64], index: 6, kind: input, shape index: {}]
  %s7 = inlined_call_operand.vmem [shape: f32[1,64], index: 7, kind: input, shape index: {}]
  %s8 = inlined_call_operand.vmem [shape: bf16[64,32], index: 8, kind: input, shape index: {}]
  %s9 = inlined_call_operand.vmem [shape: f32[1,32], index: 9, kind: input, shape index: {}]
  %s10 = inlined_call_operand.hbm [shape: f32[16,32], index: 10, kind: output, shape index: {}]
  %s11 = sld [smem:[#allocation0]]
  $region77: #{tpu_custom_call.1} parent=0
    _
  %s13 = ssub.s32 1, %s11
  %s14 = scalar_select 0, %s13, %s11
  $region1: #{tpu_custom_call.1} parent=0
    #allocation3 [shape = 'u8[8192]{0}', space=vmem, size = 0x2000, scoped, tag = 'input window, operand 6, single buffered']
    #allocation4 [shape = 's32[2]{0}', space=sflag, size = 0x8, scoped, tag = 'scoped memory for tpu_custom_call.1']
    #allocation5 [shape = 's32[2]{0}', space=sflag, size = 0x8, scoped, tag = 'scoped memory for tpu_custom_call.1']
    #allocation6 [shape = 'u8[8192]{0}', space=vmem, size = 0x2000, scoped, tag = 'output window, operand 0']
    %15 = vsyncpa [#allocation4], 0
    %16 = vsyncpa [#allocation5], 0
    %s17 = scalar_lea.sflag [#allocation5], 1
    %18 = vsyncpa %s17, 0
    loop: start=0, step=1, limit=4
    $region2: #{tpu_custom_call.1} parent=1 // loop_pre_header
      _
    $region3: #{tpu_custom_call.1} parent=1 // loop_header
      %s20 = sphi 0, %s24
      %p21 = scmp.ge.s32.totalorder %s20, 4
      %s30 = sphi 0, %s32
      %s33 = sphi 0, %s30
      %s34 = sphi 0, %s33
      %s50 = sphi 0, %s34
      %s54 = sphi 0, %s54
      %s56 = sphi 0, %s54
      %s57 = sphi 0, %s56
      %s71 = sphi 0, %s57
      %s75 = sphi 0, %s75
      %s77 = sphi 0, %s75
      %s78 = sphi 0, %s77
      %s92 = sphi 0, %s78
      %s96 = sphi 0, %s96
      %s98 = sphi 0, %s96
      %s99 = sphi 0, %s98
      %s113 = sphi 0, %s99
      %s117 = sphi 0, %s117
      %s119 = sphi 0, %s117
      %s120 = sphi 0, %s119
      %s134 = sphi 0, %s120
      %s138 = sphi 0, %s138
      %s140 = sphi 0, %s138
      %s141 = sphi 0, %s140
      %s155 = sphi 0, %s141
      %s159 = sphi 0, %s159
      %s161 = sphi 0, %s159
      %s162 = sphi 0, %s161
      %s176 = sphi 0, %s162
      %s180 = sphi 0, %s180
      %s182 = sphi 0, %s180
      %s183 = sphi 0, %s182
      %s197 = sphi 0, %s183
      %s201 = sphi 0, %s201
      %s203 = sphi 0, %s201
      %s204 = sphi 0, %s203
      %s218 = sphi 0, %s204
      %s222 = sphi 0, %s222
      %s224 = sphi 0, %s222
      %s225 = sphi 0, %s224
      %s239 = sphi 0, %s225
      %s245 = sphi 0, %s247
      %s248 = sphi 0, %s245
      %s249 = sphi 0, %s248
      %s265 = sphi 0, %s249
    $region4: #{tpu_custom_call.1} parent=1 // loop_header_branch
      %23 = sbr.rel (%p21) target = $region8
    $region5: #{tpu_custom_call.1} parent=1 // loop_body
      %s25 = ssub.s32 %s20, 1
      %s26 = ssub.s32 %s20, 2
      %s27 = sadd.s32 %s20, 1
      %s28 = ssub.s32 %s20, %s27
      %p29 = scmp.eq.s32.totalorder %s28, 0
      %s31 = sadd.s32 %s30, 1
      %s32 = scalar_select %p29, %s30, %s31
      %p35 = pneg %p29
      %p36 = scmp.eq.s32.totalorder %s20, 1
      %p37 = por %p35, %p36
      %p38 = scmp.ne.s32.totalorder %s30, %s33
      %p39 = scmp.eq.s32.totalorder %s20, 0
      %p40 = por %p38, %p39
      %p41 = scmp.ne.s32.totalorder %s30, %s33
      %p42 = scmp.eq.s32.totalorder %s25, 1
      %p43 = por %p41, %p42
      %p44 = scmp.ne.s32.totalorder %s33, %s34
      %p45 = scmp.eq.s32.totalorder %s25, 0
      %p46 = por %p44, %p45
      %p47 = scmp.ne.s32.totalorder %s33, %s34
      %p48 = scmp.eq.s32.totalorder %s26, 1
      %p49 = por %p47, %p48
      %p51 = scmp.ne.s32.totalorder %s34, %s50
      %p52 = scmp.eq.s32.totalorder %s26, 0
      %p53 = por %p51, %p52
      %s55 = sadd.s32 %s54, 1
      %p58 = scmp.eq.s32.totalorder %s20, 1
      %p59 = scmp.ne.s32.totalorder %s54, %s56
      %p60 = scmp.eq.s32.totalorder %s20, 0
      %p61 = por %p59, %p60
      %p62 = scmp.ne.s32.totalorder %s54, %s56
      %p63 = scmp.eq.s32.totalorder %s25, 1
      %p64 = por %p62, %p63
      %p65 = scmp.ne.s32.totalorder %s56, %s57
      %p66 = scmp.eq.s32.totalorder %s25, 0
      %p67 = por %p65, %p66
      %p68 = scmp.ne.s32.totalorder %s56, %s57
      %p69 = scmp.eq.s32.totalorder %s26, 1
      %p70 = por %p68, %p69
      %p72 = scmp.ne.s32.totalorder %s57, %s71
      %p73 = scmp.eq.s32.totalorder %s26, 0
      %p74 = por %p72, %p73
      %s76 = sadd.s32 %s75, 1
      %p79 = scmp.eq.s32.totalorder %s20, 1
      %p80 = scmp.ne.s32.totalorder %s75, %s77
      %p81 = scmp.eq.s32.totalorder %s20, 0
      %p82 = por %p80, %p81
      %p83 = scmp.ne.s32.totalorder %s75, %s77
      %p84 = scmp.eq.s32.totalorder %s25, 1
      %p85 = por %p83, %p84
      %p86 = scmp.ne.s32.totalorder %s77, %s78
      %p87 = scmp.eq.s32.totalorder %s25, 0
      %p88 = por %p86, %p87
      %p89 = scmp.ne.s32.totalorder %s77, %s78
      %p90 = scmp.eq.s32.totalorder %s26, 1
      %p91 = por %p89, %p90
      %p93 = scmp.ne.s32.totalorder %s78, %s92
      %p94 = scmp.eq.s32.totalorder %s26, 0
      %p95 = por %p93, %p94
      %s97 = sadd.s32 %s96, 1
      %p100 = scmp.eq.s32.totalorder %s20, 1
      %p101 = scmp.ne.s32.totalorder %s96, %s98
      %p102 = scmp.eq.s32.totalorder %s20, 0
      %p103 = por %p101, %p102
      %p104 = scmp.ne.s32.totalorder %s96, %s98
      %p105 = scmp.eq.s32.totalorder %s25, 1
      %p106 = por %p104, %p105
      %p107 = scmp.ne.s32.totalorder %s98, %s99
      %p108 = scmp.eq.s32.totalorder %s25, 0
      %p109 = por %p107, %p108
      %p110 = scmp.ne.s32.totalorder %s98, %s99
      %p111 = scmp.eq.s32.totalorder %s26, 1
      %p112 = por %p110, %p111
      %p114 = scmp.ne.s32.totalorder %s99, %s113
      %p115 = scmp.eq.s32.totalorder %s26, 0
      %p116 = por %p114, %p115
      %s118 = sadd.s32 %s117, 1
      %p121 = scmp.eq.s32.totalorder %s20, 1
      %p122 = scmp.ne.s32.totalorder %s117, %s119
      %p123 = scmp.eq.s32.totalorder %s20, 0
      %p124 = por %p122, %p123
      %p125 = scmp.ne.s32.totalorder %s117, %s119
      %p126 = scmp.eq.s32.totalorder %s25, 1
      %p127 = por %p125, %p126
      %p128 = scmp.ne.s32.totalorder %s119, %s120
      %p129 = scmp.eq.s32.totalorder %s25, 0
      %p130 = por %p128, %p129
      %p131 = scmp.ne.s32.totalorder %s119, %s120
      %p132 = scmp.eq.s32.totalorder %s26, 1
      %p133 = por %p131, %p132
      %p135 = scmp.ne.s32.totalorder %s120, %s134
      %p136 = scmp.eq.s32.totalorder %s26, 0
      %p137 = por %p135, %p136
      %s139 = sadd.s32 %s138, 1
      %p142 = scmp.eq.s32.totalorder %s20, 1
      %p143 = scmp.ne.s32.totalorder %s138, %s140
      %p144 = scmp.eq.s32.totalorder %s20, 0
      %p145 = por %p143, %p144
      %p146 = scmp.ne.s32.totalorder %s138, %s140
      %p147 = scmp.eq.s32.totalorder %s25, 1
      %p148 = por %p146, %p147
      %p149 = scmp.ne.s32.totalorder %s140, %s141
      %p150 = scmp.eq.s32.totalorder %s25, 0
      %p151 = por %p149, %p150
      %p152 = scmp.ne.s32.totalorder %s140, %s141
      %p153 = scmp.eq.s32.totalorder %s26, 1
      %p154 = por %p152, %p153
      %p156 = scmp.ne.s32.totalorder %s141, %s155
      %p157 = scmp.eq.s32.totalorder %s26, 0
      %p158 = por %p156, %p157
      %s160 = sadd.s32 %s159, 1
      %p163 = scmp.eq.s32.totalorder %s20, 1
      %p164 = scmp.ne.s32.totalorder %s159, %s161
      %p165 = scmp.eq.s32.totalorder %s20, 0
      %p166 = por %p164, %p165
      %p167 = scmp.ne.s32.totalorder %s159, %s161
      %p168 = scmp.eq.s32.totalorder %s25, 1
      %p169 = por %p167, %p168
      %p170 = scmp.ne.s32.totalorder %s161, %s162
      %p171 = scmp.eq.s32.totalorder %s25, 0
      %p172 = por %p170, %p171
      %p173 = scmp.ne.s32.totalorder %s161, %s162
      %p174 = scmp.eq.s32.totalorder %s26, 1
      %p175 = por %p173, %p174
      %p177 = scmp.ne.s32.totalorder %s162, %s176
      %p178 = scmp.eq.s32.totalorder %s26, 0
      %p179 = por %p177, %p178
      %s181 = sadd.s32 %s180, 1
      %p184 = scmp.eq.s32.totalorder %s20, 1
      %p185 = scmp.ne.s32.totalorder %s180, %s182
      %p186 = scmp.eq.s32.totalorder %s20, 0
      %p187 = por %p185, %p186
      %p188 = scmp.ne.s32.totalorder %s180, %s182
      %p189 = scmp.eq.s32.totalorder %s25, 1
      %p190 = por %p188, %p189
      %p191 = scmp.ne.s32.totalorder %s182, %s183
      %p192 = scmp.eq.s32.totalorder %s25, 0
      %p193 = por %p191, %p192
      %p194 = scmp.ne.s32.totalorder %s182, %s183
      %p195 = scmp.eq.s32.totalorder %s26, 1
      %p196 = por %p194, %p195
      %p198 = scmp.ne.s32.totalorder %s183, %s197
      %p199 = scmp.eq.s32.totalorder %s26, 0
      %p200 = por %p198, %p199
      %s202 = sadd.s32 %s201, 1
      %p205 = scmp.eq.s32.totalorder %s20, 1
      %p206 = scmp.ne.s32.totalorder %s201, %s203
      %p207 = scmp.eq.s32.totalorder %s20, 0
      %p208 = por %p206, %p207
      %p209 = scmp.ne.s32.totalorder %s201, %s203
      %p210 = scmp.eq.s32.totalorder %s25, 1
      %p211 = por %p209, %p210
      %p212 = scmp.ne.s32.totalorder %s203, %s204
      %p213 = scmp.eq.s32.totalorder %s25, 0
      %p214 = por %p212, %p213
      %p215 = scmp.ne.s32.totalorder %s203, %s204
      %p216 = scmp.eq.s32.totalorder %s26, 1
      %p217 = por %p215, %p216
      %p219 = scmp.ne.s32.totalorder %s204, %s218
      %p220 = scmp.eq.s32.totalorder %s26, 0
      %p221 = por %p219, %p220
      %s223 = sadd.s32 %s222, 1
      %p226 = scmp.eq.s32.totalorder %s20, 1
      %p227 = scmp.ne.s32.totalorder %s222, %s224
      %p228 = scmp.eq.s32.totalorder %s20, 0
      %p229 = por %p227, %p228
      %p230 = scmp.ne.s32.totalorder %s222, %s224
      %p231 = scmp.eq.s32.totalorder %s25, 1
      %p232 = por %p230, %p231
      %p233 = scmp.ne.s32.totalorder %s224, %s225
      %p234 = scmp.eq.s32.totalorder %s25, 0
      %p235 = por %p233, %p234
      %p236 = scmp.ne.s32.totalorder %s224, %s225
      %p237 = scmp.eq.s32.totalorder %s26, 1
      %p238 = por %p236, %p237
      %p240 = scmp.ne.s32.totalorder %s225, %s239
      %p241 = scmp.eq.s32.totalorder %s26, 0
      %p242 = por %p240, %p241
      %s243 = ssub.s32 %s20, %s27
      %p244 = scmp.eq.s32.totalorder %s243, 0
      %s246 = sadd.s32 %s245, 1
      %s247 = scalar_select %p244, %s245, %s246
      %p250 = pneg %p244
      %p251 = scmp.eq.s32.totalorder %s20, 1
      %p252 = por %p250, %p251
      %p253 = scmp.ne.s32.totalorder %s245, %s248
      %p254 = scmp.eq.s32.totalorder %s20, 0
      %p255 = por %p253, %p254
      %p256 = scmp.ne.s32.totalorder %s245, %s248
      %p257 = scmp.eq.s32.totalorder %s25, 1
      %p258 = por %p256, %p257
      %p259 = scmp.ne.s32.totalorder %s248, %s249
      %p260 = scmp.eq.s32.totalorder %s25, 0
      %p261 = por %p259, %p260
      %p262 = scmp.ne.s32.totalorder %s248, %s249
      %p263 = scmp.eq.s32.totalorder %s26, 1
      %p264 = por %p262, %p263
      %p266 = scmp.ne.s32.totalorder %s249, %s265
      %p267 = scmp.eq.s32.totalorder %s26, 0
      %p268 = por %p266, %p267
      %p269 = scmp.le.s32.totalorder 1, %s20
      %p270 = scmp.lt.s32.totalorder %s20, 3
      %p271 = pnand %p269, %p270
      %p272 = pneg %p271
      // Predicated region
      $region9: #{tpu_custom_call.1} parent=5 // pred_check
        _
      $region10: #{tpu_custom_call.1} parent=5 // pred_check_branch
        %274 = sbr.rel (%p271) target = $region12
      $region11: #{tpu_custom_call.1} parent=5 // pred_region
        %s275 = ssub.s32 %s20, 1
        // Predicated region
        $region13: #{tpu_custom_call.1} parent=11 // pred_check
          %p276 = pneg %p67
        $region14: #{tpu_custom_call.1} parent=11 // pred_check_branch
          %278 = sbr.rel (%p276) target = $region16
        $region15: #{tpu_custom_call.1} parent=11 // pred_region
          _
        $region16: #{tpu_custom_call.1} parent=11 // pred_fallthru
          _
        // Predicated region
        $region17: #{tpu_custom_call.1} parent=11 // pred_check
          %p279 = pneg %p88
        $region18: #{tpu_custom_call.1} parent=11 // pred_check_branch
          %281 = sbr.rel (%p279) target = $region20
        $region19: #{tpu_custom_call.1} parent=11 // pred_region
          _
        $region20: #{tpu_custom_call.1} parent=11 // pred_fallthru
          _
        // Predicated region
        $region21: #{tpu_custom_call.1} parent=11 // pred_check
          %p282 = pneg %p109
        $region22: #{tpu_custom_call.1} parent=11 // pred_check_branch
          %284 = sbr.rel (%p282) target = $region24
        $region23: #{tpu_custom_call.1} parent=11 // pred_region
          _
        $region24: #{tpu_custom_call.1} parent=11 // pred_fallthru
          _
        // Predicated region
        $region25: #{tpu_custom_call.1} parent=11 // pred_check
          %p285 = pneg %p130
        $region26: #{tpu_custom_call.1} parent=11 // pred_check_branch
          %287 = sbr.rel (%p285) target = $region28
        $region27: #{tpu_custom_call.1} parent=11 // pred_region
          _
        $region28: #{tpu_custom_call.1} parent=11 // pred_fallthru
          _
        // Predicated region
        $region29: #{tpu_custom_call.1} parent=11 // pred_check
          %p288 = pneg %p151
        $region30: #{tpu_custom_call.1} parent=11 // pred_check_branch
          %290 = sbr.rel (%p288) target = $region32
        $region31: #{tpu_custom_call.1} parent=11 // pred_region
          _
        $region32: #{tpu_custom_call.1} parent=11 // pred_fallthru
          _
        // Predicated region
        $region33: #{tpu_custom_call.1} parent=11 // pred_check
          %p291 = pneg %p172
        $region34: #{tpu_custom_call.1} parent=11 // pred_check_branch
          %293 = sbr.rel (%p291) target = $region36
        $region35: #{tpu_custom_call.1} parent=11 // pred_region
          %s295 = ssub.s32 256, 256
          %296 = vsyncadd [#allocation4], %s295
          %s297 = sshll.u32 [#allocation3], 4
          %s298 = int_to_ptr.vmem [resolvable:$true] %s297
          %303 = dma.hbm_to_vmem [thread:$0]  %s6, 256, %s298, [#allocation4], 64, 64, 4
        $region36: #{tpu_custom_call.1} parent=11 // pred_fallthru
          _
        // Predicated region
        $region37: #{tpu_custom_call.1} parent=11 // pred_check
          %p304 = pneg %p193
        $region38: #{tpu_custom_call.1} parent=11 // pred_check_branch
          %306 = sbr.rel (%p304) target = $region40
        $region39: #{tpu_custom_call.1} parent=11 // pred_region
          _
        $region40: #{tpu_custom_call.1} parent=11 // pred_fallthru
          _
        // Predicated region
        $region41: #{tpu_custom_call.1} parent=11 // pred_check
          %p307 = pneg %p214
        $region42: #{tpu_custom_call.1} parent=11 // pred_check_branch
          %309 = sbr.rel (%p307) target = $region44
        $region43: #{tpu_custom_call.1} parent=11 // pred_region
          _
        $region44: #{tpu_custom_call.1} parent=11 // pred_fallthru
          _
        // Predicated region
        $region45: #{tpu_custom_call.1} parent=11 // pred_check
          %p310 = pneg %p235
        $region46: #{tpu_custom_call.1} parent=11 // pred_check_branch
          %312 = sbr.rel (%p310) target = $region48
        $region47: #{tpu_custom_call.1} parent=11 // pred_region
          _
        $region48: #{tpu_custom_call.1} parent=11 // pred_fallthru
          _
      $region12: #{tpu_custom_call.1} parent=5 // pred_fallthru
        _
      %p313 = scmp.lt.s32.totalorder %s20, 2
      // Predicated region
      $region49: #{tpu_custom_call.1} parent=5 // pred_check
        %p314 = pneg %p313
      $region50: #{tpu_custom_call.1} parent=5 // pred_check_branch
        %316 = sbr.rel (%p314) target = $region52
      $region51: #{tpu_custom_call.1} parent=5 // pred_region
        // Predicated region
        $region53: #{tpu_custom_call.1} parent=51 // pred_check
          %p317 = pneg %p40
        $region54: #{tpu_custom_call.1} parent=51 // pred_check_branch
          %319 = sbr.rel (%p317) target = $region56
        $region55: #{tpu_custom_call.1} parent=51 // pred_region
          %p320 = scmp.lt.s32.totalorder %s20, 1
          %s321 = scalar_select %p320, %s20, 1
          %s322 = smul.addr %s321, 8
          %s323 = scalar_lea.vmem %s0, %s322
        $region56: #{tpu_custom_call.1} parent=51 // pred_fallthru
          _
      $region52: #{tpu_custom_call.1} parent=5 // pred_fallthru
        _
      %p324 = scmp.le.s32.totalorder 1, %s20
      %p325 = scmp.lt.s32.totalorder %s20, 3
      %p326 = pnand %p324, %p325
      %p327 = pneg %p326
      // Predicated region
      $region57: #{tpu_custom_call.1} parent=5 // pred_check
        _
      $region58: #{tpu_custom_call.1} parent=5 // pred_check_branch
        %329 = sbr.rel (%p326) target = $region60
      $region59: #{tpu_custom_call.1} parent=5 // pred_region
        %s330 = ssub.s32 %s20, 1
        // Predicated region
        $region61: #{tpu_custom_call.1} parent=59 // pred_check
          %p331 = pneg %p172
        $region62: #{tpu_custom_call.1} parent=59 // pred_check_branch
          %333 = sbr.rel (%p331) target = $region64
        $region63: #{tpu_custom_call.1} parent=59 // pred_region
          %334 = dma.done [#allocation4], 256
        $region64: #{tpu_custom_call.1} parent=59 // pred_fallthru
          _
        %p335 = scmp.lt.s32.totalorder %s25, 1
        %s336 = scalar_select %p335, %s25, 1
        %s337 = smul.addr %s336, 8
        %s338 = scalar_lea.vmem %s0, %s337
        %p339 = pneg %p46
        %p340 = pneg %p43
        %p341 = pneg %p67
        %p342 = pneg %p64
        %p343 = pneg %p88
        %p344 = pneg %p85
        %p345 = pneg %p109
        %p346 = pneg %p106
        %p347 = pneg %p130
        %p348 = pneg %p127
        %p349 = pneg %p151
        %p350 = pneg %p148
        %p351 = pneg %p172
        %p352 = pneg %p169
        %p353 = pneg %p193
        %p354 = pneg %p190
        %p355 = pneg %p214
        %p356 = pneg %p211
        %p357 = pneg %p235
        %p358 = pneg %p232
        %p359 = pneg %p261
        %p360 = pneg %p258
        %s361 = sand.u32 %s248, 1
        %s362 = scalar_lea.sflag [#allocation5], %s361
        %s363 = sand.u32 %s248, 1
        %s364 = smul.addr %s363, 8
        %s365 = scalar_lea.vmem [#allocation6], %s364
        %p366 = scmp.lt.s32.totalorder %s25, 1
        %s367 = scalar_select %p366, %s25, 1
        %s368 = smul.addr %s367, 8
        %s369 = scalar_lea.vmem %s0, %s368
        %v371 = vld [vmem:[%s369] sm:$0xff]
        %v372 = vpack.c.bf16 %v371, %v371
        %v373 = vld [vmem:[%s1] sm:$0xf]
        %v374 = vld [vmem:[%s1 + $0x4] sm:$0xf]
        %v375 = vld [vmem:[%s1 + $0x8] sm:$0xf]
        %v376 = vld [vmem:[%s1 + $0xc] sm:$0xf]
        %v381 = vunpack.c.l.b16 %v373
        %v382 = vunpack.c.l.b16 %v374
        %v383 = vunpack.c.l.b16 %v375
        %v384 = vunpack.c.l.b16 %v376
        %v385 = vpack.c.b16 %v382, %v381
        %v386 = vpack.c.b16 %v384, %v383
        %vm389 = vcmask 261120
        %v391 = vsel %vm389, %v372, 0
        %393 = vmatprep.subr.bf16.mxu0 0
        %394 = vmatpush1.bf16.msra.mxu0 %v385
        %395 = vmatprep.subr.bf16.mxu0 0
        %396 = vmatpush1.bf16.msra.mxu0 %v386
        %397 = vmatprep.subr.bf16.mxu0 0
        %398 = vmatpush1.bf16.msra.mxu0 0
        %399 = vmatprep.subr.bf16.mxu0 0
        %400 = vmatpush1.bf16.msra.mxu0 0
        %401 = vmatprep.subr.bf16.mxu0 0
        %402 = vmatpush1.bf16.msra.mxu0 0
        %403 = vmatprep.subr.bf16.mxu0 0
        %404 = vmatpush1.bf16.msra.mxu0 0
        %405 = vmatprep.subr.bf16.mxu0 0
        %406 = vmatpush1.bf16.msra.mxu0 0
        %407 = vmatprep.subr.bf16.mxu0 0
        %408 = vmatpush1.bf16.msra.mxu0 0
        %409 = vmatprep.subr.bf16.mxu0 0
        %410 = vmatpush1.bf16.msra.mxu0 0
        %411 = vmatprep.subr.bf16.mxu0 0
        %412 = vmatpush1.bf16.msra.mxu0 0
        %413 = vmatprep.subr.bf16.mxu0 0
        %414 = vmatpush1.bf16.msra.mxu0 0
        %415 = vmatprep.subr.bf16.mxu0 0
        %416 = vmatpush1.bf16.msra.mxu0 0
        %417 = vmatprep.subr.bf16.mxu0 0
        %418 = vmatpush1.bf16.msra.mxu0 0
        %419 = vmatprep.subr.bf16.mxu0 0
        %420 = vmatpush1.bf16.msra.mxu0 0
        %421 = vmatprep.subr.bf16.mxu0 0
        %422 = vmatpush1.bf16.msra.mxu0 0
        %423 = vmatprep.subr.bf16.mxu0 0
        %424 = vmatpush1.bf16.msra.mxu0 0
        %425 = vmatprep.mubr.bf16.mxu0 0
        %426 = vmatmul.mubr.bf16.gmra.mrb[0].mxu0 %v391
        %v427 = vpop.f32.mrb[0].mxu0
        %v428 = vadd.f32 0.0, %v427
        %v429 = vpop.f32.mrb[0].mxu0
        %v430 = vpop.f32.mrb[0].mxu0
        %v431 = vpop.f32.mrb[0].mxu0
        %432 = vdwg.mxu0
        %v433 = vpack.c.bf16 %v428, %v428
        %435 = vrot.lane.b32.xlu0 %v433, 96
        %v436 = vpop.permute.xlu0 %435
        %vm437 = vcmask 64512
        %v439 = vsel %vm437, %v433, 0
        %v442 = vsel %vm437, %v436, 0
        %444 = vmatprep.subr.bf16.mxu0 0
        %445 = vmatpush1.bf16.xpose.msra.mxu0 %v442
        %446 = vmatprep.subr.bf16.mxu0 0
        %447 = vmatpush1.bf16.xpose.msra.mxu0 0
        %448 = vmatprep.subr.bf16.mxu0 0
        %449 = vmatpush1.bf16.xpose.msra.mxu0 0
        %450 = vmatprep.subr.bf16.mxu0 0
        %451 = vmatpush1.bf16.xpose.msra.mxu0 0
        %452 = vmatprep.subr.bf16.mxu0 0
        %453 = vmatpush1.bf16.xpose.msra.mxu0 0
        %454 = vmatprep.subr.bf16.mxu0 0
        %455 = vmatpush1.bf16.xpose.msra.mxu0 0
        %456 = vmatprep.subr.bf16.mxu0 0
        %457 = vmatpush1.bf16.xpose.msra.mxu0 0
        %458 = vmatprep.subr.bf16.mxu0 0
        %459 = vmatpush1.bf16.xpose.msra.mxu0 0
        %460 = vmatprep.subr.bf16.mxu0 0
        %461 = vmatpush1.bf16.xpose.msra.mxu0 0
        %462 = vmatprep.subr.bf16.mxu0 0
        %463 = vmatpush1.bf16.xpose.msra.mxu0 0
        %464 = vmatprep.subr.bf16.mxu0 0
        %465 = vmatpush1.bf16.xpose.msra.mxu0 0
        %466 = vmatprep.subr.bf16.mxu0 0
        %467 = vmatpush1.bf16.xpose.msra.mxu0 0
        %468 = vmatprep.subr.bf16.mxu0 0
        %469 = vmatpush1.bf16.xpose.msra.mxu0 0
        %470 = vmatprep.subr.bf16.mxu0 0
        %471 = vmatpush1.bf16.xpose.msra.mxu0 0
        %472 = vmatprep.subr.bf16.mxu0 0
        %473 = vmatpush1.bf16.xpose.msra.mxu0 0
        %474 = vmatprep.subr.bf16.mxu0 0
        %475 = vmatpush1.bf16.xpose.msra.mxu0 0
        %476 = vmatprep.mubr.bf16.mxu0 0
        %477 = vmatmul.mubr.bf16.gmra.mrb[0].mxu0 %v439
        %v478 = vpop.f32.mrb[0].mxu0
        %v479 = vadd.f32 0.0, %v478
        %v480 = vpop.f32.mrb[0].mxu0
        %v481 = vpop.f32.mrb[0].mxu0
        %v482 = vpop.f32.mrb[0].mxu0
        %483 = vdwg.mxu0
        %v484 = vsel %vm437, %v479, -inf
        %485 = vmax.xlane.f32.xlu0 %v484
        %v486 = vpop.xlane.xlu0 %485
        %v487 = vsub.f32 %v479, %v486
        %v488 = vmul.f32 %v487, 1.442695
        %v489 = vpow.pop %v488
        %v490 = vsel %vm437, %v489, 0.0
        %491 = vadd.xlane.f32.xlu0 %v490
        %v492 = vpop.xlane.xlu0 %491
        %v493 = vrcp.pop %v492
        %v494 = vmul.f32 %v489, %v493
        %v495 = vpack.c.bf16 %v494, %v494
        %496 = vrot.lane.b32.xlu0 %v433, 64
        %v497 = vpop.permute.xlu0 %496
        %v499 = vsel %vm437, %v495, 0
        %vm501 = vcmask 1043456
        %v503 = vsel %vm501, %v497, 0
        %505 = vmatprep.subr.bf16.mxu0 0
        %506 = vmatpush1.bf16.msra.mxu0 %v503
        %507 = vmatprep.subr.bf16.mxu0 0
        %508 = vmatpush1.bf16.msra.mxu0 0
        %509 = vmatprep.subr.bf16.mxu0 0
        %510 = vmatpush1.bf16.msra.mxu0 0
        %511 = vmatprep.subr.bf16.mxu0 0
        %512 = vmatpush1.bf16.msra.mxu0 0
        %513 = vmatprep.subr.bf16.mxu0 0
        %514 = vmatpush1.bf16.msra.mxu0 0
        %515 = vmatprep.subr.bf16.mxu0 0
        %516 = vmatpush1.bf16.msra.mxu0 0
        %517 = vmatprep.subr.bf16.mxu0 0
        %518 = vmatpush1.bf16.msra.mxu0 0
        %519 = vmatprep.subr.bf16.mxu0 0
        %520 = vmatpush1.bf16.msra.mxu0 0
        %521 = vmatprep.subr.bf16.mxu0 0
        %522 = vmatpush1.bf16.msra.mxu0 0
        %523 = vmatprep.subr.bf16.mxu0 0
        %524 = vmatpush1.bf16.msra.mxu0 0
        %525 = vmatprep.subr.bf16.mxu0 0
        %526 = vmatpush1.bf16.msra.mxu0 0
        %527 = vmatprep.subr.bf16.mxu0 0
        %528 = vmatpush1.bf16.msra.mxu0 0
        %529 = vmatprep.subr.bf16.mxu0 0
        %530 = vmatpush1.bf16.msra.mxu0 0
        %531 = vmatprep.subr.bf16.mxu0 0
        %532 = vmatpush1.bf16.msra.mxu0 0
        %533 = vmatprep.subr.bf16.mxu0 0
        %534 = vmatpush1.bf16.msra.mxu0 0
        %535 = vmatprep.subr.bf16.mxu0 0
        %536 = vmatpush1.bf16.msra.mxu0 0
        %537 = vmatprep.mubr.bf16.mxu0 0
        %538 = vmatmul.mubr.bf16.gmra.mrb[0].mxu0 %v499
        %v539 = vpop.f32.mrb[0].mxu0
        %v540 = vadd.f32 0.0, %v539
        %v541 = vpop.f32.mrb[0].mxu0
        %v542 = vpop.f32.mrb[0].mxu0
        %v543 = vpop.f32.mrb[0].mxu0
        %544 = vdwg.mxu0
        %545 = vst.msk [vmem:[#allocation2] sm:$0xff] %vm437, %v540
        %546 = vrot.lane.b32.xlu0 %v433, 120
        %v547 = vpop.permute.xlu0 %546
        %548 = vrot.lane.b32.xlu0 %v433, 88
        %v549 = vpop.permute.xlu0 %548
        %v551 = vsel %vm437, %v547, 0
        %v554 = vsel %vm437, %v549, 0
        %556 = vmatprep.subr.bf16.mxu0 0
        %557 = vmatpush1.bf16.xpose.msra.mxu0 %v554
        %558 = vmatprep.subr.bf16.mxu0 0
        %559 = vmatpush1.bf16.xpose.msra.mxu0 0
        %560 = vmatprep.subr.bf16.mxu0 0
        %561 = vmatpush1.bf16.xpose.msra.mxu0 0
        %562 = vmatprep.subr.bf16.mxu0 0
        %563 = vmatpush1.bf16.xpose.msra.mxu0 0
        %564 = vmatprep.subr.bf16.mxu0 0
        %565 = vmatpush1.bf16.xpose.msra.mxu0 0
        %566 = vmatprep.subr.bf16.mxu0 0
        %567 = vmatpush1.bf16.xpose.msra.mxu0 0
        %568 = vmatprep.subr.bf16.mxu0 0
        %569 = vmatpush1.bf16.xpose.msra.mxu0 0
        %570 = vmatprep.subr.bf16.mxu0 0
        %571 = vmatpush1.bf16.xpose.msra.mxu0 0
        %572 = vmatprep.subr.bf16.mxu0 0
        %573 = vmatpush1.bf16.xpose.msra.mxu0 0
        %574 = vmatprep.subr.bf16.mxu0 0
        %575 = vmatpush1.bf16.xpose.msra.mxu0 0
        %576 = vmatprep.subr.bf16.mxu0 0
        %577 = vmatpush1.bf16.xpose.msra.mxu0 0
        %578 = vmatprep.subr.bf16.mxu0 0
        %579 = vmatpush1.bf16.xpose.msra.mxu0 0
        %580 = vmatprep.subr.bf16.mxu0 0
        %581 = vmatpush1.bf16.xpose.msra.mxu0 0
        %582 = vmatprep.subr.bf16.mxu0 0
        %583 = vmatpush1.bf16.xpose.msra.mxu0 0
        %584 = vmatprep.subr.bf16.mxu0 0
        %585 = vmatpush1.bf16.xpose.msra.mxu0 0
        %586 = vmatprep.subr.bf16.mxu0 0
        %587 = vmatpush1.bf16.xpose.msra.mxu0 0
        %588 = vmatprep.mubr.bf16.mxu0 0
        %589 = vmatmul.mubr.bf16.gmra.mrb[0].mxu0 %v551
        %v590 = vpop.f32.mrb[0].mxu0
        %v591 = vadd.f32 0.0, %v590
        %v592 = vpop.f32.mrb[0].mxu0
        %v593 = vpop.f32.mrb[0].mxu0
        %v594 = vpop.f32.mrb[0].mxu0
        %595 = vdwg.mxu0
        %v596 = vsel %vm437, %v591, -inf
        %597 = vmax.xlane.f32.xlu0 %v596
        %v598 = vpop.xlane.xlu0 %597
        %v599 = vsub.f32 %v591, %v598
        %v600 = vmul.f32 %v599, 1.442695
        %v601 = vpow.pop %v600
        %v602 = vsel %vm437, %v601, 0.0
        %603 = vadd.xlane.f32.xlu0 %v602
        %v604 = vpop.xlane.xlu0 %603
        %v605 = vrcp.pop %v604
        %v606 = vmul.f32 %v601, %v605
        %v607 = vpack.c.bf16 %v606, %v606
        %608 = vrot.lane.b32.xlu0 %v433, 56
        %v609 = vpop.permute.xlu0 %608
        %v611 = vsel %vm437, %v607, 0
        %v614 = vsel %vm501, %v609, 0
        %616 = vmatprep.subr.bf16.mxu0 0
        %617 = vmatpush1.bf16.msra.mxu0 %v614
        %618 = vmatprep.subr.bf16.mxu0 0
        %619 = vmatpush1.bf16.msra.mxu0 0
        %620 = vmatprep.subr.bf16.mxu0 0
        %621 = vmatpush1.bf16.msra.mxu0 0
        %622 = vmatprep.subr.bf16.mxu0 0
        %623 = vmatpush1.bf16.msra.mxu0 0
        %624 = vmatprep.subr.bf16.mxu0 0
        %625 = vmatpush1.bf16.msra.mxu0 0
        %626 = vmatprep.subr.bf16.mxu0 0
        %627 = vmatpush1.bf16.msra.mxu0 0
        %628 = vmatprep.subr.bf16.mxu0 0
        %629 = vmatpush1.bf16.msra.mxu0 0
        %630 = vmatprep.subr.bf16.mxu0 0
        %631 = vmatpush1.bf16.msra.mxu0 0
        %632 = vmatprep.subr.bf16.mxu0 0
        %633 = vmatpush1.bf16.msra.mxu0 0
        %634 = vmatprep.subr.bf16.mxu0 0
        %635 = vmatpush1.bf16.msra.mxu0 0
        %636 = vmatprep.subr.bf16.mxu0 0
        %637 = vmatpush1.bf16.msra.mxu0 0
        %638 = vmatprep.subr.bf16.mxu0 0
        %639 = vmatpush1.bf16.msra.mxu0 0
        %640 = vmatprep.subr.bf16.mxu0 0
        %641 = vmatpush1.bf16.msra.mxu0 0
        %642 = vmatprep.subr.bf16.mxu0 0
        %643 = vmatpush1.bf16.msra.mxu0 0
        %644 = vmatprep.subr.bf16.mxu0 0
        %645 = vmatpush1.bf16.msra.mxu0 0
        %646 = vmatprep.subr.bf16.mxu0 0
        %647 = vmatpush1.bf16.msra.mxu0 0
        %648 = vmatprep.mubr.bf16.mxu0 0
        %649 = vmatmul.mubr.bf16.gmra.mrb[0].mxu0 %v611
        %v650 = vpop.f32.mrb[0].mxu0
        %v651 = vadd.f32 0.0, %v650
        %v652 = vpop.f32.mrb[0].mxu0
        %v653 = vpop.f32.mrb[0].mxu0
        %v654 = vpop.f32.mrb[0].mxu0
        %655 = vdwg.mxu0
        %657 = vrot.lane.b32.xlu0 %v651, 8
        %v658 = vpop.permute.xlu0 %657
        %vm660 = vcmask 130112
        %661 = vst.msk [vmem:[#allocation2] sm:$0xff] %vm660, %v658
        %662 = vrot.lane.b32.xlu0 %v433, 112
        %v663 = vpop.permute.xlu0 %662
        %664 = vrot.lane.b32.xlu0 %v433, 80
        %v665 = vpop.permute.xlu0 %664
        %v667 = vsel %vm437, %v663, 0
        %v670 = vsel %vm437, %v665, 0
        %672 = vmatprep.subr.bf16.mxu0 0
        %673 = vmatpush1.bf16.xpose.msra.mxu0 %v670
        %674 = vmatprep.subr.bf16.mxu0 0
        %675 = vmatpush1.bf16.xpose.msra.mxu0 0
        %676 = vmatprep.subr.bf16.mxu0 0
        %677 = vmatpush1.bf16.xpose.msra.mxu0 0
        %678 = vmatprep.subr.bf16.mxu0 0
        %679 = vmatpush1.bf16.xpose.msra.mxu0 0
        %680 = vmatprep.subr.bf16.mxu0 0
        %681 = vmatpush1.bf16.xpose.msra.mxu0 0
        %682 = vmatprep.subr.bf16.mxu0 0
        %683 = vmatpush1.bf16.xpose.msra.mxu0 0
        %684 = vmatprep.subr.bf16.mxu0 0
        %685 = vmatpush1.bf16.xpose.msra.mxu0 0
        %686 = vmatprep.subr.bf16.mxu0 0
        %687 = vmatpush1.bf16.xpose.msra.mxu0 0
        %688 = vmatprep.subr.bf16.mxu0 0
        %689 = vmatpush1.bf16.xpose.msra.mxu0 0
        %690 = vmatprep.subr.bf16.mxu0 0
        %691 = vmatpush1.bf16.xpose.msra.mxu0 0
        %692 = vmatprep.subr.bf16.mxu0 0
        %693 = vmatpush1.bf16.xpose.msra.mxu0 0
        %694 = vmatprep.subr.bf16.mxu0 0
        %695 = vmatpush1.bf16.xpose.msra.mxu0 0
        %696 = vmatprep.subr.bf16.mxu0 0
        %697 = vmatpush1.bf16.xpose.msra.mxu0 0
        %698 = vmatprep.subr.bf16.mxu0 0
        %699 = vmatpush1.bf16.xpose.msra.mxu0 0
        %700 = vmatprep.subr.bf16.mxu0 0
        %701 = vmatpush1.bf16.xpose.msra.mxu0 0
        %702 = vmatprep.subr.bf16.mxu0 0
        %703 = vmatpush1.bf16.xpose.msra.mxu0 0
        %704 = vmatprep.mubr.bf16.mxu0 0
        %705 = vmatmul.mubr.bf16.gmra.mrb[0].mxu0 %v667
        %v706 = vpop.f32.mrb[0].mxu0
        %v707 = vadd.f32 0.0, %v706
        %v708 = vpop.f32.mrb[0].mxu0
        %v709 = vpop.f32.mrb[0].mxu0
        %v710 = vpop.f32.mrb[0].mxu0
        %711 = vdwg.mxu0
        %v712 = vsel %vm437, %v707, -inf
        %713 = vmax.xlane.f32.xlu0 %v712
        %v714 = vpop.xlane.xlu0 %713
        %v715 = vsub.f32 %v707, %v714
        %v716 = vmul.f32 %v715, 1.442695
        %v717 = vpow.pop %v716
        %v718 = vsel %vm437, %v717, 0.0
        %719 = vadd.xlane.f32.xlu0 %v718
        %v720 = vpop.xlane.xlu0 %719
        %v721 = vrcp.pop %v720
        %v722 = vmul.f32 %v717, %v721
        %v723 = vpack.c.bf16 %v722, %v722
        %724 = vrot.lane.b32.xlu0 %v433, 48
        %v725 = vpop.permute.xlu0 %724
        %v727 = vsel %vm437, %v723, 0
        %v730 = vsel %vm501, %v725, 0
        %732 = vmatprep.subr.bf16.mxu0 0
        %733 = vmatpush1.bf16.msra.mxu0 %v730
        %734 = vmatprep.subr.bf16.mxu0 0
        %735 = vmatpush1.bf16.msra.mxu0 0
        %736 = vmatprep.subr.bf16.mxu0 0
        %737 = vmatpush1.bf16.msra.mxu0 0
        %738 = vmatprep.subr.bf16.mxu0 0
        %739 = vmatpush1.bf16.msra.mxu0 0
        %740 = vmatprep.subr.bf16.mxu0 0
        %741 = vmatpush1.bf16.msra.mxu0 0
        %742 = vmatprep.subr.bf16.mxu0 0
        %743 = vmatpush1.bf16.msra.mxu0 0
        %744 = vmatprep.subr.bf16.mxu0 0
        %745 = vmatpush1.bf16.msra.mxu0 0
        %746 = vmatprep.subr.bf16.mxu0 0
        %747 = vmatpush1.bf16.msra.mxu0 0
        %748 = vmatprep.subr.bf16.mxu0 0
        %749 = vmatpush1.bf16.msra.mxu0 0
        %750 = vmatprep.subr.bf16.mxu0 0
        %751 = vmatpush1.bf16.msra.mxu0 0
        %752 = vmatprep.subr.bf16.mxu0 0
        %753 = vmatpush1.bf16.msra.mxu0 0
        %754 = vmatprep.subr.bf16.mxu0 0
        %755 = vmatpush1.bf16.msra.mxu0 0
        %756 = vmatprep.subr.bf16.mxu0 0
        %757 = vmatpush1.bf16.msra.mxu0 0
        %758 = vmatprep.subr.bf16.mxu0 0
        %759 = vmatpush1.bf16.msra.mxu0 0
        %760 = vmatprep.subr.bf16.mxu0 0
        %761 = vmatpush1.bf16.msra.mxu0 0
        %762 = vmatprep.subr.bf16.mxu0 0
        %763 = vmatpush1.bf16.msra.mxu0 0
        %764 = vmatprep.mubr.bf16.mxu0 0
        %765 = vmatmul.mubr.bf16.gmra.mrb[0].mxu0 %v727
        %v766 = vpop.f32.mrb[0].mxu0
        %v767 = vadd.f32 0.0, %v766
        %v768 = vpop.f32.mrb[0].mxu0
        %v769 = vpop.f32.mrb[0].mxu0
        %v770 = vpop.f32.mrb[0].mxu0
        %771 = vdwg.mxu0
        %773 = vrot.lane.b32.xlu0 %v767, 16
        %v774 = vpop.permute.xlu0 %773
        %vm776 = vcmask 195712
        %777 = vst.msk [vmem:[#allocation2] sm:$0xff] %vm776, %v774
        %778 = vrot.lane.b32.xlu0 %v433, 104
        %v779 = vpop.permute.xlu0 %778
        %780 = vrot.lane.b32.xlu0 %v433, 72
        %v781 = vpop.permute.xlu0 %780
        %v783 = vsel %vm437, %v779, 0
        %v786 = vsel %vm437, %v781, 0
        %788 = vmatprep.subr.bf16.mxu0 0
        %789 = vmatpush1.bf16.xpose.msra.mxu0 %v786
        %790 = vmatprep.subr.bf16.mxu0 0
        %791 = vmatpush1.bf16.xpose.msra.mxu0 0
        %792 = vmatprep.subr.bf16.mxu0 0
        %793 = vmatpush1.bf16.xpose.msra.mxu0 0
        %794 = vmatprep.subr.bf16.mxu0 0
        %795 = vmatpush1.bf16.xpose.msra.mxu0 0
        %796 = vmatprep.subr.bf16.mxu0 0
        %797 = vmatpush1.bf16.xpose.msra.mxu0 0
        %798 = vmatprep.subr.bf16.mxu0 0
        %799 = vmatpush1.bf16.xpose.msra.mxu0 0
        %800 = vmatprep.subr.bf16.mxu0 0
        %801 = vmatpush1.bf16.xpose.msra.mxu0 0
        %802 = vmatprep.subr.bf16.mxu0 0
        %803 = vmatpush1.bf16.xpose.msra.mxu0 0
        %804 = vmatprep.subr.bf16.mxu0 0
        %805 = vmatpush1.bf16.xpose.msra.mxu0 0
        %806 = vmatprep.subr.bf16.mxu0 0
        %807 = vmatpush1.bf16.xpose.msra.mxu0 0
        %808 = vmatprep.subr.bf16.mxu0 0
        %809 = vmatpush1.bf16.xpose.msra.mxu0 0
        %810 = vmatprep.subr.bf16.mxu0 0
        %811 = vmatpush1.bf16.xpose.msra.mxu0 0
        %812 = vmatprep.subr.bf16.mxu0 0
        %813 = vmatpush1.bf16.xpose.msra.mxu0 0
        %814 = vmatprep.subr.bf16.mxu0 0
        %815 = vmatpush1.bf16.xpose.msra.mxu0 0
        %816 = vmatprep.subr.bf16.mxu0 0
        %817 = vmatpush1.bf16.xpose.msra.mxu0 0
        %818 = vmatprep.subr.bf16.mxu0 0
        %819 = vmatpush1.bf16.xpose.msra.mxu0 0
        %820 = vmatprep.mubr.bf16.mxu0 0
        %821 = vmatmul.mubr.bf16.gmra.mrb[0].mxu0 %v783
        %v822 = vpop.f32.mrb[0].mxu0
        %v823 = vadd.f32 0.0, %v822
        %v824 = vpop.f32.mrb[0].mxu0
        %v825 = vpop.f32.mrb[0].mxu0
        %v826 = vpop.f32.mrb[0].mxu0
        %827 = vdwg.mxu0
        %v828 = vsel %vm437, %v823, -inf
        %829 = vmax.xlane.f32.xlu0 %v828
        %v830 = vpop.xlane.xlu0 %829
        %v831 = vsub.f32 %v823, %v830
        %v832 = vmul.f32 %v831, 1.442695
        %v833 = vpow.pop %v832
        %v834 = vsel %vm437, %v833, 0.0
        %835 = vadd.xlane.f32.xlu0 %v834
        %v836 = vpop.xlane.xlu0 %835
        %v837 = vrcp.pop %v836
        %v838 = vmul.f32 %v833, %v837
        %v839 = vpack.c.bf16 %v838, %v838
        %840 = vrot.lane.b32.xlu0 %v433, 40
        %v841 = vpop.permute.xlu0 %840
        %v843 = vsel %vm437, %v839, 0
        %v846 = vsel %vm501, %v841, 0
        %848 = vmatprep.subr.bf16.mxu0 0
        %849 = vmatpush1.bf16.msra.mxu0 %v846
        %850 = vmatprep.subr.bf16.mxu0 0
        %851 = vmatpush1.bf16.msra.mxu0 0
        %852 = vmatprep.subr.bf16.mxu0 0
        %853 = vmatpush1.bf16.msra.mxu0 0
        %854 = vmatprep.subr.bf16.mxu0 0
        %855 = vmatpush1.bf16.msra.mxu0 0
        %856 = vmatprep.subr.bf16.mxu0 0
        %857 = vmatpush1.bf16.msra.mxu0 0
        %858 = vmatprep.subr.bf16.mxu0 0
        %859 = vmatpush1.bf16.msra.mxu0 0
        %860 = vmatprep.subr.bf16.mxu0 0
        %861 = vmatpush1.bf16.msra.mxu0 0
        %862 = vmatprep.subr.bf16.mxu0 0
        %863 = vmatpush1.bf16.msra.mxu0 0
        %864 = vmatprep.subr.bf16.mxu0 0
        %865 = vmatpush1.bf16.msra.mxu0 0
        %866 = vmatprep.subr.bf16.mxu0 0
        %867 = vmatpush1.bf16.msra.mxu0 0
        %868 = vmatprep.subr.bf16.mxu0 0
        %869 = vmatpush1.bf16.msra.mxu0 0
        %870 = vmatprep.subr.bf16.mxu0 0
        %871 = vmatpush1.bf16.msra.mxu0 0
        %872 = vmatprep.subr.bf16.mxu0 0
        %873 = vmatpush1.bf16.msra.mxu0 0
        %874 = vmatprep.subr.bf16.mxu0 0
        %875 = vmatpush1.bf16.msra.mxu0 0
        %876 = vmatprep.subr.bf16.mxu0 0
        %877 = vmatpush1.bf16.msra.mxu0 0
        %878 = vmatprep.subr.bf16.mxu0 0
        %879 = vmatpush1.bf16.msra.mxu0 0
        %880 = vmatprep.mubr.bf16.mxu0 0
        %881 = vmatmul.mubr.bf16.gmra.mrb[0].mxu0 %v843
        %v882 = vpop.f32.mrb[0].mxu0
        %v883 = vadd.f32 0.0, %v882
        %v884 = vpop.f32.mrb[0].mxu0
        %v885 = vpop.f32.mrb[0].mxu0
        %v886 = vpop.f32.mrb[0].mxu0
        %887 = vdwg.mxu0
        %889 = vrot.lane.b32.xlu0 %v883, 24
        %v890 = vpop.permute.xlu0 %889
        %vm892 = vcmask 261312
        %893 = vst.msk [vmem:[#allocation2] sm:$0xff] %vm892, %v890
        %v894 = vld [vmem:[#allocation2] sm:$0xff]
        %v895 = vpack.c.bf16 %v894, %v894
        %v896 = vld [vmem:[%s2] sm:$0xf]
        %v897 = vld [vmem:[%s2 + $0x4] sm:$0xf]
        %v898 = vld [vmem:[%s2 + $0x8] sm:$0xf]
        %v899 = vld [vmem:[%s2 + $0xc] sm:$0xf]
        %v900 = vld [vmem:[%s3] sm:$0x1]
        %v902 = vlaneseq
        %v903 = vshrl.u32 %v902, 7
        %v904 = vsub.s32 0, %v903
        %v905 = vrot.slane %v900, %v904
        %v911 = vunpack.c.l.b16 %v896
        %v912 = vunpack.c.l.b16 %v897
        %v913 = vunpack.c.l.b16 %v898
        %v914 = vunpack.c.l.b16 %v899
        %v915 = vpack.c.b16 %v912, %v911
        %v916 = vpack.c.b16 %v914, %v913
        %v920 = vsel %vm389, %v895, 0
        %922 = vmatprep.subr.bf16.mxu0 0
        %923 = vmatpush1.bf16.msra.mxu0 %v915
        %924 = vmatprep.subr.bf16.mxu0 0
        %925 = vmatpush1.bf16.msra.mxu0 %v916
        %926 = vmatprep.subr.bf16.mxu0 0
        %927 = vmatpush1.bf16.msra.mxu0 0
        %928 = vmatprep.subr.bf16.mxu0 0
        %929 = vmatpush1.bf16.msra.mxu0 0
        %930 = vmatprep.subr.bf16.mxu0 0
        %931 = vmatpush1.bf16.msra.mxu0 0
        %932 = vmatprep.subr.bf16.mxu0 0
        %933 = vmatpush1.bf16.msra.mxu0 0
        %934 = vmatprep.subr.bf16.mxu0 0
        %935 = vmatpush1.bf16.msra.mxu0 0
        %936 = vmatprep.subr.bf16.mxu0 0
        %937 = vmatpush1.bf16.msra.mxu0 0
        %938 = vmatprep.subr.bf16.mxu0 0
        %939 = vmatpush1.bf16.msra.mxu0 0
        %940 = vmatprep.subr.bf16.mxu0 0
        %941 = vmatpush1.bf16.msra.mxu0 0
        %942 = vmatprep.subr.bf16.mxu0 0
        %943 = vmatpush1.bf16.msra.mxu0 0
        %944 = vmatprep.subr.bf16.mxu0 0
        %945 = vmatpush1.bf16.msra.mxu0 0
        %946 = vmatprep.subr.bf16.mxu0 0
        %947 = vmatpush1.bf16.msra.mxu0 0
        %948 = vmatprep.subr.bf16.mxu0 0
        %949 = vmatpush1.bf16.msra.mxu0 0
        %950 = vmatprep.subr.bf16.mxu0 0
        %951 = vmatpush1.bf16.msra.mxu0 0
        %952 = vmatprep.subr.bf16.mxu0 0
        %953 = vmatpush1.bf16.msra.mxu0 0
        %954 = vmatprep.mubr.bf16.mxu0 0
        %955 = vmatmul.mubr.bf16.gmra.mrb[0].mxu0 %v920
        %v956 = vpop.f32.mrb[0].mxu0
        %v957 = vadd.f32 %v905, %v956
        %v958 = vpop.f32.mrb[0].mxu0
        %v959 = vpop.f32.mrb[0].mxu0
        %v960 = vpop.f32.mrb[0].mxu0
        %961 = vdwg.mxu0
        %v962 = vld [vmem:[%s4] sm:$0x1]
        %v963 = vld [vmem:[%s5] sm:$0x1]
        %v964 = vadd.f32 %v957, %v371
        %v965 = vsel %vm389, %v964, 0.0
        %966 = vadd.xlane.f32.xlu0 %v965
        %v967 = vpop.xlane.xlu0 %966
        %v968 = vrcp.pop 32.0
        %v969 = vmul.f32 %v967, %v968
        %v970 = vsub.f32 %v964, %v969
        %v971 = vmul.f32 %v970, %v970
        %v972 = vsel %vm389, %v971, 0.0
        %973 = vadd.xlane.f32.xlu0 %v972
        %v974 = vpop.xlane.xlu0 %973
        %v975 = vmul.f32 %v974, %v968
        %v976 = vadd.f32 %v975, 1e-05
        %v977 = vrsqrt.pop %v976
        %v978 = vmul.f32 %v970, %v977
        %v980 = vlaneseq
        %v981 = vshrl.u32 %v980, 7
        %v982 = vsub.s32 0, %v981
        %v983 = vrot.slane %v962, %v982
        %v985 = vmul.f32 %v978, %v983
        %v987 = vlaneseq
        %v988 = vshrl.u32 %v987, 7
        %v989 = vsub.s32 0, %v988
        %v990 = vrot.slane %v963, %v989
        %v992 = vadd.f32 %v985, %v990
        %v993 = vpack.c.bf16 %v992, %v992
        %v994 = vld [vmem:[#allocation3] sm:$0xf]
        %v995 = vld [vmem:[#allocation3 + $0x4] sm:$0xf]
        %v996 = vld [vmem:[#allocation3 + $0x8] sm:$0xf]
        %v997 = vld [vmem:[#allocation3 + $0xc] sm:$0xf]
        %v998 = vld [vmem:[%s7] sm:$0x1]
        %v1000 = vlaneseq
        %v1001 = vshrl.u32 %v1000, 7
        %v1002 = vsub.s32 0, %v1001
        %v1003 = vrot.slane %v998, %v1002
        %v1009 = vunpack.c.l.b16 %v994
        %v1010 = vunpack.c.l.b16 %v995
        %v1011 = vunpack.c.l.b16 %v996
        %v1012 = vunpack.c.l.b16 %v997
        %v1013 = vpack.c.b16 %v1010, %v1009
        %v1014 = vpack.c.b16 %v1012, %v1011
        %v1018 = vsel %vm389, %v993, 0
        %1020 = vmatprep.subr.bf16.mxu0 0
        %1021 = vmatpush1.bf16.msra.mxu0 %v1013
        %1022 = vmatprep.subr.bf16.mxu0 0
        %1023 = vmatpush1.bf16.msra.mxu0 %v1014
        %1024 = vmatprep.subr.bf16.mxu0 0
        %1025 = vmatpush1.bf16.msra.mxu0 0
        %1026 = vmatprep.subr.bf16.mxu0 0
        %1027 = vmatpush1.bf16.msra.mxu0 0
        %1028 = vmatprep.subr.bf16.mxu0 0
        %1029 = vmatpush1.bf16.msra.mxu0 0
        %1030 = vmatprep.subr.bf16.mxu0 0
        %1031 = vmatpush1.bf16.msra.mxu0 0
        %1032 = vmatprep.subr.bf16.mxu0 0
        %1033 = vmatpush1.bf16.msra.mxu0 0
        %1034 = vmatprep.subr.bf16.mxu0 0
        %1035 = vmatpush1.bf16.msra.mxu0 0
        %1036 = vmatprep.subr.bf16.mxu0 0
        %1037 = vmatpush1.bf16.msra.mxu0 0
        %1038 = vmatprep.subr.bf16.mxu0 0
        %1039 = vmatpush1.bf16.msra.mxu0 0
        %1040 = vmatprep.subr.bf16.mxu0 0
        %1041 = vmatpush1.bf16.msra.mxu0 0
        %1042 = vmatprep.subr.bf16.mxu0 0
        %1043 = vmatpush1.bf16.msra.mxu0 0
        %1044 = vmatprep.subr.bf16.mxu0 0
        %1045 = vmatpush1.bf16.msra.mxu0 0
        %1046 = vmatprep.subr.bf16.mxu0 0
        %1047 = vmatpush1.bf16.msra.mxu0 0
        %1048 = vmatprep.subr.bf16.mxu0 0
        %1049 = vmatpush1.bf16.msra.mxu0 0
        %1050 = vmatprep.subr.bf16.mxu0 0
        %1051 = vmatpush1.bf16.msra.mxu0 0
        %1052 = vmatprep.mubr.bf16.mxu0 0
        %1053 = vmatmul.mubr.bf16.gmra.mrb[0].mxu0 %v1018
        %v1054 = vpop.f32.mrb[0].mxu0
        %v1055 = vadd.f32 %v1003, %v1054
        %v1056 = vpop.f32.mrb[0].mxu0
        %v1057 = vpop.f32.mrb[0].mxu0
        %v1058 = vpop.f32.mrb[0].mxu0
        %1059 = vdwg.mxu0
        %v1060 = vmax.f32 %v1055, 0.0
        %v1061 = vpack.c.bf16 %v1060, %v1060
        %v1062 = vld [vmem:[%s8] sm:$0xf]
        %v1063 = vld [vmem:[%s8 + $0x4] sm:$0xf]
        %v1064 = vld [vmem:[%s8 + $0x8] sm:$0xf]
        %v1065 = vld [vmem:[%s8 + $0xc] sm:$0xf]
        %v1066 = vld [vmem:[%s8 + $0x10] sm:$0xf]
        %v1067 = vld [vmem:[%s8 + $0x14] sm:$0xf]
        %v1068 = vld [vmem:[%s8 + $0x18] sm:$0xf]
        %v1069 = vld [vmem:[%s8 + $0x1c] sm:$0xf]
        %v1070 = vld [vmem:[%s9] sm:$0x1]
        %v1072 = vlaneseq
        %v1073 = vshrl.u32 %v1072, 7
        %v1074 = vsub.s32 0, %v1073
        %v1075 = vrot.slane %v1070, %v1074
        %v1085 = vunpack.c.l.b16 %v1062
        %v1086 = vunpack.c.l.b16 %v1063
        %v1087 = vunpack.c.l.b16 %v1064
        %v1088 = vunpack.c.l.b16 %v1065
        %v1089 = vunpack.c.l.b16 %v1066
        %v1090 = vunpack.c.l.b16 %v1067
        %v1091 = vunpack.c.l.b16 %v1068
        %v1092 = vunpack.c.l.b16 %v1069
        %v1093 = vpack.c.b16 %v1086, %v1085
        %v1094 = vpack.c.b16 %v1088, %v1087
        %v1095 = vpack.c.b16 %v1090, %v1089
        %v1096 = vpack.c.b16 %v1092, %v1091
        %vm1101 = vcmask 523264
        %v1103 = vsel %vm1101, %v1061, 0
        %1105 = vmatprep.subr.bf16.mxu0 0
        %1106 = vmatpush1.bf16.msra.mxu0 %v1093
        %1107 = vmatprep.subr.bf16.mxu0 0
        %1108 = vmatpush1.bf16.msra.mxu0 %v1094
        %1109 = vmatprep.subr.bf16.mxu0 0
        %1110 = vmatpush1.bf16.msra.mxu0 %v1095
        %1111 = vmatprep.subr.bf16.mxu0 0
        %1112 = vmatpush1.bf16.msra.mxu0 %v1096
        %1113 = vmatprep.subr.bf16.mxu0 0
        %1114 = vmatpush1.bf16.msra.mxu0 0
        %1115 = vmatprep.subr.bf16.mxu0 0
        %1116 = vmatpush1.bf16.msra.mxu0 0
        %1117 = vmatprep.subr.bf16.mxu0 0
        %1118 = vmatpush1.bf16.msra.mxu0 0
        %1119 = vmatprep.subr.bf16.mxu0 0
        %1120 = vmatpush1.bf16.msra.mxu0 0
        %1121 = vmatprep.subr.bf16.mxu0 0
        %1122 = vmatpush1.bf16.msra.mxu0 0
        %1123 = vmatprep.subr.bf16.mxu0 0
        %1124 = vmatpush1.bf16.msra.mxu0 0
        %1125 = vmatprep.subr.bf16.mxu0 0
        %1126 = vmatpush1.bf16.msra.mxu0 0
        %1127 = vmatprep.subr.bf16.mxu0 0
        %1128 = vmatpush1.bf16.msra.mxu0 0
        %1129 = vmatprep.subr.bf16.mxu0 0
        %1130 = vmatpush1.bf16.msra.mxu0 0
        %1131 = vmatprep.subr.bf16.mxu0 0
        %1132 = vmatpush1.bf16.msra.mxu0 0
        %1133 = vmatprep.subr.bf16.mxu0 0
        %1134 = vmatpush1.bf16.msra.mxu0 0
        %1135 = vmatprep.subr.bf16.mxu0 0
        %1136 = vmatpush1.bf16.msra.mxu0 0
        %1137 = vmatprep.mubr.bf16.mxu0 0
        %1138 = vmatmul.mubr.bf16.gmra.mrb[0].mxu0 %v1103
        %v1139 = vpop.f32.mrb[0].mxu0
        %v1140 = vadd.f32 %v1075, %v1139
        %v1141 = vpop.f32.mrb[0].mxu0
        %v1142 = vpop.f32.mrb[0].mxu0
        %v1143 = vpop.f32.mrb[0].mxu0
        %1144 = vdwg.mxu0
        %v1145 = vadd.f32 %v1140, %v992
        %v1146 = vsel %vm389, %v1145, 0.0
        %1147 = vadd.xlane.f32.xlu0 %v1146
        %v1148 = vpop.xlane.xlu0 %1147
        %v1149 = vmul.f32 %v1148, %v968
        %v1150 = vsub.f32 %v1145, %v1149
        %v1151 = vmul.f32 %v1150, %v1150
        %v1152 = vsel %vm389, %v1151, 0.0
        %1153 = vadd.xlane.f32.xlu0 %v1152
        %v1154 = vpop.xlane.xlu0 %1153
        %v1155 = vmul.f32 %v1154, %v968
        %v1156 = vadd.f32 %v1155, 1e-05
        %v1157 = vrsqrt.pop %v1156
        %v1158 = vmul.f32 %v1150, %v1157
        %v1159 = vmul.f32 %v1158, %v983
        %v1160 = vadd.f32 %v1159, %v990
        %1161 = vst.msk [vmem:[%s365] sm:$0xff] %vm389, %v1160
        %s1162 = sand.u32 %s248, 1
        %s1163 = scalar_lea.sflag [#allocation5], %s1162
        %s1164 = sand.u32 %s248, 1
        %s1165 = smul.addr %s1164, 8
        %s1166 = scalar_lea.vmem [#allocation6], %s1165
        // Predicated region
        $region65: #{tpu_custom_call.1} parent=59 // pred_check
          %p1167 = pneg %p258
        $region66: #{tpu_custom_call.1} parent=59 // pred_check_branch
          %1169 = sbr.rel (%p1167) target = $region68
        $region67: #{tpu_custom_call.1} parent=59 // pred_region
          %s1171 = ssub.s32 128, 128
          %1172 = vsyncadd %s1163, %s1171
          %s1173 = smul.addr %s25, 128
          %s1174 = scalar_lea.hbm %s10, %s1173
          %s1176 = sshll.u32 %s1166, 4
          %s1177 = int_to_ptr.vmem [resolvable:$true] %s1176
          %1179 = dma.vmem_to_hbm [thread:$0]  %s1177, 128, %s1174, %s1163
        $region68: #{tpu_custom_call.1} parent=59 // pred_fallthru
          _
      $region60: #{tpu_custom_call.1} parent=5 // pred_fallthru
        _
      %p1180 = scmp.le.s32.totalorder 2, %s20
      // Predicated region
      $region69: #{tpu_custom_call.1} parent=5 // pred_check
        %p1181 = pneg %p1180
      $region70: #{tpu_custom_call.1} parent=5 // pred_check_branch
        %1183 = sbr.rel (%p1181) target = $region72
      $region71: #{tpu_custom_call.1} parent=5 // pred_region
        %s1184 = ssub.s32 %s20, 2
        // Predicated region
        $region73: #{tpu_custom_call.1} parent=71 // pred_check
          %p1185 = pneg %p264
        $region74: #{tpu_custom_call.1} parent=71 // pred_check_branch
          %1187 = sbr.rel (%p1185) target = $region76
        $region75: #{tpu_custom_call.1} parent=71 // pred_region
          %s1188 = sand.u32 %s249, 1
          %s1189 = scalar_lea.sflag [#allocation5], %s1188
          %s1190 = sand.u32 %s249, 1
          %s1191 = smul.addr %s1190, 8
          %s1192 = scalar_lea.vmem [#allocation6], %s1191
          %1193 = dma.done %s1189, 128
        $region76: #{tpu_custom_call.1} parent=71 // pred_fallthru
          _
      $region72: #{tpu_custom_call.1} parent=5 // pred_fallthru
        _
    $region6: #{tpu_custom_call.1} parent=1 // loop_footer
      %s24 = sadd.s32 1, %s20
    $region7: #{tpu_custom_call.1} parent=1 // loop_footer_branch
      %19 = sbr.rel target = $region3
    $region8: #{tpu_custom_call.1} parent=1 // loop_exit
      _
    %1194 = vsyncpa [#allocation4], 1
    %s1195 = scalar_lea.sflag [#allocation4], 1
    %1196 = vsyncpa %s1195, 1
    %1197 = vsyncpa [#allocation5], 1
    %s1198 = scalar_lea.sflag [#allocation5], 1
    %1199 = vsyncpa %s1198, 1

// kernel: tpu_custom_call.1
$region0: #{tpu_custom_call.1}
  #allocation0 [shape = 'u32[]', space=smem, size = 0x4, offset = 0x4, fixed_abs, tag = 'smem constant byte address 0x4 - core index']
  #allocation1 [shape = 'u32[144,128]{1,0:T(1,128)}', space=vmem, size = 0x12000, scoped, tag = 'internal scratch']
  #allocation2 [shape = 'f32[8,32]{1,0:T(8,128)}', space=vmem, size = 0x1000, scoped, tag = 'scratch operand']
  %s0 = inlined_call_operand.vmem [shape: f32[16,32], index: 0, kind: input, shape index: {}]
  %s1 = inlined_call_operand.vmem [shape: bf16[32,96], index: 1, kind: input, shape index: {}]
  %s2 = inlined_call_operand.vmem [shape: bf16[32,32], index: 2, kind: input, shape index: {}]
  %s3 = inlined_call_operand.vmem [shape: f32[1,32], index: 3, kind: input, shape index: {}]
  %s4 = inlined_call_operand.vmem [shape: f32[1,32], index: 4, kind: input, shape index: {}]
  %s5 = inlined_call_operand.vmem [shape: f32[1,32], index: 5, kind: input, shape index: {}]
  %s6 = inlined_call_operand.hbm [shape: bf16[32,64], index: 6, kind: input, shape index: {}]
  %s7 = inlined_call_operand.vmem [shape: f32[1,64], index: 7, kind: input, shape index: {}]
  %s8 = inlined_call_operand.vmem [shape: bf16[64,32], index: 8, kind: input, shape index: {}]
  %s9 = inlined_call_operand.vmem [shape: f32[1,32], index: 9, kind: input, shape index: {}]
  %s10 = inlined_call_operand.hbm [shape: f32[16,32], index: 10, kind: output, shape index: {}]
  %s11 = sld [smem:[#allocation0]]
  $region77: #{tpu_custom_call.1} parent=0
    _
  %s13 = ssub.s32 1, %s11
  %s14 = scalar_select 0, %s13, %s11
  $region1: #{tpu_custom_call.1} parent=0
    #allocation3 [shape = 'u8[8192]{0}', space=vmem, size = 0x2000, scoped, tag = 'input window, operand 6, single buffered']
    #allocation4 [shape = 's32[2]{0}', space=sflag, size = 0x8, scoped, tag = 'scoped memory for tpu_custom_call.1']
    #allocation5 [shape = 's32[2]{0}', space=sflag, size = 0x8, scoped, tag = 'scoped memory for tpu_custom_call.1']
    #allocation6 [shape = 'u8[8192]{0}', space=vmem, size = 0x2000, scoped, tag = 'output window, operand 0']
    %15 = vsyncpa [#allocation4], 0
    %16 = vsyncpa [#allocation5], 0
    %s17 = scalar_lea.sflag [#allocation5], 1
    %18 = vsyncpa %s17, 0
    loop: start=0, step=1, limit=4
    $region2: #{tpu_custom_call.1} parent=1 // loop_pre_header
      _
    $region3: #{tpu_custom_call.1} parent=1 // loop_header
      %s20 = sphi 0, %s24
      %p21 = scmp.ge.s32.totalorder %s20, 4
      %s30 = sphi 0, %s32
      %s33 = sphi 0, %s30
      %s34 = sphi 0, %s33
      %s50 = sphi 0, %s34
      %s54 = sphi 0, %s54
      %s56 = sphi 0, %s54
      %s57 = sphi 0, %s56
      %s71 = sphi 0, %s57
      %s75 = sphi 0, %s75
      %s77 = sphi 0, %s75
      %s78 = sphi 0, %s77
      %s92 = sphi 0, %s78
      %s96 = sphi 0, %s96
      %s98 = sphi 0, %s96
      %s99 = sphi 0, %s98
      %s113 = sphi 0, %s99
      %s117 = sphi 0, %s117
      %s119 = sphi 0, %s117
      %s120 = sphi 0, %s119
      %s134 = sphi 0, %s120
      %s138 = sphi 0, %s138
      %s140 = sphi 0, %s138
      %s141 = sphi 0, %s140
      %s155 = sphi 0, %s141
      %s159 = sphi 0, %s159
      %s161 = sphi 0, %s159
      %s162 = sphi 0, %s161
      %s176 = sphi 0, %s162
      %s180 = sphi 0, %s180
      %s182 = sphi 0, %s180
      %s183 = sphi 0, %s182
      %s197 = sphi 0, %s183
      %s201 = sphi 0, %s201
      %s203 = sphi 0, %s201
      %s204 = sphi 0, %s203
      %s218 = sphi 0, %s204
      %s222 = sphi 0, %s222
      %s224 = sphi 0, %s222
      %s225 = sphi 0, %s224
      %s239 = sphi 0, %s225
      %s245 = sphi 0, %s247
      %s248 = sphi 0, %s245
      %s249 = sphi 0, %s248
      %s265 = sphi 0, %s249
    $region4: #{tpu_custom_call.1} parent=1 // loop_header_branch
      %23 = sbr.rel (%p21) target = $region8
    $region5: #{tpu_custom_call.1} parent=1 // loop_body
      %s25 = ssub.s32 %s20, 1
      %s26 = ssub.s32 %s20, 2
      %s27 = sadd.s32 %s20, 1
      %s28 = ssub.s32 %s20, %s27
      %p29 = scmp.eq.s32.totalorder %s28, 0
      %s31 = sadd.s32 %s30, 1
      %s32 = scalar_select %p29, %s30, %s31
      %p35 = pneg %p29
      %p36 = scmp.eq.s32.totalorder %s20, 1
      %p37 = por %p35, %p36
      %p38 = scmp.ne.s32.totalorder %s30, %s33
      %p39 = scmp.eq.s32.totalorder %s20, 0
      %p40 = por %p38, %p39
      %p41 = scmp.ne.s32.totalorder %s30, %s33
      %p42 = scmp.eq.s32.totalorder %s25, 1
      %p43 = por %p41, %p42
      %p44 = scmp.ne.s32.totalorder %s33, %s34
      %p45 = scmp.eq.s32.totalorder %s25, 0
      %p46 = por %p44, %p45
      %p47 = scmp.ne.s32.totalorder %s33, %s34
      %p48 = scmp.eq.s32.totalorder %s26, 1
      %p49 = por %p47, %p48
      %p51 = scmp.ne.s32.totalorder %s34, %s50
      %p52 = scmp.eq.s32.totalorder %s26, 0
      %p53 = por %p51, %p52
      %s55 = sadd.s32 %s54, 1
      %p58 = scmp.eq.s32.totalorder %s20, 1
      %p59 = scmp.ne.s32.totalorder %s54, %s56
      %p60 = scmp.eq.s32.totalorder %s20, 0
      %p61 = por %p59, %p60
      %p62 = scmp.ne.s32.totalorder %s54, %s56
      %p63 = scmp.eq.s32.totalorder %s25, 1
      %p64 = por %p62, %p63
      %p65 = scmp.ne.s32.totalorder %s56, %s57
      %p66 = scmp.eq.s32.totalorder %s25, 0
      %p67 = por %p65, %p66
      %p68 = scmp.ne.s32.totalorder %s56, %s57
      %p69 = scmp.eq.s32.totalorder %s26, 1
      %p70 = por %p68, %p69
      %p72 = scmp.ne.s32.totalorder %s57, %s71
      %p73 = scmp.eq.s32.totalorder %s26, 0
      %p74 = por %p72, %p73
      %s76 = sadd.s32 %s75, 1
      %p79 = scmp.eq.s32.totalorder %s20, 1
      %p80 = scmp.ne.s32.totalorder %s75, %s77
      %p81 = scmp.eq.s32.totalorder %s20, 0
      %p82 = por %p80, %p81
      %p83 = scmp.ne.s32.totalorder %s75, %s77
      %p84 = scmp.eq.s32.totalorder %s25, 1
      %p85 = por %p83, %p84
      %p86 = scmp.ne.s32.totalorder %s77, %s78
      %p87 = scmp.eq.s32.totalorder %s25, 0
      %p88 = por %p86, %p87
      %p89 = scmp.ne.s32.totalorder %s77, %s78
      %p90 = scmp.eq.s32.totalorder %s26, 1
      %p91 = por %p89, %p90
      %p93 = scmp.ne.s32.totalorder %s78, %s92
      %p94 = scmp.eq.s32.totalorder %s26, 0
      %p95 = por %p93, %p94
      %s97 = sadd.s32 %s96, 1
      %p100 = scmp.eq.s32.totalorder %s20, 1
      %p101 = scmp.ne.s32.totalorder %s96, %s98
      %p102 = scmp.eq.s32.totalorder %s20, 0
      %p103 = por %p101, %p102
      %p104 = scmp.ne.s32.totalorder %s96, %s98
      %p105 = scmp.eq.s32.totalorder %s25, 1
      %p106 = por %p104, %p105
      %p107 = scmp.ne.s32.totalorder %s98, %s99
      %p108 = scmp.eq.s32.totalorder %s25, 0
      %p109 = por %p107, %p108
      %p110 = scmp.ne.s32.totalorder %s98, %s99
      %p111 = scmp.eq.s32.totalorder %s26, 1
      %p112 = por %p110, %p111
      %p114 = scmp.ne.s32.totalorder %s99, %s113
      %p115 = scmp.eq.s32.totalorder %s26, 0
      %p116 = por %p114, %p115
      %s118 = sadd.s32 %s117, 1
      %p121 = scmp.eq.s32.totalorder %s20, 1
      %p122 = scmp.ne.s32.totalorder %s117, %s119
      %p123 = scmp.eq.s32.totalorder %s20, 0
      %p124 = por %p122, %p123
      %p125 = scmp.ne.s32.totalorder %s117, %s119
      %p126 = scmp.eq.s32.totalorder %s25, 1
      %p127 = por %p125, %p126
      %p128 = scmp.ne.s32.totalorder %s119, %s120
      %p129 = scmp.eq.s32.totalorder %s25, 0
      %p130 = por %p128, %p129
      %p131 = scmp.ne.s32.totalorder %s119, %s120
      %p132 = scmp.eq.s32.totalorder %s26, 1
      %p133 = por %p131, %p132
      %p135 = scmp.ne.s32.totalorder %s120, %s134
      %p136 = scmp.eq.s32.totalorder %s26, 0
      %p137 = por %p135, %p136
      %s139 = sadd.s32 %s138, 1
      %p142 = scmp.eq.s32.totalorder %s20, 1
      %p143 = scmp.ne.s32.totalorder %s138, %s140
      %p144 = scmp.eq.s32.totalorder %s20, 0
      %p145 = por %p143, %p144
      %p146 = scmp.ne.s32.totalorder %s138, %s140
      %p147 = scmp.eq.s32.totalorder %s25, 1
      %p148 = por %p146, %p147
      %p149 = scmp.ne.s32.totalorder %s140, %s141
      %p150 = scmp.eq.s32.totalorder %s25, 0
      %p151 = por %p149, %p150
      %p152 = scmp.ne.s32.totalorder %s140, %s141
      %p153 = scmp.eq.s32.totalorder %s26, 1
      %p154 = por %p152, %p153
      %p156 = scmp.ne.s32.totalorder %s141, %s155
      %p157 = scmp.eq.s32.totalorder %s26, 0
      %p158 = por %p156, %p157
      %s160 = sadd.s32 %s159, 1
      %p163 = scmp.eq.s32.totalorder %s20, 1
      %p164 = scmp.ne.s32.totalorder %s159, %s161
      %p165 = scmp.eq.s32.totalorder %s20, 0
      %p166 = por %p164, %p165
      %p167 = scmp.ne.s32.totalorder %s159, %s161
      %p168 = scmp.eq.s32.totalorder %s25, 1
      %p169 = por %p167, %p168
      %p170 = scmp.ne.s32.totalorder %s161, %s162
      %p171 = scmp.eq.s32.totalorder %s25, 0
      %p172 = por %p170, %p171
      %p173 = scmp.ne.s32.totalorder %s161, %s162
      %p174 = scmp.eq.s32.totalorder %s26, 1
      %p175 = por %p173, %p174
      %p177 = scmp.ne.s32.totalorder %s162, %s176
      %p178 = scmp.eq.s32.totalorder %s26, 0
      %p179 = por %p177, %p178
      %s181 = sadd.s32 %s180, 1
      %p184 = scmp.eq.s32.totalorder %s20, 1
      %p185 = scmp.ne.s32.totalorder %s180, %s182
      %p186 = scmp.eq.s32.totalorder %s20, 0
      %p187 = por %p185, %p186
      %p188 = scmp.ne.s32.totalorder %s180, %s182
      %p189 = scmp.eq.s32.totalorder %s25, 1
      %p190 = por %p188, %p189
      %p191 = scmp.ne.s32.totalorder %s182, %s183
      %p192 = scmp.eq.s32.totalorder %s25, 0
      %p193 = por %p191, %p192
      %p194 = scmp.ne.s32.totalorder %s182, %s183
      %p195 = scmp.eq.s32.totalorder %s26, 1
      %p196 = por %p194, %p195
      %p198 = scmp.ne.s32.totalorder %s183, %s197
      %p199 = scmp.eq.s32.totalorder %s26, 0
      %p200 = por %p198, %p199
      %s202 = sadd.s32 %s201, 1
      %p205 = scmp.eq.s32.totalorder %s20, 1
      %p206 = scmp.ne.s32.totalorder %s201, %s203
      %p207 = scmp.eq.s32.totalorder %s20, 0
      %p208 = por %p206, %p207
      %p209 = scmp.ne.s32.totalorder %s201, %s203
      %p210 = scmp.eq.s32.totalorder %s25, 1
      %p211 = por %p209, %p210
      %p212 = scmp.ne.s32.totalorder %s203, %s204
      %p213 = scmp.eq.s32.totalorder %s25, 0
      %p214 = por %p212, %p213
      %p215 = scmp.ne.s32.totalorder %s203, %s204
      %p216 = scmp.eq.s32.totalorder %s26, 1
      %p217 = por %p215, %p216
      %p219 = scmp.ne.s32.totalorder %s204, %s218
      %p220 = scmp.eq.s32.totalorder %s26, 0
      %p221 = por %p219, %p220
      %s223 = sadd.s32 %s222, 1
      %p226 = scmp.eq.s32.totalorder %s20, 1
      %p227 = scmp.ne.s32.totalorder %s222, %s224
      %p228 = scmp.eq.s32.totalorder %s20, 0
      %p229 = por %p227, %p228
      %p230 = scmp.ne.s32.totalorder %s222, %s224
      %p231 = scmp.eq.s32.totalorder %s25, 1
      %p232 = por %p230, %p231
      %p233 = scmp.ne.s32.totalorder %s224, %s225
      %p234 = scmp.eq.s32.totalorder %s25, 0
      %p235 = por %p233, %p234
      %p236 = scmp.ne.s32.totalorder %s224, %s225
      %p237 = scmp.eq.s32.totalorder %s26, 1
      %p238 = por %p236, %p237
      %p240 = scmp.ne.s32.totalorder %s225, %s239
      %p241 = scmp.eq.s32.totalorder %s26, 0
      %p242 = por %p240, %p241
      %s243 = ssub.s32 %s20, %s27
      %p244 = scmp.eq.s32.totalorder %s243, 0
      %s246 = sadd.s32 %s245, 1
      %s247 = scalar_select %p244, %s245, %s246
      %p250 = pneg %p244
      %p251 = scmp.eq.s32.totalorder %s20, 1
      %p252 = por %p250, %p251
      %p253 = scmp.ne.s32.totalorder %s245, %s248
      %p254 = scmp.eq.s32.totalorder %s20, 0
      %p255 = por %p253, %p254
      %p256 = scmp.ne.s32.totalorder %s245, %s248
      %p257 = scmp.eq.s32.totalorder %s25, 1
      %p258 = por %p256, %p257
      %p259 = scmp.ne.s32.totalorder %s248, %s249
      %p260 = scmp.eq.s32.totalorder %s25, 0
      %p261 = por %p259, %p260
      %p262 = scmp.ne.s32.totalorder %s248, %s249
      %p263 = scmp.eq.s32.totalorder %s26, 1
      %p264 = por %p262, %p263
      %p266 = scmp.ne.s32.totalorder %s249, %s265
      %p267 = scmp.eq.s32.totalorder %s26, 0
      %p268 = por %p266, %p267
      %p269 = scmp.le.s32.totalorder 1, %s20
      %p270 = scmp.lt.s32.totalorder %s20, 3
      %p271 = pnand %p269, %p270
      %p272 = pneg %p271
      // Predicated region
      $region9: #{tpu_custom_call.1} parent=5 // pred_check
        _
      $region10: #{tpu_custom_call.1} parent=5 // pred_check_branch
        %274 = sbr.rel (%p271) target = $region12
      $region11: #{tpu_custom_call.1} parent=5 // pred_region
        %s275 = ssub.s32 %s20, 1
        // Predicated region
        $region13: #{tpu_custom_call.1} parent=11 // pred_check
          %p276 = pneg %p67
        $region14: #{tpu_custom_call.1} parent=11 // pred_check_branch
          %278 = sbr.rel (%p276) target = $region16
        $region15: #{tpu_custom_call.1} parent=11 // pred_region
          _
        $region16: #{tpu_custom_call.1} parent=11 // pred_fallthru
          _
        // Predicated region
        $region17: #{tpu_custom_call.1} parent=11 // pred_check
          %p279 = pneg %p88
        $region18: #{tpu_custom_call.1} parent=11 // pred_check_branch
          %281 = sbr.rel (%p279) target = $region20
        $region19: #{tpu_custom_call.1} parent=11 // pred_region
          _
        $region20: #{tpu_custom_call.1} parent=11 // pred_fallthru
          _
        // Predicated region
        $region21: #{tpu_custom_call.1} parent=11 // pred_check
          %p282 = pneg %p109
        $region22: #{tpu_custom_call.1} parent=11 // pred_check_branch
          %284 = sbr.rel (%p282) target = $region24
        $region23: #{tpu_custom_call.1} parent=11 // pred_region
          _
        $region24: #{tpu_custom_call.1} parent=11 // pred_fallthru
          _
        // Predicated region
        $region25: #{tpu_custom_call.1} parent=11 // pred_check
          %p285 = pneg %p130
        $region26: #{tpu_custom_call.1} parent=11 // pred_check_branch
          %287 = sbr.rel (%p285) target = $region28
        $region27: #{tpu_custom_call.1} parent=11 // pred_region
          _
        $region28: #{tpu_custom_call.1} parent=11 // pred_fallthru
          _
        // Predicated region
        $region29: #{tpu_custom_call.1} parent=11 // pred_check
          %p288 = pneg %p151
        $region30: #{tpu_custom_call.1} parent=11 // pred_check_branch
          %290 = sbr.rel (%p288) target = $region32
        $region31: #{tpu_custom_call.1} parent=11 // pred_region
          _
        $region32: #{tpu_custom_call.1} parent=11 // pred_fallthru
          _
        // Predicated region
        $region33: #{tpu_custom_call.1} parent=11 // pred_check
          %p291 = pneg %p172
        $region34: #{tpu_custom_call.1} parent=11 // pred_check_branch
          %293 = sbr.rel (%p291) target = $region36
        $region35: #{tpu_custom_call.1} parent=11 // pred_region
          %s295 = ssub.s32 256, 256
          %296 = vsyncadd [#allocation4], %s295
          %s297 = sshll.u32 [#allocation3], 4
          %s298 = int_to_ptr.vmem [resolvable:$true] %s297
          %303 = dma.hbm_to_vmem [thread:$0]  %s6, 256, %s298, [#allocation4], 64, 64, 4
        $region36: #{tpu_custom_call.1} parent=11 // pred_fallthru
          _
        // Predicated region
        $region37: #{tpu_custom_call.1} parent=11 // pred_check
          %p304 = pneg %p193
        $region38: #{tpu_custom_call.1} parent=11 // pred_check_branch
          %306 = sbr.rel (%p304) target = $region40
        $region39: #{tpu_custom_call.1} parent=11 // pred_region
          _
        $region40: #{tpu_custom_call.1} parent=11 // pred_fallthru
          _
        // Predicated region
        $region41: #{tpu_custom_call.1} parent=11 // pred_check
          %p307 = pneg %p214
        $region42: #{tpu_custom_call.1} parent=11 // pred_check_branch
          %309 = sbr.rel (%p307) target = $region44
        $region43: #{tpu_custom_call.1} parent=11 // pred_region
          _
        $region44: #{tpu_custom_call.1} parent=11 // pred_fallthru
          _
        // Predicated region
        $region45: #{tpu_custom_call.1} parent=11 // pred_check
          %p310 = pneg %p235
        $region46: #{tpu_custom_call.1} parent=11 // pred_check_branch
          %312 = sbr.rel (%p310) target = $region48
        $region47: #{tpu_custom_call.1} parent=11 // pred_region
          _
        $region48: #{tpu_custom_call.1} parent=11 // pred_fallthru
          _
      $region12: #{tpu_custom_call.1} parent=5 // pred_fallthru
        _
      %p313 = scmp.lt.s32.totalorder %s20, 2
      // Predicated region
      $region49: #{tpu_custom_call.1} parent=5 // pred_check
        %p314 = pneg %p313
      $region50: #{tpu_custom_call.1} parent=5 // pred_check_branch
        %316 = sbr.rel (%p314) target = $region52
      $region51: #{tpu_custom_call.1} parent=5 // pred_region
        // Predicated region
        $region53: #{tpu_custom_call.1} parent=51 // pred_check
          %p317 = pneg %p40
        $region54: #{tpu_custom_call.1} parent=51 // pred_check_branch
          %319 = sbr.rel (%p317) target = $region56
        $region55: #{tpu_custom_call.1} parent=51 // pred_region
          %p320 = scmp.lt.s32.totalorder %s20, 1
          %s321 = scalar_select %p320, %s20, 1
          %s322 = smul.addr %s321, 8
          %s323 = scalar_lea.vmem %s0, %s322
        $region56: #{tpu_custom_call.1} parent=51 // pred_fallthru
          _
      $region52: #{tpu_custom_call.1} parent=5 // pred_fallthru
        _
      %p324 = scmp.le.s32.totalorder 1, %s20
      %p325 = scmp.lt.s32.totalorder %s20, 3
      %p326 = pnand %p324, %p325
      %p327 = pneg %p326
      // Predicated region
      $region57: #{tpu_custom_call.1} parent=5 // pred_check
        _
      $region58: #{tpu_custom_call.1} parent=5 // pred_check_branch
        %329 = sbr.rel (%p326) target = $region60
      $region59: #{tpu_custom_call.1} parent=5 // pred_region
        %s330 = ssub.s32 %s20, 1
        // Predicated region
        $region61: #{tpu_custom_call.1} parent=59 // pred_check
          %p331 = pneg %p172
        $region62: #{tpu_custom_call.1} parent=59 // pred_check_branch
          %333 = sbr.rel (%p331) target = $region64
        $region63: #{tpu_custom_call.1} parent=59 // pred_region
          %334 = dma.done [#allocation4], 256
        $region64: #{tpu_custom_call.1} parent=59 // pred_fallthru
          _
        %p335 = scmp.lt.s32.totalorder %s25, 1
        %s336 = scalar_select %p335, %s25, 1
        %s337 = smul.addr %s336, 8
        %s338 = scalar_lea.vmem %s0, %s337
        %p339 = pneg %p46
        %p340 = pneg %p43
        %p341 = pneg %p67
        %p342 = pneg %p64
        %p343 = pneg %p88
        %p344 = pneg %p85
        %p345 = pneg %p109
        %p346 = pneg %p106
        %p347 = pneg %p130
        %p348 = pneg %p127
        %p349 = pneg %p151
        %p350 = pneg %p148
        %p351 = pneg %p172
        %p352 = pneg %p169
        %p353 = pneg %p193
        %p354 = pneg %p190
        %p355 = pneg %p214
        %p356 = pneg %p211
        %p357 = pneg %p235
        %p358 = pneg %p232
        %p359 = pneg %p261
        %p360 = pneg %p258
        %s361 = sand.u32 %s248, 1
        %s362 = scalar_lea.sflag [#allocation5], %s361
        %s363 = sand.u32 %s248, 1
        %s364 = smul.addr %s363, 8
        %s365 = scalar_lea.vmem [#allocation6], %s364
        %p366 = scmp.lt.s32.totalorder %s25, 1
        %s367 = scalar_select %p366, %s25, 1
        %s368 = smul.addr %s367, 8
        %s369 = scalar_lea.vmem %s0, %s368
        %v371 = vld [vmem:[%s369] sm:$0xff]
        %v372 = vpack.c.bf16 %v371, %v371
        %v373 = vld [vmem:[%s1] sm:$0xf]
        %v374 = vld [vmem:[%s1 + $0x4] sm:$0xf]
        %v375 = vld [vmem:[%s1 + $0x8] sm:$0xf]
        %v376 = vld [vmem:[%s1 + $0xc] sm:$0xf]
        %v381 = vunpack.c.l.b16 %v373
        %v382 = vunpack.c.l.b16 %v374
        %v383 = vunpack.c.l.b16 %v375
        %v384 = vunpack.c.l.b16 %v376
        %v385 = vpack.c.b16 %v382, %v381
        %v386 = vpack.c.b16 %v384, %v383
        %vm389 = vcmask 261120
        %v391 = vsel %vm389, %v372, 0
        %393 = vmatprep.subr.bf16.mxu0 0
        %394 = vmatpush1.bf16.msra.mxu0 %v385
        %395 = vmatprep.subr.bf16.mxu0 0
        %396 = vmatpush1.bf16.msra.mxu0 %v386
        %397 = vmatprep.subr.bf16.mxu0 0
        %398 = vmatpush1.bf16.msra.mxu0 0
        %399 = vmatprep.subr.bf16.mxu0 0
        %400 = vmatpush1.bf16.msra.mxu0 0
        %401 = vmatprep.subr.bf16.mxu0 0
        %402 = vmatpush1.bf16.msra.mxu0 0
        %403 = vmatprep.subr.bf16.mxu0 0
        %404 = vmatpush1.bf16.msra.mxu0 0
        %405 = vmatprep.subr.bf16.mxu0 0
        %406 = vmatpush1.bf16.msra.mxu0 0
        %407 = vmatprep.subr.bf16.mxu0 0
        %408 = vmatpush1.bf16.msra.mxu0 0
        %409 = vmatprep.subr.bf16.mxu0 0
        %410 = vmatpush1.bf16.msra.mxu0 0
        %411 = vmatprep.subr.bf16.mxu0 0
        %412 = vmatpush1.bf16.msra.mxu0 0
        %413 = vmatprep.subr.bf16.mxu0 0
        %414 = vmatpush1.bf16.msra.mxu0 0
        %415 = vmatprep.subr.bf16.mxu0 0
        %416 = vmatpush1.bf16.msra.mxu0 0
        %417 = vmatprep.subr.bf16.mxu0 0
        %418 = vmatpush1.bf16.msra.mxu0 0
        %419 = vmatprep.subr.bf16.mxu0 0
        %420 = vmatpush1.bf16.msra.mxu0 0
        %421 = vmatprep.subr.bf16.mxu0 0
        %422 = vmatpush1.bf16.msra.mxu0 0
        %423 = vmatprep.subr.bf16.mxu0 0
        %424 = vmatpush1.bf16.msra.mxu0 0
        %425 = vmatprep.mubr.bf16.mxu0 0
        %426 = vmatmul.mubr.bf16.gmra.mrb[0].mxu0 %v391
        %v427 = vpop.f32.mrb[0].mxu0
        %v428 = vadd.f32 0.0, %v427
        %v429 = vpop.f32.mrb[0].mxu0
        %v430 = vpop.f32.mrb[0].mxu0
        %v431 = vpop.f32.mrb[0].mxu0
        %432 = vdwg.mxu0
        %v433 = vpack.c.bf16 %v428, %v428
        %435 = vrot.lane.b32.xlu0 %v433, 96
        %v436 = vpop.permute.xlu0 %435
        %vm437 = vcmask 64512
        %v439 = vsel %vm437, %v433, 0
        %v442 = vsel %vm437, %v436, 0
        %444 = vmatprep.subr.bf16.mxu0 0
        %445 = vmatpush1.bf16.xpose.msra.mxu0 %v442
        %446 = vmatprep.subr.bf16.mxu0 0
        %447 = vmatpush1.bf16.xpose.msra.mxu0 0
        %448 = vmatprep.subr.bf16.mxu0 0
        %449 = vmatpush1.bf16.xpose.msra.mxu0 0
        %450 = vmatprep.subr.bf16.mxu0 0
        %451 = vmatpush1.bf16.xpose.msra.mxu0 0
        %452 = vmatprep.subr.bf16.mxu0 0
        %453 = vmatpush1.bf16.xpose.msra.mxu0 0
        %454 = vmatprep.subr.bf16.mxu0 0
        %455 = vmatpush1.bf16.xpose.msra.mxu0 0
        %456 = vmatprep.subr.bf16.mxu0 0
        %457 = vmatpush1.bf16.xpose.msra.mxu0 0
        %458 = vmatprep.subr.bf16.mxu0 0
        %459 = vmatpush1.bf16.xpose.msra.mxu0 0
        %460 = vmatprep.subr.bf16.mxu0 0
        %461 = vmatpush1.bf16.xpose.msra.mxu0 0
        %462 = vmatprep.subr.bf16.mxu0 0
        %463 = vmatpush1.bf16.xpose.msra.mxu0 0
        %464 = vmatprep.subr.bf16.mxu0 0
        %465 = vmatpush1.bf16.xpose.msra.mxu0 0
        %466 = vmatprep.subr.bf16.mxu0 0
        %467 = vmatpush1.bf16.xpose.msra.mxu0 0
        %468 = vmatprep.subr.bf16.mxu0 0
        %469 = vmatpush1.bf16.xpose.msra.mxu0 0
        %470 = vmatprep.subr.bf16.mxu0 0
        %471 = vmatpush1.bf16.xpose.msra.mxu0 0
        %472 = vmatprep.subr.bf16.mxu0 0
        %473 = vmatpush1.bf16.xpose.msra.mxu0 0
        %474 = vmatprep.subr.bf16.mxu0 0
        %475 = vmatpush1.bf16.xpose.msra.mxu0 0
        %476 = vmatprep.mubr.bf16.mxu0 0
        %477 = vmatmul.mubr.bf16.gmra.mrb[0].mxu0 %v439
        %v478 = vpop.f32.mrb[0].mxu0
        %v479 = vadd.f32 0.0, %v478
        %v480 = vpop.f32.mrb[0].mxu0
        %v481 = vpop.f32.mrb[0].mxu0
        %v482 = vpop.f32.mrb[0].mxu0
        %483 = vdwg.mxu0
        %v484 = vsel %vm437, %v479, -inf
        %485 = vmax.xlane.f32.xlu0 %v484
        %v486 = vpop.xlane.xlu0 %485
        %v487 = vsub.f32 %v479, %v486
        %v488 = vmul.f32 %v487, 1.442695
        %v489 = vpow.pop %v488
        %v490 = vsel %vm437, %v489, 0.0
        %491 = vadd.xlane.f32.xlu0 %v490
        %v492 = vpop.xlane.xlu0 %491
        %v493 = vrcp.pop %v492
        %v494 = vmul.f32 %v489, %v493
        %v495 = vpack.c.bf16 %v494, %v494
        %496 = vrot.lane.b32.xlu0 %v433, 64
        %v497 = vpop.permute.xlu0 %496
        %v499 = vsel %vm437, %v495, 0
        %vm501 = vcmask 1043456
        %v503 = vsel %vm501, %v497, 0
        %505 = vmatprep.subr.bf16.mxu0 0
        %506 = vmatpush1.bf16.msra.mxu0 %v503
        %507 = vmatprep.subr.bf16.mxu0 0
        %508 = vmatpush1.bf16.msra.mxu0 0
        %509 = vmatprep.subr.bf16.mxu0 0
        %510 = vmatpush1.bf16.msra.mxu0 0
        %511 = vmatprep.subr.bf16.mxu0 0
        %512 = vmatpush1.bf16.msra.mxu0 0
        %513 = vmatprep.subr.bf16.mxu0 0
        %514 = vmatpush1.bf16.msra.mxu0 0
        %515 = vmatprep.subr.bf16.mxu0 0
        %516 = vmatpush1.bf16.msra.mxu0 0
        %517 = vmatprep.subr.bf16.mxu0 0
        %518 = vmatpush1.bf16.msra.mxu0 0
        %519 = vmatprep.subr.bf16.mxu0 0
        %520 = vmatpush1.bf16.msra.mxu0 0
        %521 = vmatprep.subr.bf16.mxu0 0
        %522 = vmatpush1.bf16.msra.mxu0 0
        %523 = vmatprep.subr.bf16.mxu0 0
        %524 = vmatpush1.bf16.msra.mxu0 0
        %525 = vmatprep.subr.bf16.mxu0 0
        %526 = vmatpush1.bf16.msra.mxu0 0
        %527 = vmatprep.subr.bf16.mxu0 0
        %528 = vmatpush1.bf16.msra.mxu0 0
        %529 = vmatprep.subr.bf16.mxu0 0
        %530 = vmatpush1.bf16.msra.mxu0 0
        %531 = vmatprep.subr.bf16.mxu0 0
        %532 = vmatpush1.bf16.msra.mxu0 0
        %533 = vmatprep.subr.bf16.mxu0 0
        %534 = vmatpush1.bf16.msra.mxu0 0
        %535 = vmatprep.subr.bf16.mxu0 0
        %536 = vmatpush1.bf16.msra.mxu0 0
        %537 = vmatprep.mubr.bf16.mxu0 0
        %538 = vmatmul.mubr.bf16.gmra.mrb[0].mxu0 %v499
        %v539 = vpop.f32.mrb[0].mxu0
        %v540 = vadd.f32 0.0, %v539
        %v541 = vpop.f32.mrb[0].mxu0
        %v542 = vpop.f32.mrb[0].mxu0
        %v543 = vpop.f32.mrb[0].mxu0
        %544 = vdwg.mxu0
        %545 = vst.msk [vmem:[#allocation2] sm:$0xff] %vm437, %v540
        %546 = vrot.lane.b32.xlu0 %v433, 120
        %v547 = vpop.permute.xlu0 %546
        %548 = vrot.lane.b32.xlu0 %v433, 88
        %v549 = vpop.permute.xlu0 %548
        %v551 = vsel %vm437, %v547, 0
        %v554 = vsel %vm437, %v549, 0
        %556 = vmatprep.subr.bf16.mxu0 0
        %557 = vmatpush1.bf16.xpose.msra.mxu0 %v554
        %558 = vmatprep.subr.bf16.mxu0 0
        %559 = vmatpush1.bf16.xpose.msra.mxu0 0
        %560 = vmatprep.subr.bf16.mxu0 0
        %561 = vmatpush1.bf16.xpose.msra.mxu0 0
        %562 = vmatprep.subr.bf16.mxu0 0
        %563 = vmatpush1.bf16.xpose.msra.mxu0 0
        %564 = vmatprep.subr.bf16.mxu0 0
        %565 = vmatpush1.bf16.xpose.msra.mxu0 0
        %566 = vmatprep.subr.bf16.mxu0 0
        %567 = vmatpush1.bf16.xpose.msra.mxu0 0
        %568 = vmatprep.subr.bf16.mxu0 0
        %569 = vmatpush1.bf16.xpose.msra.mxu0 0
        %570 = vmatprep.subr.bf16.mxu0 0
        %571 = vmatpush1.bf16.xpose.msra.mxu0 0
        %572 = vmatprep.subr.bf16.mxu0 0
        %573 = vmatpush1.bf16.xpose.msra.mxu0 0
        %574 = vmatprep.subr.bf16.mxu0 0
        %575 = vmatpush1.bf16.xpose.msra.mxu0 0
        %576 = vmatprep.subr.bf16.mxu0 0
        %577 = vmatpush1.bf16.xpose.msra.mxu0 0
        %578 = vmatprep.subr.bf16.mxu0 0
        %579 = vmatpush1.bf16.xpose.msra.mxu0 0
        %580 = vmatprep.subr.bf16.mxu0 0
        %581 = vmatpush1.bf16.xpose.msra.mxu0 0
        %582 = vmatprep.subr.bf16.mxu0 0
        %583 = vmatpush1.bf16.xpose.msra.mxu0 0
        %584 = vmatprep.subr.bf16.mxu0 0
        %585 = vmatpush1.bf16.xpose.msra.mxu0 0
        %586 = vmatprep.subr.bf16.mxu0 0
        %587 = vmatpush1.bf16.xpose.msra.mxu0 0
        %588 = vmatprep.mubr.bf16.mxu0 0
        %589 = vmatmul.mubr.bf16.gmra.mrb[0].mxu0 %v551
        %v590 = vpop.f32.mrb[0].mxu0
        %v591 = vadd.f32 0.0, %v590
        %v592 = vpop.f32.mrb[0].mxu0
        %v593 = vpop.f32.mrb[0].mxu0
        %v594 = vpop.f32.mrb[0].mxu0
        %595 = vdwg.mxu0
        %v596 = vsel %vm437, %v591, -inf
        %597 = vmax.xlane.f32.xlu0 %v596
        %v598 = vpop.xlane.xlu0 %597
        %v599 = vsub.f32 %v591, %v598
        %v600 = vmul.f32 %v599, 1.442695
        %v601 = vpow.pop %v600
        %v602 = vsel %vm437, %v601, 0.0
        %603 = vadd.xlane.f32.xlu0 %v602
        %v604 = vpop.xlane.xlu0 %603
        %v605 = vrcp.pop %v604
        %v606 = vmul.f32 %v601, %v605
        %v607 = vpack.c.bf16 %v606, %v606
        %608 = vrot.lane.b32.xlu0 %v433, 56
        %v609 = vpop.permute.xlu0 %608
        %v611 = vsel %vm437, %v607, 0
        %v614 = vsel %vm501, %v609, 0
        %616 = vmatprep.subr.bf16.mxu0 0
        %617 = vmatpush1.bf16.msra.mxu0 %v614
        %618 = vmatprep.subr.bf16.mxu0 0
        %619 = vmatpush1.bf16.msra.mxu0 0
        %620 = vmatprep.subr.bf16.mxu0 0
        %621 = vmatpush1.bf16.msra.mxu0 0
        %622 = vmatprep.subr.bf16.mxu0 0
        %623 = vmatpush1.bf16.msra.mxu0 0
        %624 = vmatprep.subr.bf16.mxu0 0
        %625 = vmatpush1.bf16.msra.mxu0 0
        %626 = vmatprep.subr.bf16.mxu0 0
        %627 = vmatpush1.bf16.msra.mxu0 0
        %628 = vmatprep.subr.bf16.mxu0 0
        %629 = vmatpush1.bf16.msra.mxu0 0
        %630 = vmatprep.subr.bf16.mxu0 0
        %631 = vmatpush1.bf16.msra.mxu0 0
        %632 = vmatprep.subr.bf16.mxu0 0
        %633 = vmatpush1.bf16.msra.mxu0 0
        %634 = vmatprep.subr.bf16.mxu0 0
        %635 = vmatpush1.bf16.msra.mxu0 0
        %636 = vmatprep.subr.bf16.mxu0 0
        %637 = vmatpush1.bf16.msra.mxu0 0
        %638 = vmatprep.subr.bf16.mxu0 0
        %639 = vmatpush1.bf16.msra.mxu0 0
        %640 = vmatprep.subr.bf16.mxu0 0
        %641 = vmatpush1.bf16.msra.mxu0 0
        %642 = vmatprep.subr.bf16.mxu0 0
        %643 = vmatpush1.bf16.msra.mxu0 0
        %644 = vmatprep.subr.bf16.mxu0 0
        %645 = vmatpush1.bf16.msra.mxu0 0
        %646 = vmatprep.subr.bf16.mxu0 0
        %647 = vmatpush1.bf16.msra.mxu0 0
        %648 = vmatprep.mubr.bf16.mxu0 0
        %649 = vmatmul.mubr.bf16.gmra.mrb[0].mxu0 %v611
        %v650 = vpop.f32.mrb[0].mxu0
        %v651 = vadd.f32 0.0, %v650
        %v652 = vpop.f32.mrb[0].mxu0
        %v653 = vpop.f32.mrb[0].mxu0
        %v654 = vpop.f32.mrb[0].mxu0
        %655 = vdwg.mxu0
        %657 = vrot.lane.b32.xlu0 %v651, 8
        %v658 = vpop.permute.xlu0 %657
        %vm660 = vcmask 130112
        %661 = vst.msk [vmem:[#allocation2] sm:$0xff] %vm660, %v658
        %662 = vrot.lane.b32.xlu0 %v433, 112
        %v663 = vpop.permute.xlu0 %662
        %664 = vrot.lane.b32.xlu0 %v433, 80
        %v665 = vpop.permute.xlu0 %664
        %v667 = vsel %vm437, %v663, 0
        %v670 = vsel %vm437, %v665, 0
        %672 = vmatprep.subr.bf16.mxu0 0
        %673 = vmatpush1.bf16.xpose.msra.mxu0 %v670
        %674 = vmatprep.subr.bf16.mxu0 0
        %675 = vmatpush1.bf16.xpose.msra.mxu0 0
        %676 = vmatprep.subr.bf16.mxu0 0
        %677 = vmatpush1.bf16.xpose.msra.mxu0 0
        %678 = vmatprep.subr.bf16.mxu0 0
        %679 = vmatpush1.bf16.xpose.msra.mxu0 0
        %680 = vmatprep.subr.bf16.mxu0 0
        %681 = vmatpush1.bf16.xpose.msra.mxu0 0
        %682 = vmatprep.subr.bf16.mxu0 0
        %683 = vmatpush1.bf16.xpose.msra.mxu0 0
        %684 = vmatprep.subr.bf16.mxu0 0
        %685 = vmatpush1.bf16.xpose.msra.mxu0 0
        %686 = vmatprep.subr.bf16.mxu0 0
        %687 = vmatpush1.bf16.xpose.msra.mxu0 0
        %688 = vmatprep.subr.bf16.mxu0 0
        %689 = vmatpush1.bf16.xpose.msra.mxu0 0
        %690 = vmatprep.subr.bf16.mxu0 0
        %691 = vmatpush1.bf16.xpose.msra.mxu0 0
        %692 = vmatprep.subr.bf16.mxu0 0
        %693 = vmatpush1.bf16.xpose.msra.mxu0 0
        %694 = vmatprep.subr.bf16.mxu0 0
        %695 = vmatpush1.bf16.xpose.msra.mxu0 0
        %696 = vmatprep.subr.bf16.mxu0 0
        %697 = vmatpush1.bf16.xpose.msra.mxu0 0
        %698 = vmatprep.subr.bf16.mxu0 0
        %699 = vmatpush1.bf16.xpose.msra.mxu0 0
        %700 = vmatprep.subr.bf16.mxu0 0
        %701 = vmatpush1.bf16.xpose.msra.mxu0 0
        %702 = vmatprep.subr.bf16.mxu0 0
        %703 = vmatpush1.bf16.xpose.msra.mxu0 0
        %704 = vmatprep.mubr.bf16.mxu0 0
        %705 = vmatmul.mubr.bf16.gmra.mrb[0].mxu0 %v667
        %v706 = vpop.f32.mrb[0].mxu0
        %v707 = vadd.f32 0.0, %v706
        %v708 = vpop.f32.mrb[0].mxu0
        %v709 = vpop.f32.mrb[0].mxu0
        %v710 = vpop.f32.mrb[0].mxu0
        %711 = vdwg.mxu0
        %v712 = vsel %vm437, %v707, -inf
        %713 = vmax.xlane.f32.xlu0 %v712
        %v714 = vpop.xlane.xlu0 %713
        %v715 = vsub.f32 %v707, %v714
        %v716 = vmul.f32 %v715, 1.442695
        %v717 = vpow.pop %v716
        %v718 = vsel %vm437, %v717, 0.0
        %719 = vadd.xlane.f32.xlu0 %v718
        %v720 = vpop.xlane.xlu0 %719
        %v721 = vrcp.pop %v720
        %v722 = vmul.f32 %v717, %v721
        %v723 = vpack.c.bf16 %v722, %v722
        %724 = vrot.lane.b32.xlu0 %v433, 48
        %v725 = vpop.permute.xlu0 %724
        %v727 = vsel %vm437, %v723, 0
        %v730 = vsel %vm501, %v725, 0
        %732 = vmatprep.subr.bf16.mxu0 0
        %733 = vmatpush1.bf16.msra.mxu0 %v730
        %734 = vmatprep.subr.bf16.mxu0 0
        %735 = vmatpush1.bf16.msra.mxu0 0
        %736 = vmatprep.subr.bf16.mxu0 0
        %737 = vmatpush1.bf16.msra.mxu0 0
        %738 = vmatprep.subr.bf16.mxu0 0
        %739 = vmatpush1.bf16.msra.mxu0 0
        %740 = vmatprep.subr.bf16.mxu0 0
        %741 = vmatpush1.bf16.msra.mxu0 0
        %742 = vmatprep.subr.bf16.mxu0 0
        %743 = vmatpush1.bf16.msra.mxu0 0
        %744 = vmatprep.subr.bf16.mxu0 0
        %745 = vmatpush1.bf16.msra.mxu0 0
        %746 = vmatprep.subr.bf16.mxu0 0
        %747 = vmatpush1.bf16.msra.mxu0 0
        %748 = vmatprep.subr.bf16.mxu0 0
        %749 = vmatpush1.bf16.msra.mxu0 0
        %750 = vmatprep.subr.bf16.mxu0 0
        %751 = vmatpush1.bf16.msra.mxu0 0
        %752 = vmatprep.subr.bf16.mxu0 0
        %753 = vmatpush1.bf16.msra.mxu0 0
        %754 = vmatprep.subr.bf16.mxu0 0
        %755 = vmatpush1.bf16.msra.mxu0 0
        %756 = vmatprep.subr.bf16.mxu0 0
        %757 = vmatpush1.bf16.msra.mxu0 0
        %758 = vmatprep.subr.bf16.mxu0 0
        %759 = vmatpush1.bf16.msra.mxu0 0
        %760 = vmatprep.subr.bf16.mxu0 0
        %761 = vmatpush1.bf16.msra.mxu0 0
        %762 = vmatprep.subr.bf16.mxu0 0
        %763 = vmatpush1.bf16.msra.mxu0 0
        %764 = vmatprep.mubr.bf16.mxu0 0
        %765 = vmatmul.mubr.bf16.gmra.mrb[0].mxu0 %v727
        %v766 = vpop.f32.mrb[0].mxu0
        %v767 = vadd.f32 0.0, %v766
        %v768 = vpop.f32.mrb[0].mxu0
        %v769 = vpop.f32.mrb[0].mxu0
        %v770 = vpop.f32.mrb[0].mxu0
        %771 = vdwg.mxu0
        %773 = vrot.lane.b32.xlu0 %v767, 16
        %v774 = vpop.permute.xlu0 %773
        %vm776 = vcmask 195712
        %777 = vst.msk [vmem:[#allocation2] sm:$0xff] %vm776, %v774
        %778 = vrot.lane.b32.xlu0 %v433, 104
        %v779 = vpop.permute.xlu0 %778
        %780 = vrot.lane.b32.xlu0 %v433, 72
        %v781 = vpop.permute.xlu0 %780
        %v783 = vsel %vm437, %v779, 0
        %v786 = vsel %vm437, %v781, 0
        %788 = vmatprep.subr.bf16.mxu0 0
        %789 = vmatpush1.bf16.xpose.msra.mxu0 %v786
        %790 = vmatprep.subr.bf16.mxu0 0
        %791 = vmatpush1.bf16.xpose.msra.mxu0 0
        %792 = vmatprep.subr.bf16.mxu0 0
        %793 = vmatpush1.bf16.xpose.msra.mxu0 0
        %794 = vmatprep.subr.bf16.mxu0 0
        %795 = vmatpush1.bf16.xpose.msra.mxu0 0
        %796 = vmatprep.subr.bf16.mxu0 0
        %797 = vmatpush1.bf16.xpose.msra.mxu0 0
        %798 = vmatprep.subr.bf16.mxu0 0
        %799 = vmatpush1.bf16.xpose.msra.mxu0 0
        %800 = vmatprep.subr.bf16.mxu0 0
        %801 = vmatpush1.bf16.xpose.msra.mxu0 0
        %802 = vmatprep.subr.bf16.mxu0 0
        %803 = vmatpush1.bf16.xpose.msra.mxu0 0
        %804 = vmatprep.subr.bf16.mxu0 0
        %805 = vmatpush1.bf16.xpose.msra.mxu0 0
        %806 = vmatprep.subr.bf16.mxu0 0
        %807 = vmatpush1.bf16.xpose.msra.mxu0 0
        %808 = vmatprep.subr.bf16.mxu0 0
        %809 = vmatpush1.bf16.xpose.msra.mxu0 0
        %810 = vmatprep.subr.bf16.mxu0 0
        %811 = vmatpush1.bf16.xpose.msra.mxu0 0
        %812 = vmatprep.subr.bf16.mxu0 0
        %813 = vmatpush1.bf16.xpose.msra.mxu0 0
        %814 = vmatprep.subr.bf16.mxu0 0
        %815 = vmatpush1.bf16.xpose.msra.mxu0 0
        %816 = vmatprep.subr.bf16.mxu0 0
        %817 = vmatpush1.bf16.xpose.msra.mxu0 0
        %818 = vmatprep.subr.bf16.mxu0 0
        %819 = vmatpush1.bf16.xpose.msra.mxu0 0
        %820 = vmatprep.mubr.bf16.mxu0 0
        %821 = vmatmul.mubr.bf16.gmra.mrb[0].mxu0 %v783
        %v822 = vpop.f32.mrb[0].mxu0
        %v823 = vadd.f32 0.0, %v822
        %v824 = vpop.f32.mrb[0].mxu0
        %v825 = vpop.f32.mrb[0].mxu0
        %v826 = vpop.f32.mrb[0].mxu0
        %827 = vdwg.mxu0
        %v828 = vsel %vm437, %v823, -inf
        %829 = vmax.xlane.f32.xlu0 %v828
        %v830 = vpop.xlane.xlu0 %829
        %v831 = vsub.f32 %v823, %v830
        %v832 = vmul.f32 %v831, 1.442695
        %v833 = vpow.pop %v832
        %v834 = vsel %vm437, %v833, 0.0
        %835 = vadd.xlane.f32.xlu0 %v834
        %v836 = vpop.xlane.xlu0 %835
        %v837 = vrcp.pop %v836
        %v838 = vmul.f32 %v833, %v837
        %v839 = vpack.c.bf16 %v838, %v838
        %840 = vrot.lane.b32.xlu0 %v433, 40
        %v841 = vpop.permute.xlu0 %840
        %v843 = vsel %vm437, %v839, 0
        %v846 = vsel %vm501, %v841, 0
        %848 = vmatprep.subr.bf16.mxu0 0
        %849 = vmatpush1.bf16.msra.mxu0 %v846
        %850 = vmatprep.subr.bf16.mxu0 0
        %851 = vmatpush1.bf16.msra.mxu0 0
        %852 = vmatprep.subr.bf16.mxu0 0
        %853 = vmatpush1.bf16.msra.mxu0 0
        %854 = vmatprep.subr.bf16.mxu0 0
        %855 = vmatpush1.bf16.msra.mxu0 0
        %856 = vmatprep.subr.bf16.mxu0 0
        %857 = vmatpush1.bf16.msra.mxu0 0
        %858 = vmatprep.subr.bf16.mxu0 0
        %859 = vmatpush1.bf16.msra.mxu0 0
        %860 = vmatprep.subr.bf16.mxu0 0
        %861 = vmatpush1.bf16.msra.mxu0 0
        %862 = vmatprep.subr.bf16.mxu0 0
        %863 = vmatpush1.bf16.msra.mxu0 0
        %864 = vmatprep.subr.bf16.mxu0 0
        %865 = vmatpush1.bf16.msra.mxu0 0
        %866 = vmatprep.subr.bf16.mxu0 0
        %867 = vmatpush1.bf16.msra.mxu0 0
        %868 = vmatprep.subr.bf16.mxu0 0
        %869 = vmatpush1.bf16.msra.mxu0 0
        %870 = vmatprep.subr.bf16.mxu0 0
        %871 = vmatpush1.bf16.msra.mxu0 0
        %872 = vmatprep.subr.bf16.mxu0 0
        %873 = vmatpush1.bf16.msra.mxu0 0
        %874 = vmatprep.subr.bf16.mxu0 0
        %875 = vmatpush1.bf16.msra.mxu0 0
        %876 = vmatprep.subr.bf16.mxu0 0
        %877 = vmatpush1.bf16.msra.mxu0 0
        %878 = vmatprep.subr.bf16.mxu0 0
        %879 = vmatpush1.bf16.msra.mxu0 0
        %880 = vmatprep.mubr.bf16.mxu0 0
        %881 = vmatmul.mubr.bf16.gmra.mrb[0].mxu0 %v843
        %v882 = vpop.f32.mrb[0].mxu0
        %v883 = vadd.f32 0.0, %v882
        %v884 = vpop.f32.mrb[0].mxu0
        %v885 = vpop.f32.mrb[0].mxu0
        %v886 = vpop.f32.mrb[0].mxu0
        %887 = vdwg.mxu0
        %889 = vrot.lane.b32.xlu0 %v883, 24
        %v890 = vpop.permute.xlu0 %889
        %vm892 = vcmask 261312
        %893 = vst.msk [vmem:[#allocation2] sm:$0xff] %vm892, %v890
        %v894 = vld [vmem:[#allocation2] sm:$0xff]
        %v895 = vpack.c.bf16 %v894, %v894
        %v896 = vld [vmem:[%s2] sm:$0xf]
        %v897 = vld [vmem:[%s2 + $0x4] sm:$0xf]
        %v898 = vld [vmem:[%s2 + $0x8] sm:$0xf]
        %v899 = vld [vmem:[%s2 + $0xc] sm:$0xf]
        %v900 = vld [vmem:[%s3] sm:$0x1]
        %v902 = vlaneseq
        %v903 = vshrl.u32 %v902, 7
        %v904 = vsub.s32 0, %v903
        %v905 = vrot.slane %v900, %v904
        %v911 = vunpack.c.l.b16 %v896
        %v912 = vunpack.c.l.b16 %v897
        %v913 = vunpack.c.l.b16 %v898
        %v914 = vunpack.c.l.b16 %v899
        %v915 = vpack.c.b16 %v912, %v911
        %v916 = vpack.c.b16 %v914, %v913
        %v920 = vsel %vm389, %v895, 0
        %922 = vmatprep.subr.bf16.mxu0 0
        %923 = vmatpush1.bf16.msra.mxu0 %v915
        %924 = vmatprep.subr.bf16.mxu0 0
        %925 = vmatpush1.bf16.msra.mxu0 %v916
        %926 = vmatprep.subr.bf16.mxu0 0
        %927 = vmatpush1.bf16.msra.mxu0 0
        %928 = vmatprep.subr.bf16.mxu0 0
        %929 = vmatpush1.bf16.msra.mxu0 0
        %930 = vmatprep.subr.bf16.mxu0 0
        %931 = vmatpush1.bf16.msra.mxu0 0
        %932 = vmatprep.subr.bf16.mxu0 0
        %933 = vmatpush1.bf16.msra.mxu0 0
        %934 = vmatprep.subr.bf16.mxu0 0
        %935 = vmatpush1.bf16.msra.mxu0 0
        %936 = vmatprep.subr.bf16.mxu0 0
        %937 = vmatpush1.bf16.msra.mxu0 0
        %938 = vmatprep.subr.bf16.mxu0 0
        %939 = vmatpush1.bf16.msra.mxu0 0
        %940 = vmatprep.subr.bf16.mxu0 0
        %941 = vmatpush1.bf16.msra.mxu0 0
        %942 = vmatprep.subr.bf16.mxu0 0
        %943 = vmatpush1.bf16.msra.mxu0 0
        %944 = vmatprep.subr.bf16.mxu0 0
        %945 = vmatpush1.bf16.msra.mxu0 0
        %946 = vmatprep.subr.bf16.mxu0 0
        %947 = vmatpush1.bf16.msra.mxu0 0
        %948 = vmatprep.subr.bf16.mxu0 0
        %949 = vmatpush1.bf16.msra.mxu0 0
        %950 = vmatprep.subr.bf16.mxu0 0
        %951 = vmatpush1.bf16.msra.mxu0 0
        %952 = vmatprep.subr.bf16.mxu0 0
        %953 = vmatpush1.bf16.msra.mxu0 0
        %954 = vmatprep.mubr.bf16.mxu0 0
        %955 = vmatmul.mubr.bf16.gmra.mrb[0].mxu0 %v920
        %v956 = vpop.f32.mrb[0].mxu0
        %v957 = vadd.f32 %v905, %v956
        %v958 = vpop.f32.mrb[0].mxu0
        %v959 = vpop.f32.mrb[0].mxu0
        %v960 = vpop.f32.mrb[0].mxu0
        %961 = vdwg.mxu0
        %v962 = vld [vmem:[%s4] sm:$0x1]
        %v963 = vld [vmem:[%s5] sm:$0x1]
        %v964 = vadd.f32 %v957, %v371
        %v965 = vsel %vm389, %v964, 0.0
        %966 = vadd.xlane.f32.xlu0 %v965
        %v967 = vpop.xlane.xlu0 %966
        %v968 = vrcp.pop 32.0
        %v969 = vmul.f32 %v967, %v968
        %v970 = vsub.f32 %v964, %v969
        %v971 = vmul.f32 %v970, %v970
        %v972 = vsel %vm389, %v971, 0.0
        %973 = vadd.xlane.f32.xlu0 %v972
        %v974 = vpop.xlane.xlu0 %973
        %v975 = vmul.f32 %v974, %v968
        %v976 = vadd.f32 %v975, 1e-05
        %v977 = vrsqrt.pop %v976
        %v978 = vmul.f32 %v970, %v977
        %v980 = vlaneseq
        %v981 = vshrl.u32 %v980, 7
        %v982 = vsub.s32 0, %v981
        %v983 = vrot.slane %v962, %v982
        %v985 = vmul.f32 %v978, %v983
        %v987 = vlaneseq
        %v988 = vshrl.u32 %v987, 7
        %v989 = vsub.s32 0, %v988
        %v990 = vrot.slane %v963, %v989
        %v992 = vadd.f32 %v985, %v990
        %v993 = vpack.c.bf16 %v992, %v992
        %v994 = vld [vmem:[#allocation3] sm:$0xf]
        %v995 = vld [vmem:[#allocation3 + $0x4] sm:$0xf]
        %v996 = vld [vmem:[#allocation3 + $0x8] sm:$0xf]
        %v997 = vld [vmem:[#allocation3 + $0xc] sm:$0xf]
        %v998 = vld [vmem:[%s7] sm:$0x1]
        %v1000 = vlaneseq
        %v1001 = vshrl.u32 %v1000, 7
        %v1002 = vsub.s32 0, %v1001
        %v1003 = vrot.slane %v998, %v1002
        %v1009 = vunpack.c.l.b16 %v994
        %v1010 = vunpack.c.l.b16 %v995
        %v1011 = vunpack.c.l.b16 %v996
        %v1012 = vunpack.c.l.b16 %v997
        %v1013 = vpack.c.b16 %v1010, %v1009
        %v1014 = vpack.c.b16 %v1012, %v1011
        %v1018 = vsel %vm389, %v993, 0
        %1020 = vmatprep.subr.bf16.mxu0 0
        %1021 = vmatpush1.bf16.msra.mxu0 %v1013
        %1022 = vmatprep.subr.bf16.mxu0 0
        %1023 = vmatpush1.bf16.msra.mxu0 %v1014
        %1024 = vmatprep.subr.bf16.mxu0 0
        %1025 = vmatpush1.bf16.msra.mxu0 0
        %1026 = vmatprep.subr.bf16.mxu0 0
        %1027 = vmatpush1.bf16.msra.mxu0 0
        %1028 = vmatprep.subr.bf16.mxu0 0
        %1029 = vmatpush1.bf16.msra.mxu0 0
        %1030 = vmatprep.subr.bf16.mxu0 0
        %1031 = vmatpush1.bf16.msra.mxu0 0
        %1032 = vmatprep.subr.bf16.mxu0 0
        %1033 = vmatpush1.bf16.msra.mxu0 0
        %1034 = vmatprep.subr.bf16.mxu0 0
        %1035 = vmatpush1.bf16.msra.mxu0 0
        %1036 = vmatprep.subr.bf16.mxu0 0
        %1037 = vmatpush1.bf16.msra.mxu0 0
        %1038 = vmatprep.subr.bf16.mxu0 0
        %1039 = vmatpush1.bf16.msra.mxu0 0
        %1040 = vmatprep.subr.bf16.mxu0 0
        %1041 = vmatpush1.bf16.msra.mxu0 0
        %1042 = vmatprep.subr.bf16.mxu0 0
        %1043 = vmatpush1.bf16.msra.mxu0 0
        %1044 = vmatprep.subr.bf16.mxu0 0
        %1045 = vmatpush1.bf16.msra.mxu0 0
        %1046 = vmatprep.subr.bf16.mxu0 0
        %1047 = vmatpush1.bf16.msra.mxu0 0
        %1048 = vmatprep.subr.bf16.mxu0 0
        %1049 = vmatpush1.bf16.msra.mxu0 0
        %1050 = vmatprep.subr.bf16.mxu0 0
        %1051 = vmatpush1.bf16.msra.mxu0 0
        %1052 = vmatprep.mubr.bf16.mxu0 0
        %1053 = vmatmul.mubr.bf16.gmra.mrb[0].mxu0 %v1018
        %v1054 = vpop.f32.mrb[0].mxu0
        %v1055 = vadd.f32 %v1003, %v1054
        %v1056 = vpop.f32.mrb[0].mxu0
        %v1057 = vpop.f32.mrb[0].mxu0
        %v1058 = vpop.f32.mrb[0].mxu0
        %1059 = vdwg.mxu0
        %v1060 = vmax.f32 %v1055, 0.0
        %v1061 = vpack.c.bf16 %v1060, %v1060
        %v1062 = vld [vmem:[%s8] sm:$0xf]
        %v1063 = vld [vmem:[%s8 + $0x4] sm:$0xf]
        %v1064 = vld [vmem:[%s8 + $0x8] sm:$0xf]
        %v1065 = vld [vmem:[%s8 + $0xc] sm:$0xf]
        %v1066 = vld [vmem:[%s8 + $0x10] sm:$0xf]
        %v1067 = vld [vmem:[%s8 + $0x14] sm:$0xf]
        %v1068 = vld [vmem:[%s8 + $0x18] sm:$0xf]
        %v1069 = vld [vmem:[%s8 + $0x1c] sm:$0xf]
        %v1070 = vld [vmem:[%s9] sm:$0x1]
        %v1072 = vlaneseq
        %v1073 = vshrl.u32 %v1072, 7
        %v1074 = vsub.s32 0, %v1073
        %v1075 = vrot.slane %v1070, %v1074
        %v1085 = vunpack.c.l.b16 %v1062
        %v1086 = vunpack.c.l.b16 %v1063
        %v1087 = vunpack.c.l.b16 %v1064
        %v1088 = vunpack.c.l.b16 %v1065
        %v1089 = vunpack.c.l.b16 %v1066
        %v1090 = vunpack.c.l.b16 %v1067
        %v1091 = vunpack.c.l.b16 %v1068
        %v1092 = vunpack.c.l.b16 %v1069
        %v1093 = vpack.c.b16 %v1086, %v1085
        %v1094 = vpack.c.b16 %v1088, %v1087
        %v1095 = vpack.c.b16 %v1090, %v1089
        %v1096 = vpack.c.b16 %v1092, %v1091
        %vm1101 = vcmask 523264
        %v1103 = vsel %vm1101, %v1061, 0
        %1105 = vmatprep.subr.bf16.mxu0 0
        %1106 = vmatpush1.bf16.msra.mxu0 %v1093
        %1107 = vmatprep.subr.bf16.mxu0 0
        %1108 = vmatpush1.bf16.msra.mxu0 %v1094
        %1109 = vmatprep.subr.bf16.mxu0 0
        %1110 = vmatpush1.bf16.msra.mxu0 %v1095
        %1111 = vmatprep.subr.bf16.mxu0 0
        %1112 = vmatpush1.bf16.msra.mxu0 %v1096
        %1113 = vmatprep.subr.bf16.mxu0 0
        %1114 = vmatpush1.bf16.msra.mxu0 0
        %1115 = vmatprep.subr.bf16.mxu0 0
        %1116 = vmatpush1.bf16.msra.mxu0 0
        %1117 = vmatprep.subr.bf16.mxu0 0
        %1118 = vmatpush1.bf16.msra.mxu0 0
        %1119 = vmatprep.subr.bf16.mxu0 0
        %1120 = vmatpush1.bf16.msra.mxu0 0
        %1121 = vmatprep.subr.bf16.mxu0 0
        %1122 = vmatpush1.bf16.msra.mxu0 0
        %1123 = vmatprep.subr.bf16.mxu0 0
        %1124 = vmatpush1.bf16.msra.mxu0 0
        %1125 = vmatprep.subr.bf16.mxu0 0
        %1126 = vmatpush1.bf16.msra.mxu0 0
        %1127 = vmatprep.subr.bf16.mxu0 0
        %1128 = vmatpush1.bf16.msra.mxu0 0
        %1129 = vmatprep.subr.bf16.mxu0 0
        %1130 = vmatpush1.bf16.msra.mxu0 0
        %1131 = vmatprep.subr.bf16.mxu0 0
        %1132 = vmatpush1.bf16.msra.mxu0 0
        %1133 = vmatprep.subr.bf16.mxu0 0
        %1134 = vmatpush1.bf16.msra.mxu0 0
        %1135 = vmatprep.subr.bf16.mxu0 0
        %1136 = vmatpush1.bf16.msra.mxu0 0
        %1137 = vmatprep.mubr.bf16.mxu0 0
        %1138 = vmatmul.mubr.bf16.gmra.mrb[0].mxu0 %v1103
        %v1139 = vpop.f32.mrb[0].mxu0
        %v1140 = vadd.f32 %v1075, %v1139
        %v1141 = vpop.f32.mrb[0].mxu0
        %v1142 = vpop.f32.mrb[0].mxu0
        %v1143 = vpop.f32.mrb[0].mxu0
        %1144 = vdwg.mxu0
        %v1145 = vadd.f32 %v1140, %v992
        %v1146 = vsel %vm389, %v1145, 0.0
        %1147 = vadd.xlane.f32.xlu0 %v1146
        %v1148 = vpop.xlane.xlu0 %1147
        %v1149 = vmul.f32 %v1148, %v968
        %v1150 = vsub.f32 %v1145, %v1149
        %v1151 = vmul.f32 %v1150, %v1150
        %v1152 = vsel %vm389, %v1151, 0.0
        %1153 = vadd.xlane.f32.xlu0 %v1152
        %v1154 = vpop.xlane.xlu0 %1153
        %v1155 = vmul.f32 %v1154, %v968
        %v1156 = vadd.f32 %v1155, 1e-05
        %v1157 = vrsqrt.pop %v1156
        %v1158 = vmul.f32 %v1150, %v1157
        %v1159 = vmul.f32 %v1158, %v983
        %v1160 = vadd.f32 %v1159, %v990
        %1161 = vst.msk [vmem:[%s365] sm:$0xff] %vm389, %v1160
        %s1162 = sand.u32 %s248, 1
        %s1163 = scalar_lea.sflag [#allocation5], %s1162
        %s1164 = sand.u32 %s248, 1
        %s1165 = smul.addr %s1164, 8
        %s1166 = scalar_lea.vmem [#allocation6], %s1165
        // Predicated region
        $region65: #{tpu_custom_call.1} parent=59 // pred_check
          %p1167 = pneg %p258
        $region66: #{tpu_custom_call.1} parent=59 // pred_check_branch
          %1169 = sbr.rel (%p1167) target = $region68
        $region67: #{tpu_custom_call.1} parent=59 // pred_region
          %s1171 = ssub.s32 128, 128
          %1172 = vsyncadd %s1163, %s1171
          %s1173 = smul.addr %s25, 128
          %s1174 = scalar_lea.hbm %s10, %s1173
          %s1176 = sshll.u32 %s1166, 4
          %s1177 = int_to_ptr.vmem [resolvable:$true] %s1176
          %1179 = dma.vmem_to_hbm [thread:$0]  %s1177, 128, %s1174, %s1163
        $region68: #{tpu_custom_call.1} parent=59 // pred_fallthru
          _
      $region60: #{tpu_custom_call.1} parent=5 // pred_fallthru
        _
      %p1180 = scmp.le.s32.totalorder 2, %s20
      // Predicated region
      $region69: #{tpu_custom_call.1} parent=5 // pred_check
        %p1181 = pneg %p1180
      $region70: #{tpu_custom_call.1} parent=5 // pred_check_branch
        %1183 = sbr.rel (%p1181) target = $region72
      $region71: #{tpu_custom_call.1} parent=5 // pred_region
        %s1184 = ssub.s32 %s20, 2
        // Predicated region
        $region73: #{tpu_custom_call.1} parent=71 // pred_check
          %p1185 = pneg %p264
        $region74: #{tpu_custom_call.1} parent=71 // pred_check_branch
          %1187 = sbr.rel (%p1185) target = $region76
        $region75: #{tpu_custom_call.1} parent=71 // pred_region
          %s1188 = sand.u32 %s249, 1
          %s1189 = scalar_lea.sflag [#allocation5], %s1188
          %s1190 = sand.u32 %s249, 1
          %s1191 = smul.addr %s1190, 8
          %s1192 = scalar_lea.vmem [#allocation6], %s1191
          %1193 = dma.done %s1189, 128
        $region76: #{tpu_custom_call.1} parent=71 // pred_fallthru
          _
      $region72: #{tpu_custom_call.1} parent=5 // pred_fallthru
        _
    $region6: #{tpu_custom_call.1} parent=1 // loop_footer
      %s24 = sadd.s32 1, %s20
    $region7: #{tpu_custom_call.1} parent=1 // loop_footer_branch
      %19 = sbr.rel target = $region3
    $region8: #{tpu_custom_call.1} parent=1 // loop_exit
      _
    %1194 = vsyncpa [#allocation4], 1
    %s1195 = scalar_lea.sflag [#allocation4], 1
    %1196 = vsyncpa %s1195, 1
    %1197 = vsyncpa [#allocation5], 1
    %s1198 = scalar_lea.sflag [#allocation5], 1
    %1199 = vsyncpa %s1198, 1

</llo_original>
